<compile_context>
chip_gen: v6e
topology: v6e:2x2x1
jax: 0.10.0
libtpu: 0.0.40
codegen_flags: <defaults>
</compile_context>

<pallas_src>
import math
import functools

import jax
import jax.numpy as jnp
from jax.experimental import pallas as pl
from jax.experimental.pallas import tpu as pltpu

NHEAD = 4
NLAYERS = 2
LN_EPS = 1e-5
NEG_INF = -1e9


def _layer_norm(x, gamma, beta):
    mean = jnp.mean(x, axis=-1, keepdims=True)
    var = jnp.mean((x - mean) ** 2, axis=-1, keepdims=True)
    return (x - mean) * jax.lax.rsqrt(var + LN_EPS) * gamma + beta


def transformer_kernel(x_ref, pe_ref, bmask_ref, hmask_ref,
                       wpre_ref, bpre_ref,
                       qw_ref, qb_ref, kw_ref, kb_ref, vw_ref, vb_ref,
                       ow_ref, ob_ref, ln1_g_ref, ln1_b_ref,
                       ff1_w_ref, ff1_b_ref, ff2_w_ref, ff2_b_ref,
                       ln2_g_ref, ln2_b_ref,
                       o_ref, *, hidden_dim, seq_len):
    H = hidden_dim
    dh = H // NHEAD
    inv_sqrt_dh = 1.0 / math.sqrt(dh)
    sqrt_l = math.sqrt(seq_len)

    # pre_proc on the whole (R, Din) row slab (R = batch_tile * L rows).
    x = x_ref[...]                                                   # (R, Din)
    h = jnp.dot(x, wpre_ref[...], preferred_element_type=jnp.float32) + bpre_ref[...]

    # additive positional encoding (pre-tiled per row), then scale by sqrt(L)
    h = (h + pe_ref[...]) * sqrt_l                                   # (R, H)

    bmask = bmask_ref[...]                                           # (R, R) 0 / -1e9

    for layer in range(NLAYERS):
        # ---- multi-head self-attention (post-norm) ----
        q = jnp.dot(h, qw_ref[layer], preferred_element_type=jnp.float32) + qb_ref[layer]
        k = jnp.dot(h, kw_ref[layer], preferred_element_type=jnp.float32) + kb_ref[layer]
        v = jnp.dot(h, vw_ref[layer], preferred_element_type=jnp.float32) + vb_ref[layer]

        attn = jnp.zeros_like(h)                                     # (R, H)
        for hd in range(NHEAD):
            hm = hmask_ref[hd]                                       # (1, H) 0/1 column mask
            # per-head scores: masked-q . k  contracting the lane dim (no transpose)
            s = jax.lax.dot_general(q * hm, k, (((1,), (1,)), ((), ())),
                                    preferred_element_type=jnp.float32)
            s = s * inv_sqrt_dh + bmask                              # block cross-sequence
            s = s - jnp.max(s, axis=-1, keepdims=True)
            p = jnp.exp(s)
            p = p * pl.reciprocal(jnp.sum(p, axis=-1, keepdims=True), approx=False)
            # head output lands in its own columns (hm zeroes the rest); summing
            # heads reproduces concat(heads) without any lane shuffle.
            attn = attn + jnp.dot(p, v * hm, preferred_element_type=jnp.float32)

        attn = jnp.dot(attn, ow_ref[layer],
                       preferred_element_type=jnp.float32) + ob_ref[layer]
        h = _layer_norm(h + attn, ln1_g_ref[layer], ln1_b_ref[layer])

        # ---- feed-forward (Linear -> ReLU -> Linear), post-norm ----
        ff = jnp.dot(h, ff1_w_ref[layer],
                     preferred_element_type=jnp.float32) + ff1_b_ref[layer]
        ff = jnp.maximum(ff, 0.0)
        ff = jnp.dot(ff, ff2_w_ref[layer],
                     preferred_element_type=jnp.float32) + ff2_b_ref[layer]
        h = _layer_norm(h + ff, ln2_g_ref[layer], ln2_b_ref[layer])

    o_ref[...] = h


def _pick_batch_tile(batch, seq_len, target_rows=256):
    """Largest divisor of `batch` whose row slab (bb*seq_len) stays near target."""
    bb = max(1, min(batch, max(1, target_rows // max(seq_len, 1))))
    while batch % bb:
        bb -= 1
    return bb


def _head_masks(hidden_dim):
    dh = hidden_dim // NHEAD
    lane_head = jnp.arange(hidden_dim, dtype=jnp.int32) // dh        # (H,)
    masks = (lane_head[None, :] == jnp.arange(NHEAD, dtype=jnp.int32)[:, None])
    return masks.astype(jnp.float32)[:, None, :]                     # (NHEAD, 1, H)


def _batch_block_mask(batch_tile, seq_len):
    r = batch_tile * seq_len
    row_batch = jnp.arange(r, dtype=jnp.int32) // seq_len
    same = row_batch[:, None] == row_batch[None, :]
    return jnp.where(same, 0.0, NEG_INF).astype(jnp.float32)         # (R, R)


def float_transformer_forward(x, p, *, batch_tile=None):
    B, L, Din = x.shape
    H = p["w_pre"].shape[1]
    BB = _pick_batch_tile(B, L) if batch_tile is None else batch_tile
    assert B % BB == 0, "batch tile must divide batch"
    R = BB * L
    num_tiles = B // BB

    # Flatten to a row slab outside the kernel (free XLA reshape).
    x2 = x.reshape(B * L, Din)
    pe_rows = jnp.tile(p["pe"], (BB, 1))                             # (R, H)
    bmask = _batch_block_mask(BB, L)                                 # (R, R)
    hmask = _head_masks(H)                                           # (NHEAD, 1, H)

    kernel = functools.partial(transformer_kernel, hidden_dim=H, seq_len=L)

    def const_spec(shape):
        n = len(shape)
        return pl.BlockSpec(shape, lambda i, _n=n: (0,) * _n)

    in_specs = [
        pl.BlockSpec((R, Din), lambda i: (i, 0)),   # x row slab for this batch tile
        const_spec((R, H)),                         # pe (pre-tiled per row)
        const_spec((R, R)),                         # batch block mask
        const_spec((NHEAD, 1, H)),                  # per-head column masks
        const_spec((Din, H)),                       # w_pre
        const_spec((1, H)),                         # b_pre
        const_spec((NLAYERS, H, H)),                # q_w
        const_spec((NLAYERS, 1, H)),                # q_b
        const_spec((NLAYERS, H, H)),                # k_w
        const_spec((NLAYERS, 1, H)),                # k_b
        const_spec((NLAYERS, H, H)),                # v_w
        const_spec((NLAYERS, 1, H)),                # v_b
        const_spec((NLAYERS, H, H)),                # out_w
        const_spec((NLAYERS, 1, H)),                # out_b
        const_spec((NLAYERS, 1, H)),                # ln1_g
        const_spec((NLAYERS, 1, H)),                # ln1_b
        const_spec((NLAYERS, H, H)),                # ff1_w
        const_spec((NLAYERS, 1, H)),                # ff1_b
        const_spec((NLAYERS, H, H)),                # ff2_w
        const_spec((NLAYERS, 1, H)),                # ff2_b
        const_spec((NLAYERS, 1, H)),                # ln2_g
        const_spec((NLAYERS, 1, H)),                # ln2_b
    ]

    out = pl.pallas_call(
        kernel,
        out_shape=jax.ShapeDtypeStruct((B * L, H), jnp.float32),
        grid=(num_tiles,),
        in_specs=in_specs,
        out_specs=pl.BlockSpec((R, H), lambda i: (i, 0)),
        compiler_params=pltpu.CompilerParams(dimension_semantics=("parallel",)),
    )(x2, pe_rows, bmask, hmask,
      p["w_pre"], p["b_pre"],
      p["q_w"], p["q_b"], p["k_w"], p["k_b"], p["v_w"], p["v_b"],
      p["out_w"], p["out_b"], p["ln1_g"], p["ln1_b"],
      p["ff1_w"], p["ff1_b"], p["ff2_w"], p["ff2_b"],
      p["ln2_g"], p["ln2_b"])

    return out.reshape(B, L, H)


def sinusoidal_pe(seq_len, hidden_dim):
    position = jnp.arange(seq_len, dtype=jnp.float32)[:, None]
    div_term = jnp.exp(jnp.arange(0, hidden_dim, 2, dtype=jnp.float32)
                       * (-math.log(10000.0) / hidden_dim))
    pe = jnp.zeros((seq_len, hidden_dim), jnp.float32)
    pe = pe.at[:, 0::2].set(jnp.sin(position * div_term))
    pe = pe.at[:, 1::2].set(jnp.cos(position * div_term))
    return pe


def init_params(key, input_dim, hidden_dim, seq_len):
    H = hidden_dim
    ks = jax.random.split(key, 14)

    def u(k, shape, fan_in):
        bound = 1.0 / math.sqrt(fan_in)
        return jax.random.uniform(k, shape, jnp.float32, -bound, bound)

    return {
        "pe": sinusoidal_pe(seq_len, H),
        "w_pre": u(ks[0], (input_dim, H), input_dim),
        "b_pre": u(ks[1], (1, H), input_dim),
        "q_w": u(ks[2], (NLAYERS, H, H), H),
        "k_w": u(ks[3], (NLAYERS, H, H), H),
        "v_w": u(ks[4], (NLAYERS, H, H), H),
        "q_b": u(ks[5], (NLAYERS, 1, H), H),
        "k_b": u(ks[6], (NLAYERS, 1, H), H),
        "v_b": u(ks[7], (NLAYERS, 1, H), H),
        "out_w": u(ks[8], (NLAYERS, H, H), H),
        "out_b": u(ks[9], (NLAYERS, 1, H), H),
        "ln1_g": jnp.ones((NLAYERS, 1, H), jnp.float32),
        "ln1_b": jnp.zeros((NLAYERS, 1, H), jnp.float32),
        "ff1_w": u(ks[10], (NLAYERS, H, H), H),
        "ff1_b": u(ks[11], (NLAYERS, 1, H), H),
        "ff2_w": u(ks[12], (NLAYERS, H, H), H),
        "ff2_b": u(ks[13], (NLAYERS, 1, H), H),
        "ln2_g": jnp.ones((NLAYERS, 1, H), jnp.float32),
        "ln2_b": jnp.zeros((NLAYERS, 1, H), jnp.float32),
    }


def reference_forward(x, p):
    """Pure-JAX reference of the same forward pass (for validation)."""
    B, L, Din = x.shape
    H = p["w_pre"].shape[1]
    dh = H // NHEAD
    hp = jax.lax.Precision.HIGHEST
    ein = functools.partial(jnp.einsum, precision=hp)

    h = ein("bld,dh->blh", x, p["w_pre"]) + p["b_pre"][0]
    h = (h + p["pe"][None]) * math.sqrt(L)
    for layer in range(NLAYERS):
        q = ein("blh,hk->blk", h, p["q_w"][layer]) + p["q_b"][layer, 0]
        k = ein("blh,hk->blk", h, p["k_w"][layer]) + p["k_b"][layer, 0]
        v = ein("blh,hk->blk", h, p["v_w"][layer]) + p["v_b"][layer, 0]
        qh = q.reshape(B, L, NHEAD, dh).transpose(0, 2, 1, 3)
        kh = k.reshape(B, L, NHEAD, dh).transpose(0, 2, 1, 3)
        vh = v.reshape(B, L, NHEAD, dh).transpose(0, 2, 1, 3)
        s = ein("bnqd,bnkd->bnqk", qh, kh) / math.sqrt(dh)
        pr = jax.nn.softmax(s, axis=-1)
        a = ein("bnqk,bnkd->bnqd", pr, vh).transpose(0, 2, 1, 3).reshape(B, L, H)
        a = ein("blh,hk->blk", a, p["out_w"][layer]) + p["out_b"][layer, 0]
        h = _layer_norm(h + a, p["ln1_g"][layer, 0], p["ln1_b"][layer, 0])
        ff = jax.nn.relu(ein("blh,hk->blk", h, p["ff1_w"][layer]) + p["ff1_b"][layer, 0])
        ff = ein("blh,hk->blk", ff, p["ff2_w"][layer]) + p["ff2_b"][layer, 0]
        h = _layer_norm(h + ff, p["ln2_g"][layer, 0], p["ln2_b"][layer, 0])
    return h


if __name__ == "__main__":
    B, L, INPUT_DIM, HIDDEN_DIM = 2, 8, 4, 32

    key = jax.random.PRNGKey(0)
    kx, kp = jax.random.split(key)
    x = jax.random.normal(kx, (B, L, INPUT_DIM), jnp.float32)
    params = init_params(kp, INPUT_DIM, HIDDEN_DIM, L)

    out = jax.block_until_ready(float_transformer_forward(x, params))
    ref = jax.block_until_ready(reference_forward(x, params))

    assert out.shape == (B, L, HIDDEN_DIM)
    max_err = float(jnp.max(jnp.abs(out - ref)))
    assert jnp.allclose(out, ref, atol=1e-3, rtol=1e-3), \
        f"mismatch vs JAX reference (max abs err {max_err})"

    print("KERNEL_OK")
</pallas_src>

<mosaic_0001>
module attributes {stable_mosaic.version = 11 : i64} {
  func.func @transformer_kernel(%arg0: i32, %arg1: memref<16x4xf32, #tpu.memory_space<vmem>>, %arg2: memref<16x32xf32, #tpu.memory_space<vmem>>, %arg3: memref<16x16xf32, #tpu.memory_space<vmem>>, %arg4: memref<4x1x32xf32, #tpu.memory_space<vmem>>, %arg5: memref<4x32xf32, #tpu.memory_space<vmem>>, %arg6: memref<1x32xf32, #tpu.memory_space<vmem>>, %arg7: memref<2x32x32xf32, #tpu.memory_space<vmem>>, %arg8: memref<2x1x32xf32, #tpu.memory_space<vmem>>, %arg9: memref<2x32x32xf32, #tpu.memory_space<vmem>>, %arg10: memref<2x1x32xf32, #tpu.memory_space<vmem>>, %arg11: memref<2x32x32xf32, #tpu.memory_space<vmem>>, %arg12: memref<2x1x32xf32, #tpu.memory_space<vmem>>, %arg13: memref<2x32x32xf32, #tpu.memory_space<vmem>>, %arg14: memref<2x1x32xf32, #tpu.memory_space<vmem>>, %arg15: memref<2x1x32xf32, #tpu.memory_space<vmem>>, %arg16: memref<2x1x32xf32, #tpu.memory_space<vmem>>, %arg17: memref<2x32x32xf32, #tpu.memory_space<vmem>>, %arg18: memref<2x1x32xf32, #tpu.memory_space<vmem>>, %arg19: memref<2x32x32xf32, #tpu.memory_space<vmem>>, %arg20: memref<2x1x32xf32, #tpu.memory_space<vmem>>, %arg21: memref<2x1x32xf32, #tpu.memory_space<vmem>>, %arg22: memref<2x1x32xf32, #tpu.memory_space<vmem>>, %arg23: memref<16x32xf32, #tpu.memory_space<vmem>>) attributes {dimension_semantics = [#tpu.dimension_semantics<parallel>], iteration_bounds = array<i64: 1>, scalar_prefetch = 0 : i64, scratch_operands = 0 : i64, tpu.core_type = #tpu.core_type<tc>, window_params = [{transform_indices = @transform_0, window_bounds = array<i64: 16, 4>}, {pipeline_mode = #tpu.pipeline_mode<synchronous>, transform_indices = @transform_1, window_bounds = array<i64: 16, 32>}, {pipeline_mode = #tpu.pipeline_mode<synchronous>, transform_indices = @transform_2, window_bounds = array<i64: 16, 16>}, {pipeline_mode = #tpu.pipeline_mode<synchronous>, transform_indices = @transform_3, window_bounds = array<i64: 4, 1, 32>}, {pipeline_mode = #tpu.pipeline_mode<synchronous>, transform_indices = @transform_4, window_bounds = array<i64: 4, 32>}, {pipeline_mode = #tpu.pipeline_mode<synchronous>, transform_indices = @transform_5, window_bounds = array<i64: 1, 32>}, {pipeline_mode = #tpu.pipeline_mode<synchronous>, transform_indices = @transform_6, window_bounds = array<i64: 2, 32, 32>}, {pipeline_mode = #tpu.pipeline_mode<synchronous>, transform_indices = @transform_7, window_bounds = array<i64: 2, 1, 32>}, {pipeline_mode = #tpu.pipeline_mode<synchronous>, transform_indices = @transform_8, window_bounds = array<i64: 2, 32, 32>}, {pipeline_mode = #tpu.pipeline_mode<synchronous>, transform_indices = @transform_9, window_bounds = array<i64: 2, 1, 32>}, {pipeline_mode = #tpu.pipeline_mode<synchronous>, transform_indices = @transform_10, window_bounds = array<i64: 2, 32, 32>}, {pipeline_mode = #tpu.pipeline_mode<synchronous>, transform_indices = @transform_11, window_bounds = array<i64: 2, 1, 32>}, {pipeline_mode = #tpu.pipeline_mode<synchronous>, transform_indices = @transform_12, window_bounds = array<i64: 2, 32, 32>}, {pipeline_mode = #tpu.pipeline_mode<synchronous>, transform_indices = @transform_13, window_bounds = array<i64: 2, 1, 32>}, {pipeline_mode = #tpu.pipeline_mode<synchronous>, transform_indices = @transform_14, window_bounds = array<i64: 2, 1, 32>}, {pipeline_mode = #tpu.pipeline_mode<synchronous>, transform_indices = @transform_15, window_bounds = array<i64: 2, 1, 32>}, {pipeline_mode = #tpu.pipeline_mode<synchronous>, transform_indices = @transform_16, window_bounds = array<i64: 2, 32, 32>}, {pipeline_mode = #tpu.pipeline_mode<synchronous>, transform_indices = @transform_17, window_bounds = array<i64: 2, 1, 32>}, {pipeline_mode = #tpu.pipeline_mode<synchronous>, transform_indices = @transform_18, window_bounds = array<i64: 2, 32, 32>}, {pipeline_mode = #tpu.pipeline_mode<synchronous>, transform_indices = @transform_19, window_bounds = array<i64: 2, 1, 32>}, {pipeline_mode = #tpu.pipeline_mode<synchronous>, transform_indices = @transform_20, window_bounds = array<i64: 2, 1, 32>}, {pipeline_mode = #tpu.pipeline_mode<synchronous>, transform_indices = @transform_21, window_bounds = array<i64: 2, 1, 32>}, {transform_indices = @transform_22, window_bounds = array<i64: 16, 32>}]} {
    %c0 = arith.constant 0 : index
    %c0_0 = arith.constant 0 : index
    %0 = vector.load %arg1[%c0, %c0_0] : memref<16x4xf32, #tpu.memory_space<vmem>>, vector<16x4xf32>
    %c0_1 = arith.constant 0 : index
    %c0_2 = arith.constant 0 : index
    %1 = vector.load %arg5[%c0_1, %c0_2] : memref<4x32xf32, #tpu.memory_space<vmem>>, vector<4x32xf32>
    %cst = arith.constant dense<0.000000e+00> : vector<16x32xf32>
    %2 = tpu.matmul %0, %1, %cst {dimension_numbers = #tpu.dot_dimension_numbers<[1], [0], [0], [1], [0, 0, 1, 1], [], []>} : vector<16x4xf32>, vector<4x32xf32>, vector<16x32xf32> -> vector<16x32xf32>
    %c0_3 = arith.constant 0 : index
    %c0_4 = arith.constant 0 : index
    %3 = vector.load %arg6[%c0_3, %c0_4] : memref<1x32xf32, #tpu.memory_space<vmem>>, vector<1x32xf32>
    %4 = vector.broadcast %3 : vector<1x32xf32> to vector<16x32xf32>
    %5 = arith.addf %2, %4 : vector<16x32xf32>
    %c0_5 = arith.constant 0 : index
    %c0_6 = arith.constant 0 : index
    %6 = vector.load %arg2[%c0_5, %c0_6] : memref<16x32xf32, #tpu.memory_space<vmem>>, vector<16x32xf32>
    %7 = arith.addf %5, %6 : vector<16x32xf32>
    %cst_7 = arith.constant 2.82842708 : f32
    %8 = vector.broadcast %cst_7 : f32 to vector<16x32xf32>
    %9 = arith.mulf %7, %8 : vector<16x32xf32>
    %c0_8 = arith.constant 0 : index
    %c0_9 = arith.constant 0 : index
    %10 = vector.load %arg3[%c0_8, %c0_9] : memref<16x16xf32, #tpu.memory_space<vmem>>, vector<16x16xf32>
    %c0_10 = arith.constant 0 : index
    %c0_11 = arith.constant 0 : index
    %c0_12 = arith.constant 0 : index
    %11 = vector.load %arg7[%c0_10, %c0_11, %c0_12] : memref<2x32x32xf32, #tpu.memory_space<vmem>>, vector<1x32x32xf32>
    %12 = vector.shape_cast %11 : vector<1x32x32xf32> to vector<32x32xf32>
    %cst_13 = arith.constant dense<0.000000e+00> : vector<16x32xf32>
    %13 = tpu.matmul %9, %12, %cst_13 {dimension_numbers = #tpu.dot_dimension_numbers<[1], [0], [0], [1], [0, 0, 1, 1], [], []>} : vector<16x32xf32>, vector<32x32xf32>, vector<16x32xf32> -> vector<16x32xf32>
    %c0_14 = arith.constant 0 : index
    %c0_15 = arith.constant 0 : index
    %c0_16 = arith.constant 0 : index
    %14 = vector.load %arg8[%c0_14, %c0_15, %c0_16] : memref<2x1x32xf32, #tpu.memory_space<vmem>>, vector<1x1x32xf32>
    %15 = vector.shape_cast %14 : vector<1x1x32xf32> to vector<1x32xf32>
    %16 = vector.broadcast %15 : vector<1x32xf32> to vector<16x32xf32>
    %17 = arith.addf %13, %16 : vector<16x32xf32>
    %c0_17 = arith.constant 0 : index
    %c0_18 = arith.constant 0 : index
    %c0_19 = arith.constant 0 : index
    %18 = vector.load %arg9[%c0_17, %c0_18, %c0_19] : memref<2x32x32xf32, #tpu.memory_space<vmem>>, vector<1x32x32xf32>
    %19 = vector.shape_cast %18 : vector<1x32x32xf32> to vector<32x32xf32>
    %cst_20 = arith.constant dense<0.000000e+00> : vector<16x32xf32>
    %20 = tpu.matmul %9, %19, %cst_20 {dimension_numbers = #tpu.dot_dimension_numbers<[1], [0], [0], [1], [0, 0, 1, 1], [], []>} : vector<16x32xf32>, vector<32x32xf32>, vector<16x32xf32> -> vector<16x32xf32>
    %c0_21 = arith.constant 0 : index
    %c0_22 = arith.constant 0 : index
    %c0_23 = arith.constant 0 : index
    %21 = vector.load %arg10[%c0_21, %c0_22, %c0_23] : memref<2x1x32xf32, #tpu.memory_space<vmem>>, vector<1x1x32xf32>
    %22 = vector.shape_cast %21 : vector<1x1x32xf32> to vector<1x32xf32>
    %23 = vector.broadcast %22 : vector<1x32xf32> to vector<16x32xf32>
    %24 = arith.addf %20, %23 : vector<16x32xf32>
    %c0_24 = arith.constant 0 : index
    %c0_25 = arith.constant 0 : index
    %c0_26 = arith.constant 0 : index
    %25 = vector.load %arg11[%c0_24, %c0_25, %c0_26] : memref<2x32x32xf32, #tpu.memory_space<vmem>>, vector<1x32x32xf32>
    %26 = vector.shape_cast %25 : vector<1x32x32xf32> to vector<32x32xf32>
    %cst_27 = arith.constant dense<0.000000e+00> : vector<16x32xf32>
    %27 = tpu.matmul %9, %26, %cst_27 {dimension_numbers = #tpu.dot_dimension_numbers<[1], [0], [0], [1], [0, 0, 1, 1], [], []>} : vector<16x32xf32>, vector<32x32xf32>, vector<16x32xf32> -> vector<16x32xf32>
    %c0_28 = arith.constant 0 : index
    %c0_29 = arith.constant 0 : index
    %c0_30 = arith.constant 0 : index
    %28 = vector.load %arg12[%c0_28, %c0_29, %c0_30] : memref<2x1x32xf32, #tpu.memory_space<vmem>>, vector<1x1x32xf32>
    %29 = vector.shape_cast %28 : vector<1x1x32xf32> to vector<1x32xf32>
    %30 = vector.broadcast %29 : vector<1x32xf32> to vector<16x32xf32>
    %31 = arith.addf %27, %30 : vector<16x32xf32>
    %cst_31 = arith.constant 0.000000e+00 : f32
    %32 = vector.broadcast %cst_31 : f32 to vector<16x32xf32>
    %c0_32 = arith.constant 0 : index
    %c0_33 = arith.constant 0 : index
    %c0_34 = arith.constant 0 : index
    %33 = vector.load %arg4[%c0_32, %c0_33, %c0_34] : memref<4x1x32xf32, #tpu.memory_space<vmem>>, vector<1x1x32xf32>
    %34 = vector.shape_cast %33 : vector<1x1x32xf32> to vector<1x32xf32>
    %35 = vector.broadcast %34 : vector<1x32xf32> to vector<16x32xf32>
    %36 = arith.mulf %17, %35 : vector<16x32xf32>
    %cst_35 = arith.constant dense<0.000000e+00> : vector<16x16xf32>
    %37 = tpu.matmul %36, %24, %cst_35 {dimension_numbers = #tpu.dot_dimension_numbers<[1], [1], [0], [0], [0, 0, 1, 0], [], []>} : vector<16x32xf32>, vector<16x32xf32>, vector<16x16xf32> -> vector<16x16xf32>
    %cst_36 = arith.constant 0.353553385 : f32
    %38 = vector.broadcast %cst_36 : f32 to vector<16x16xf32>
    %39 = arith.mulf %37, %38 : vector<16x16xf32>
    %40 = arith.addf %39, %10 : vector<16x16xf32>
    %cst_37 = arith.constant dense<0xFF800000> : vector<16xf32>
    %41 = vector.multi_reduction <maximumf>, %40, %cst_37 [1] : vector<16x16xf32> to vector<16xf32>
    %42 = vector.shape_cast %41 : vector<16xf32> to vector<16x1xf32>
    %43 = vector.broadcast %42 : vector<16x1xf32> to vector<16x16xf32>
    %44 = arith.subf %40, %43 : vector<16x16xf32>
    %45 = math.exp %44 : vector<16x16xf32>
    %cst_38 = arith.constant dense<0.000000e+00> : vector<16xf32>
    %46 = vector.multi_reduction <add>, %45, %cst_38 [1] : vector<16x16xf32> to vector<16xf32>
    %47 = vector.shape_cast %46 : vector<16xf32> to vector<16x1xf32>
    %48 = tpu.reciprocal %47 : vector<16x1xf32> -> vector<16x1xf32>
    %49 = vector.broadcast %48 : vector<16x1xf32> to vector<16x16xf32>
    %50 = arith.mulf %45, %49 : vector<16x16xf32>
    %51 = vector.broadcast %34 : vector<1x32xf32> to vector<16x32xf32>
    %52 = arith.mulf %31, %51 : vector<16x32xf32>
    %cst_39 = arith.constant dense<0.000000e+00> : vector<16x32xf32>
    %53 = tpu.matmul %50, %52, %cst_39 {dimension_numbers = #tpu.dot_dimension_numbers<[1], [0], [0], [1], [0, 0, 1, 1], [], []>} : vector<16x16xf32>, vector<16x32xf32>, vector<16x32xf32> -> vector<16x32xf32>
    %54 = arith.addf %32, %53 : vector<16x32xf32>
    %c1 = arith.constant 1 : index
    %c0_40 = arith.constant 0 : index
    %c0_41 = arith.constant 0 : index
    %55 = vector.load %arg4[%c1, %c0_40, %c0_41] : memref<4x1x32xf32, #tpu.memory_space<vmem>>, vector<1x1x32xf32>
    %56 = vector.shape_cast %55 : vector<1x1x32xf32> to vector<1x32xf32>
    %57 = vector.broadcast %56 : vector<1x32xf32> to vector<16x32xf32>
    %58 = arith.mulf %17, %57 : vector<16x32xf32>
    %cst_42 = arith.constant dense<0.000000e+00> : vector<16x16xf32>
    %59 = tpu.matmul %58, %24, %cst_42 {dimension_numbers = #tpu.dot_dimension_numbers<[1], [1], [0], [0], [0, 0, 1, 0], [], []>} : vector<16x32xf32>, vector<16x32xf32>, vector<16x16xf32> -> vector<16x16xf32>
    %cst_43 = arith.constant 0.353553385 : f32
    %60 = vector.broadcast %cst_43 : f32 to vector<16x16xf32>
    %61 = arith.mulf %59, %60 : vector<16x16xf32>
    %62 = arith.addf %61, %10 : vector<16x16xf32>
    %cst_44 = arith.constant dense<0xFF800000> : vector<16xf32>
    %63 = vector.multi_reduction <maximumf>, %62, %cst_44 [1] : vector<16x16xf32> to vector<16xf32>
    %64 = vector.shape_cast %63 : vector<16xf32> to vector<16x1xf32>
    %65 = vector.broadcast %64 : vector<16x1xf32> to vector<16x16xf32>
    %66 = arith.subf %62, %65 : vector<16x16xf32>
    %67 = math.exp %66 : vector<16x16xf32>
    %cst_45 = arith.constant dense<0.000000e+00> : vector<16xf32>
    %68 = vector.multi_reduction <add>, %67, %cst_45 [1] : vector<16x16xf32> to vector<16xf32>
    %69 = vector.shape_cast %68 : vector<16xf32> to vector<16x1xf32>
    %70 = tpu.reciprocal %69 : vector<16x1xf32> -> vector<16x1xf32>
    %71 = vector.broadcast %70 : vector<16x1xf32> to vector<16x16xf32>
    %72 = arith.mulf %67, %71 : vector<16x16xf32>
    %73 = vector.broadcast %56 : vector<1x32xf32> to vector<16x32xf32>
    %74 = arith.mulf %31, %73 : vector<16x32xf32>
    %cst_46 = arith.constant dense<0.000000e+00> : vector<16x32xf32>
    %75 = tpu.matmul %72, %74, %cst_46 {dimension_numbers = #tpu.dot_dimension_numbers<[1], [0], [0], [1], [0, 0, 1, 1], [], []>} : vector<16x16xf32>, vector<16x32xf32>, vector<16x32xf32> -> vector<16x32xf32>
    %76 = arith.addf %54, %75 : vector<16x32xf32>
    %c2 = arith.constant 2 : index
    %c0_47 = arith.constant 0 : index
    %c0_48 = arith.constant 0 : index
    %77 = vector.load %arg4[%c2, %c0_47, %c0_48] : memref<4x1x32xf32, #tpu.memory_space<vmem>>, vector<1x1x32xf32>
    %78 = vector.shape_cast %77 : vector<1x1x32xf32> to vector<1x32xf32>
    %79 = vector.broadcast %78 : vector<1x32xf32> to vector<16x32xf32>
    %80 = arith.mulf %17, %79 : vector<16x32xf32>
    %cst_49 = arith.constant dense<0.000000e+00> : vector<16x16xf32>
    %81 = tpu.matmul %80, %24, %cst_49 {dimension_numbers = #tpu.dot_dimension_numbers<[1], [1], [0], [0], [0, 0, 1, 0], [], []>} : vector<16x32xf32>, vector<16x32xf32>, vector<16x16xf32> -> vector<16x16xf32>
    %cst_50 = arith.constant 0.353553385 : f32
    %82 = vector.broadcast %cst_50 : f32 to vector<16x16xf32>
    %83 = arith.mulf %81, %82 : vector<16x16xf32>
    %84 = arith.addf %83, %10 : vector<16x16xf32>
    %cst_51 = arith.constant dense<0xFF800000> : vector<16xf32>
    %85 = vector.multi_reduction <maximumf>, %84, %cst_51 [1] : vector<16x16xf32> to vector<16xf32>
    %86 = vector.shape_cast %85 : vector<16xf32> to vector<16x1xf32>
    %87 = vector.broadcast %86 : vector<16x1xf32> to vector<16x16xf32>
    %88 = arith.subf %84, %87 : vector<16x16xf32>
    %89 = math.exp %88 : vector<16x16xf32>
    %cst_52 = arith.constant dense<0.000000e+00> : vector<16xf32>
    %90 = vector.multi_reduction <add>, %89, %cst_52 [1] : vector<16x16xf32> to vector<16xf32>
    %91 = vector.shape_cast %90 : vector<16xf32> to vector<16x1xf32>
    %92 = tpu.reciprocal %91 : vector<16x1xf32> -> vector<16x1xf32>
    %93 = vector.broadcast %92 : vector<16x1xf32> to vector<16x16xf32>
    %94 = arith.mulf %89, %93 : vector<16x16xf32>
    %95 = vector.broadcast %78 : vector<1x32xf32> to vector<16x32xf32>
    %96 = arith.mulf %31, %95 : vector<16x32xf32>
    %cst_53 = arith.constant dense<0.000000e+00> : vector<16x32xf32>
    %97 = tpu.matmul %94, %96, %cst_53 {dimension_numbers = #tpu.dot_dimension_numbers<[1], [0], [0], [1], [0, 0, 1, 1], [], []>} : vector<16x16xf32>, vector<16x32xf32>, vector<16x32xf32> -> vector<16x32xf32>
    %98 = arith.addf %76, %97 : vector<16x32xf32>
    %c3 = arith.constant 3 : index
    %c0_54 = arith.constant 0 : index
    %c0_55 = arith.constant 0 : index
    %99 = vector.load %arg4[%c3, %c0_54, %c0_55] : memref<4x1x32xf32, #tpu.memory_space<vmem>>, vector<1x1x32xf32>
    %100 = vector.shape_cast %99 : vector<1x1x32xf32> to vector<1x32xf32>
    %101 = vector.broadcast %100 : vector<1x32xf32> to vector<16x32xf32>
    %102 = arith.mulf %17, %101 : vector<16x32xf32>
    %cst_56 = arith.constant dense<0.000000e+00> : vector<16x16xf32>
    %103 = tpu.matmul %102, %24, %cst_56 {dimension_numbers = #tpu.dot_dimension_numbers<[1], [1], [0], [0], [0, 0, 1, 0], [], []>} : vector<16x32xf32>, vector<16x32xf32>, vector<16x16xf32> -> vector<16x16xf32>
    %cst_57 = arith.constant 0.353553385 : f32
    %104 = vector.broadcast %cst_57 : f32 to vector<16x16xf32>
    %105 = arith.mulf %103, %104 : vector<16x16xf32>
    %106 = arith.addf %105, %10 : vector<16x16xf32>
    %cst_58 = arith.constant dense<0xFF800000> : vector<16xf32>
    %107 = vector.multi_reduction <maximumf>, %106, %cst_58 [1] : vector<16x16xf32> to vector<16xf32>
    %108 = vector.shape_cast %107 : vector<16xf32> to vector<16x1xf32>
    %109 = vector.broadcast %108 : vector<16x1xf32> to vector<16x16xf32>
    %110 = arith.subf %106, %109 : vector<16x16xf32>
    %111 = math.exp %110 : vector<16x16xf32>
    %cst_59 = arith.constant dense<0.000000e+00> : vector<16xf32>
    %112 = vector.multi_reduction <add>, %111, %cst_59 [1] : vector<16x16xf32> to vector<16xf32>
    %113 = vector.shape_cast %112 : vector<16xf32> to vector<16x1xf32>
    %114 = tpu.reciprocal %113 : vector<16x1xf32> -> vector<16x1xf32>
    %115 = vector.broadcast %114 : vector<16x1xf32> to vector<16x16xf32>
    %116 = arith.mulf %111, %115 : vector<16x16xf32>
    %117 = vector.broadcast %100 : vector<1x32xf32> to vector<16x32xf32>
    %118 = arith.mulf %31, %117 : vector<16x32xf32>
    %cst_60 = arith.constant dense<0.000000e+00> : vector<16x32xf32>
    %119 = tpu.matmul %116, %118, %cst_60 {dimension_numbers = #tpu.dot_dimension_numbers<[1], [0], [0], [1], [0, 0, 1, 1], [], []>} : vector<16x16xf32>, vector<16x32xf32>, vector<16x32xf32> -> vector<16x32xf32>
    %120 = arith.addf %98, %119 : vector<16x32xf32>
    %c0_61 = arith.constant 0 : index
    %c0_62 = arith.constant 0 : index
    %c0_63 = arith.constant 0 : index
    %121 = vector.load %arg13[%c0_61, %c0_62, %c0_63] : memref<2x32x32xf32, #tpu.memory_space<vmem>>, vector<1x32x32xf32>
    %122 = vector.shape_cast %121 : vector<1x32x32xf32> to vector<32x32xf32>
    %cst_64 = arith.constant dense<0.000000e+00> : vector<16x32xf32>
    %123 = tpu.matmul %120, %122, %cst_64 {dimension_numbers = #tpu.dot_dimension_numbers<[1], [0], [0], [1], [0, 0, 1, 1], [], []>} : vector<16x32xf32>, vector<32x32xf32>, vector<16x32xf32> -> vector<16x32xf32>
    %c0_65 = arith.constant 0 : index
    %c0_66 = arith.constant 0 : index
    %c0_67 = arith.constant 0 : index
    %124 = vector.load %arg14[%c0_65, %c0_66, %c0_67] : memref<2x1x32xf32, #tpu.memory_space<vmem>>, vector<1x1x32xf32>
    %125 = vector.shape_cast %124 : vector<1x1x32xf32> to vector<1x32xf32>
    %126 = vector.broadcast %125 : vector<1x32xf32> to vector<16x32xf32>
    %127 = arith.addf %123, %126 : vector<16x32xf32>
    %128 = arith.addf %9, %127 : vector<16x32xf32>
    %c0_68 = arith.constant 0 : index
    %c0_69 = arith.constant 0 : index
    %c0_70 = arith.constant 0 : index
    %129 = vector.load %arg15[%c0_68, %c0_69, %c0_70] : memref<2x1x32xf32, #tpu.memory_space<vmem>>, vector<1x1x32xf32>
    %130 = vector.shape_cast %129 : vector<1x1x32xf32> to vector<1x32xf32>
    %c0_71 = arith.constant 0 : index
    %c0_72 = arith.constant 0 : index
    %c0_73 = arith.constant 0 : index
    %131 = vector.load %arg16[%c0_71, %c0_72, %c0_73] : memref<2x1x32xf32, #tpu.memory_space<vmem>>, vector<1x1x32xf32>
    %132 = vector.shape_cast %131 : vector<1x1x32xf32> to vector<1x32xf32>
    %cst_74 = arith.constant dense<0.000000e+00> : vector<16xf32>
    %133 = vector.multi_reduction <add>, %128, %cst_74 [1] : vector<16x32xf32> to vector<16xf32>
    %134 = vector.shape_cast %133 : vector<16xf32> to vector<16x1xf32>
    %cst_75 = arith.constant 3.200000e+01 : f32
    %135 = vector.broadcast %cst_75 : f32 to vector<16x1xf32>
    %136 = arith.divf %134, %135 : vector<16x1xf32>
    %137 = vector.broadcast %136 : vector<16x1xf32> to vector<16x32xf32>
    %138 = arith.subf %128, %137 : vector<16x32xf32>
    %139 = arith.mulf %138, %138 : vector<16x32xf32>
    %cst_76 = arith.constant dense<0.000000e+00> : vector<16xf32>
    %140 = vector.multi_reduction <add>, %139, %cst_76 [1] : vector<16x32xf32> to vector<16xf32>
    %141 = vector.shape_cast %140 : vector<16xf32> to vector<16x1xf32>
    %cst_77 = arith.constant 3.200000e+01 : f32
    %142 = vector.broadcast %cst_77 : f32 to vector<16x1xf32>
    %143 = arith.divf %141, %142 : vector<16x1xf32>
    %144 = vector.broadcast %136 : vector<16x1xf32> to vector<16x32xf32>
    %145 = arith.subf %128, %144 : vector<16x32xf32>
    %cst_78 = arith.constant 9.99999974E-6 : f32
    %146 = vector.broadcast %cst_78 : f32 to vector<16x1xf32>
    %147 = arith.addf %143, %146 : vector<16x1xf32>
    %148 = math.rsqrt %147 : vector<16x1xf32>
    %149 = vector.broadcast %148 : vector<16x1xf32> to vector<16x32xf32>
    %150 = arith.mulf %145, %149 : vector<16x32xf32>
    %151 = vector.broadcast %130 : vector<1x32xf32> to vector<16x32xf32>
    %152 = arith.mulf %150, %151 : vector<16x32xf32>
    %153 = vector.broadcast %132 : vector<1x32xf32> to vector<16x32xf32>
    %154 = arith.addf %152, %153 : vector<16x32xf32>
    %c0_79 = arith.constant 0 : index
    %c0_80 = arith.constant 0 : index
    %c0_81 = arith.constant 0 : index
    %155 = vector.load %arg17[%c0_79, %c0_80, %c0_81] : memref<2x32x32xf32, #tpu.memory_space<vmem>>, vector<1x32x32xf32>
    %156 = vector.shape_cast %155 : vector<1x32x32xf32> to vector<32x32xf32>
    %cst_82 = arith.constant dense<0.000000e+00> : vector<16x32xf32>
    %157 = tpu.matmul %154, %156, %cst_82 {dimension_numbers = #tpu.dot_dimension_numbers<[1], [0], [0], [1], [0, 0, 1, 1], [], []>} : vector<16x32xf32>, vector<32x32xf32>, vector<16x32xf32> -> vector<16x32xf32>
    %c0_83 = arith.constant 0 : index
    %c0_84 = arith.constant 0 : index
    %c0_85 = arith.constant 0 : index
    %158 = vector.load %arg18[%c0_83, %c0_84, %c0_85] : memref<2x1x32xf32, #tpu.memory_space<vmem>>, vector<1x1x32xf32>
    %159 = vector.shape_cast %158 : vector<1x1x32xf32> to vector<1x32xf32>
    %160 = vector.broadcast %159 : vector<1x32xf32> to vector<16x32xf32>
    %161 = arith.addf %157, %160 : vector<16x32xf32>
    %cst_86 = arith.constant 0.000000e+00 : f32
    %162 = vector.broadcast %cst_86 : f32 to vector<16x32xf32>
    %163 = arith.maximumf %161, %162 : vector<16x32xf32>
    %c0_87 = arith.constant 0 : index
    %c0_88 = arith.constant 0 : index
    %c0_89 = arith.constant 0 : index
    %164 = vector.load %arg19[%c0_87, %c0_88, %c0_89] : memref<2x32x32xf32, #tpu.memory_space<vmem>>, vector<1x32x32xf32>
    %165 = vector.shape_cast %164 : vector<1x32x32xf32> to vector<32x32xf32>
    %cst_90 = arith.constant dense<0.000000e+00> : vector<16x32xf32>
    %166 = tpu.matmul %163, %165, %cst_90 {dimension_numbers = #tpu.dot_dimension_numbers<[1], [0], [0], [1], [0, 0, 1, 1], [], []>} : vector<16x32xf32>, vector<32x32xf32>, vector<16x32xf32> -> vector<16x32xf32>
    %c0_91 = arith.constant 0 : index
    %c0_92 = arith.constant 0 : index
    %c0_93 = arith.constant 0 : index
    %167 = vector.load %arg20[%c0_91, %c0_92, %c0_93] : memref<2x1x32xf32, #tpu.memory_space<vmem>>, vector<1x1x32xf32>
    %168 = vector.shape_cast %167 : vector<1x1x32xf32> to vector<1x32xf32>
    %169 = vector.broadcast %168 : vector<1x32xf32> to vector<16x32xf32>
    %170 = arith.addf %166, %169 : vector<16x32xf32>
    %171 = arith.addf %154, %170 : vector<16x32xf32>
    %c0_94 = arith.constant 0 : index
    %c0_95 = arith.constant 0 : index
    %c0_96 = arith.constant 0 : index
    %172 = vector.load %arg21[%c0_94, %c0_95, %c0_96] : memref<2x1x32xf32, #tpu.memory_space<vmem>>, vector<1x1x32xf32>
    %173 = vector.shape_cast %172 : vector<1x1x32xf32> to vector<1x32xf32>
    %c0_97 = arith.constant 0 : index
    %c0_98 = arith.constant 0 : index
    %c0_99 = arith.constant 0 : index
    %174 = vector.load %arg22[%c0_97, %c0_98, %c0_99] : memref<2x1x32xf32, #tpu.memory_space<vmem>>, vector<1x1x32xf32>
    %175 = vector.shape_cast %174 : vector<1x1x32xf32> to vector<1x32xf32>
    %cst_100 = arith.constant dense<0.000000e+00> : vector<16xf32>
    %176 = vector.multi_reduction <add>, %171, %cst_100 [1] : vector<16x32xf32> to vector<16xf32>
    %177 = vector.shape_cast %176 : vector<16xf32> to vector<16x1xf32>
    %cst_101 = arith.constant 3.200000e+01 : f32
    %178 = vector.broadcast %cst_101 : f32 to vector<16x1xf32>
    %179 = arith.divf %177, %178 : vector<16x1xf32>
    %180 = vector.broadcast %179 : vector<16x1xf32> to vector<16x32xf32>
    %181 = arith.subf %171, %180 : vector<16x32xf32>
    %182 = arith.mulf %181, %181 : vector<16x32xf32>
    %cst_102 = arith.constant dense<0.000000e+00> : vector<16xf32>
    %183 = vector.multi_reduction <add>, %182, %cst_102 [1] : vector<16x32xf32> to vector<16xf32>
    %184 = vector.shape_cast %183 : vector<16xf32> to vector<16x1xf32>
    %cst_103 = arith.constant 3.200000e+01 : f32
    %185 = vector.broadcast %cst_103 : f32 to vector<16x1xf32>
    %186 = arith.divf %184, %185 : vector<16x1xf32>
    %187 = vector.broadcast %179 : vector<16x1xf32> to vector<16x32xf32>
    %188 = arith.subf %171, %187 : vector<16x32xf32>
    %cst_104 = arith.constant 9.99999974E-6 : f32
    %189 = vector.broadcast %cst_104 : f32 to vector<16x1xf32>
    %190 = arith.addf %186, %189 : vector<16x1xf32>
    %191 = math.rsqrt %190 : vector<16x1xf32>
    %192 = vector.broadcast %191 : vector<16x1xf32> to vector<16x32xf32>
    %193 = arith.mulf %188, %192 : vector<16x32xf32>
    %194 = vector.broadcast %173 : vector<1x32xf32> to vector<16x32xf32>
    %195 = arith.mulf %193, %194 : vector<16x32xf32>
    %196 = vector.broadcast %175 : vector<1x32xf32> to vector<16x32xf32>
    %197 = arith.addf %195, %196 : vector<16x32xf32>
    %c1_105 = arith.constant 1 : index
    %c0_106 = arith.constant 0 : index
    %c0_107 = arith.constant 0 : index
    %198 = vector.load %arg7[%c1_105, %c0_106, %c0_107] : memref<2x32x32xf32, #tpu.memory_space<vmem>>, vector<1x32x32xf32>
    %199 = vector.shape_cast %198 : vector<1x32x32xf32> to vector<32x32xf32>
    %cst_108 = arith.constant dense<0.000000e+00> : vector<16x32xf32>
    %200 = tpu.matmul %197, %199, %cst_108 {dimension_numbers = #tpu.dot_dimension_numbers<[1], [0], [0], [1], [0, 0, 1, 1], [], []>} : vector<16x32xf32>, vector<32x32xf32>, vector<16x32xf32> -> vector<16x32xf32>
    %c1_109 = arith.constant 1 : index
    %c0_110 = arith.constant 0 : index
    %c0_111 = arith.constant 0 : index
    %201 = vector.load %arg8[%c1_109, %c0_110, %c0_111] : memref<2x1x32xf32, #tpu.memory_space<vmem>>, vector<1x1x32xf32>
    %202 = vector.shape_cast %201 : vector<1x1x32xf32> to vector<1x32xf32>
    %203 = vector.broadcast %202 : vector<1x32xf32> to vector<16x32xf32>
    %204 = arith.addf %200, %203 : vector<16x32xf32>
    %c1_112 = arith.constant 1 : index
    %c0_113 = arith.constant 0 : index
    %c0_114 = arith.constant 0 : index
    %205 = vector.load %arg9[%c1_112, %c0_113, %c0_114] : memref<2x32x32xf32, #tpu.memory_space<vmem>>, vector<1x32x32xf32>
    %206 = vector.shape_cast %205 : vector<1x32x32xf32> to vector<32x32xf32>
    %cst_115 = arith.constant dense<0.000000e+00> : vector<16x32xf32>
    %207 = tpu.matmul %197, %206, %cst_115 {dimension_numbers = #tpu.dot_dimension_numbers<[1], [0], [0], [1], [0, 0, 1, 1], [], []>} : vector<16x32xf32>, vector<32x32xf32>, vector<16x32xf32> -> vector<16x32xf32>
    %c1_116 = arith.constant 1 : index
    %c0_117 = arith.constant 0 : index
    %c0_118 = arith.constant 0 : index
    %208 = vector.load %arg10[%c1_116, %c0_117, %c0_118] : memref<2x1x32xf32, #tpu.memory_space<vmem>>, vector<1x1x32xf32>
    %209 = vector.shape_cast %208 : vector<1x1x32xf32> to vector<1x32xf32>
    %210 = vector.broadcast %209 : vector<1x32xf32> to vector<16x32xf32>
    %211 = arith.addf %207, %210 : vector<16x32xf32>
    %c1_119 = arith.constant 1 : index
    %c0_120 = arith.constant 0 : index
    %c0_121 = arith.constant 0 : index
    %212 = vector.load %arg11[%c1_119, %c0_120, %c0_121] : memref<2x32x32xf32, #tpu.memory_space<vmem>>, vector<1x32x32xf32>
    %213 = vector.shape_cast %212 : vector<1x32x32xf32> to vector<32x32xf32>
    %cst_122 = arith.constant dense<0.000000e+00> : vector<16x32xf32>
    %214 = tpu.matmul %197, %213, %cst_122 {dimension_numbers = #tpu.dot_dimension_numbers<[1], [0], [0], [1], [0, 0, 1, 1], [], []>} : vector<16x32xf32>, vector<32x32xf32>, vector<16x32xf32> -> vector<16x32xf32>
    %c1_123 = arith.constant 1 : index
    %c0_124 = arith.constant 0 : index
    %c0_125 = arith.constant 0 : index
    %215 = vector.load %arg12[%c1_123, %c0_124, %c0_125] : memref<2x1x32xf32, #tpu.memory_space<vmem>>, vector<1x1x32xf32>
    %216 = vector.shape_cast %215 : vector<1x1x32xf32> to vector<1x32xf32>
    %217 = vector.broadcast %216 : vector<1x32xf32> to vector<16x32xf32>
    %218 = arith.addf %214, %217 : vector<16x32xf32>
    %cst_126 = arith.constant 0.000000e+00 : f32
    %219 = vector.broadcast %cst_126 : f32 to vector<16x32xf32>
    %c0_127 = arith.constant 0 : index
    %c0_128 = arith.constant 0 : index
    %c0_129 = arith.constant 0 : index
    %220 = vector.load %arg4[%c0_127, %c0_128, %c0_129] : memref<4x1x32xf32, #tpu.memory_space<vmem>>, vector<1x1x32xf32>
    %221 = vector.shape_cast %220 : vector<1x1x32xf32> to vector<1x32xf32>
    %222 = vector.broadcast %221 : vector<1x32xf32> to vector<16x32xf32>
    %223 = arith.mulf %204, %222 : vector<16x32xf32>
    %cst_130 = arith.constant dense<0.000000e+00> : vector<16x16xf32>
    %224 = tpu.matmul %223, %211, %cst_130 {dimension_numbers = #tpu.dot_dimension_numbers<[1], [1], [0], [0], [0, 0, 1, 0], [], []>} : vector<16x32xf32>, vector<16x32xf32>, vector<16x16xf32> -> vector<16x16xf32>
    %cst_131 = arith.constant 0.353553385 : f32
    %225 = vector.broadcast %cst_131 : f32 to vector<16x16xf32>
    %226 = arith.mulf %224, %225 : vector<16x16xf32>
    %227 = arith.addf %226, %10 : vector<16x16xf32>
    %cst_132 = arith.constant dense<0xFF800000> : vector<16xf32>
    %228 = vector.multi_reduction <maximumf>, %227, %cst_132 [1] : vector<16x16xf32> to vector<16xf32>
    %229 = vector.shape_cast %228 : vector<16xf32> to vector<16x1xf32>
    %230 = vector.broadcast %229 : vector<16x1xf32> to vector<16x16xf32>
    %231 = arith.subf %227, %230 : vector<16x16xf32>
    %232 = math.exp %231 : vector<16x16xf32>
    %cst_133 = arith.constant dense<0.000000e+00> : vector<16xf32>
    %233 = vector.multi_reduction <add>, %232, %cst_133 [1] : vector<16x16xf32> to vector<16xf32>
    %234 = vector.shape_cast %233 : vector<16xf32> to vector<16x1xf32>
    %235 = tpu.reciprocal %234 : vector<16x1xf32> -> vector<16x1xf32>
    %236 = vector.broadcast %235 : vector<16x1xf32> to vector<16x16xf32>
    %237 = arith.mulf %232, %236 : vector<16x16xf32>
    %238 = vector.broadcast %221 : vector<1x32xf32> to vector<16x32xf32>
    %239 = arith.mulf %218, %238 : vector<16x32xf32>
    %cst_134 = arith.constant dense<0.000000e+00> : vector<16x32xf32>
    %240 = tpu.matmul %237, %239, %cst_134 {dimension_numbers = #tpu.dot_dimension_numbers<[1], [0], [0], [1], [0, 0, 1, 1], [], []>} : vector<16x16xf32>, vector<16x32xf32>, vector<16x32xf32> -> vector<16x32xf32>
    %241 = arith.addf %219, %240 : vector<16x32xf32>
    %c1_135 = arith.constant 1 : index
    %c0_136 = arith.constant 0 : index
    %c0_137 = arith.constant 0 : index
    %242 = vector.load %arg4[%c1_135, %c0_136, %c0_137] : memref<4x1x32xf32, #tpu.memory_space<vmem>>, vector<1x1x32xf32>
    %243 = vector.shape_cast %242 : vector<1x1x32xf32> to vector<1x32xf32>
    %244 = vector.broadcast %243 : vector<1x32xf32> to vector<16x32xf32>
    %245 = arith.mulf %204, %244 : vector<16x32xf32>
    %cst_138 = arith.constant dense<0.000000e+00> : vector<16x16xf32>
    %246 = tpu.matmul %245, %211, %cst_138 {dimension_numbers = #tpu.dot_dimension_numbers<[1], [1], [0], [0], [0, 0, 1, 0], [], []>} : vector<16x32xf32>, vector<16x32xf32>, vector<16x16xf32> -> vector<16x16xf32>
    %cst_139 = arith.constant 0.353553385 : f32
    %247 = vector.broadcast %cst_139 : f32 to vector<16x16xf32>
    %248 = arith.mulf %246, %247 : vector<16x16xf32>
    %249 = arith.addf %248, %10 : vector<16x16xf32>
    %cst_140 = arith.constant dense<0xFF800000> : vector<16xf32>
    %250 = vector.multi_reduction <maximumf>, %249, %cst_140 [1] : vector<16x16xf32> to vector<16xf32>
    %251 = vector.shape_cast %250 : vector<16xf32> to vector<16x1xf32>
    %252 = vector.broadcast %251 : vector<16x1xf32> to vector<16x16xf32>
    %253 = arith.subf %249, %252 : vector<16x16xf32>
    %254 = math.exp %253 : vector<16x16xf32>
    %cst_141 = arith.constant dense<0.000000e+00> : vector<16xf32>
    %255 = vector.multi_reduction <add>, %254, %cst_141 [1] : vector<16x16xf32> to vector<16xf32>
    %256 = vector.shape_cast %255 : vector<16xf32> to vector<16x1xf32>
    %257 = tpu.reciprocal %256 : vector<16x1xf32> -> vector<16x1xf32>
    %258 = vector.broadcast %257 : vector<16x1xf32> to vector<16x16xf32>
    %259 = arith.mulf %254, %258 : vector<16x16xf32>
    %260 = vector.broadcast %243 : vector<1x32xf32> to vector<16x32xf32>
    %261 = arith.mulf %218, %260 : vector<16x32xf32>
    %cst_142 = arith.constant dense<0.000000e+00> : vector<16x32xf32>
    %262 = tpu.matmul %259, %261, %cst_142 {dimension_numbers = #tpu.dot_dimension_numbers<[1], [0], [0], [1], [0, 0, 1, 1], [], []>} : vector<16x16xf32>, vector<16x32xf32>, vector<16x32xf32> -> vector<16x32xf32>
    %263 = arith.addf %241, %262 : vector<16x32xf32>
    %c2_143 = arith.constant 2 : index
    %c0_144 = arith.constant 0 : index
    %c0_145 = arith.constant 0 : index
    %264 = vector.load %arg4[%c2_143, %c0_144, %c0_145] : memref<4x1x32xf32, #tpu.memory_space<vmem>>, vector<1x1x32xf32>
    %265 = vector.shape_cast %264 : vector<1x1x32xf32> to vector<1x32xf32>
    %266 = vector.broadcast %265 : vector<1x32xf32> to vector<16x32xf32>
    %267 = arith.mulf %204, %266 : vector<16x32xf32>
    %cst_146 = arith.constant dense<0.000000e+00> : vector<16x16xf32>
    %268 = tpu.matmul %267, %211, %cst_146 {dimension_numbers = #tpu.dot_dimension_numbers<[1], [1], [0], [0], [0, 0, 1, 0], [], []>} : vector<16x32xf32>, vector<16x32xf32>, vector<16x16xf32> -> vector<16x16xf32>
    %cst_147 = arith.constant 0.353553385 : f32
    %269 = vector.broadcast %cst_147 : f32 to vector<16x16xf32>
    %270 = arith.mulf %268, %269 : vector<16x16xf32>
    %271 = arith.addf %270, %10 : vector<16x16xf32>
    %cst_148 = arith.constant dense<0xFF800000> : vector<16xf32>
    %272 = vector.multi_reduction <maximumf>, %271, %cst_148 [1] : vector<16x16xf32> to vector<16xf32>
    %273 = vector.shape_cast %272 : vector<16xf32> to vector<16x1xf32>
    %274 = vector.broadcast %273 : vector<16x1xf32> to vector<16x16xf32>
    %275 = arith.subf %271, %274 : vector<16x16xf32>
    %276 = math.exp %275 : vector<16x16xf32>
    %cst_149 = arith.constant dense<0.000000e+00> : vector<16xf32>
    %277 = vector.multi_reduction <add>, %276, %cst_149 [1] : vector<16x16xf32> to vector<16xf32>
    %278 = vector.shape_cast %277 : vector<16xf32> to vector<16x1xf32>
    %279 = tpu.reciprocal %278 : vector<16x1xf32> -> vector<16x1xf32>
    %280 = vector.broadcast %279 : vector<16x1xf32> to vector<16x16xf32>
    %281 = arith.mulf %276, %280 : vector<16x16xf32>
    %282 = vector.broadcast %265 : vector<1x32xf32> to vector<16x32xf32>
    %283 = arith.mulf %218, %282 : vector<16x32xf32>
    %cst_150 = arith.constant dense<0.000000e+00> : vector<16x32xf32>
    %284 = tpu.matmul %281, %283, %cst_150 {dimension_numbers = #tpu.dot_dimension_numbers<[1], [0], [0], [1], [0, 0, 1, 1], [], []>} : vector<16x16xf32>, vector<16x32xf32>, vector<16x32xf32> -> vector<16x32xf32>
    %285 = arith.addf %263, %284 : vector<16x32xf32>
    %c3_151 = arith.constant 3 : index
    %c0_152 = arith.constant 0 : index
    %c0_153 = arith.constant 0 : index
    %286 = vector.load %arg4[%c3_151, %c0_152, %c0_153] : memref<4x1x32xf32, #tpu.memory_space<vmem>>, vector<1x1x32xf32>
    %287 = vector.shape_cast %286 : vector<1x1x32xf32> to vector<1x32xf32>
    %288 = vector.broadcast %287 : vector<1x32xf32> to vector<16x32xf32>
    %289 = arith.mulf %204, %288 : vector<16x32xf32>
    %cst_154 = arith.constant dense<0.000000e+00> : vector<16x16xf32>
    %290 = tpu.matmul %289, %211, %cst_154 {dimension_numbers = #tpu.dot_dimension_numbers<[1], [1], [0], [0], [0, 0, 1, 0], [], []>} : vector<16x32xf32>, vector<16x32xf32>, vector<16x16xf32> -> vector<16x16xf32>
    %cst_155 = arith.constant 0.353553385 : f32
    %291 = vector.broadcast %cst_155 : f32 to vector<16x16xf32>
    %292 = arith.mulf %290, %291 : vector<16x16xf32>
    %293 = arith.addf %292, %10 : vector<16x16xf32>
    %cst_156 = arith.constant dense<0xFF800000> : vector<16xf32>
    %294 = vector.multi_reduction <maximumf>, %293, %cst_156 [1] : vector<16x16xf32> to vector<16xf32>
    %295 = vector.shape_cast %294 : vector<16xf32> to vector<16x1xf32>
    %296 = vector.broadcast %295 : vector<16x1xf32> to vector<16x16xf32>
    %297 = arith.subf %293, %296 : vector<16x16xf32>
    %298 = math.exp %297 : vector<16x16xf32>
    %cst_157 = arith.constant dense<0.000000e+00> : vector<16xf32>
    %299 = vector.multi_reduction <add>, %298, %cst_157 [1] : vector<16x16xf32> to vector<16xf32>
    %300 = vector.shape_cast %299 : vector<16xf32> to vector<16x1xf32>
    %301 = tpu.reciprocal %300 : vector<16x1xf32> -> vector<16x1xf32>
    %302 = vector.broadcast %301 : vector<16x1xf32> to vector<16x16xf32>
    %303 = arith.mulf %298, %302 : vector<16x16xf32>
    %304 = vector.broadcast %287 : vector<1x32xf32> to vector<16x32xf32>
    %305 = arith.mulf %218, %304 : vector<16x32xf32>
    %cst_158 = arith.constant dense<0.000000e+00> : vector<16x32xf32>
    %306 = tpu.matmul %303, %305, %cst_158 {dimension_numbers = #tpu.dot_dimension_numbers<[1], [0], [0], [1], [0, 0, 1, 1], [], []>} : vector<16x16xf32>, vector<16x32xf32>, vector<16x32xf32> -> vector<16x32xf32>
    %307 = arith.addf %285, %306 : vector<16x32xf32>
    %c1_159 = arith.constant 1 : index
    %c0_160 = arith.constant 0 : index
    %c0_161 = arith.constant 0 : index
    %308 = vector.load %arg13[%c1_159, %c0_160, %c0_161] : memref<2x32x32xf32, #tpu.memory_space<vmem>>, vector<1x32x32xf32>
    %309 = vector.shape_cast %308 : vector<1x32x32xf32> to vector<32x32xf32>
    %cst_162 = arith.constant dense<0.000000e+00> : vector<16x32xf32>
    %310 = tpu.matmul %307, %309, %cst_162 {dimension_numbers = #tpu.dot_dimension_numbers<[1], [0], [0], [1], [0, 0, 1, 1], [], []>} : vector<16x32xf32>, vector<32x32xf32>, vector<16x32xf32> -> vector<16x32xf32>
    %c1_163 = arith.constant 1 : index
    %c0_164 = arith.constant 0 : index
    %c0_165 = arith.constant 0 : index
    %311 = vector.load %arg14[%c1_163, %c0_164, %c0_165] : memref<2x1x32xf32, #tpu.memory_space<vmem>>, vector<1x1x32xf32>
    %312 = vector.shape_cast %311 : vector<1x1x32xf32> to vector<1x32xf32>
    %313 = vector.broadcast %312 : vector<1x32xf32> to vector<16x32xf32>
    %314 = arith.addf %310, %313 : vector<16x32xf32>
    %315 = arith.addf %197, %314 : vector<16x32xf32>
    %c1_166 = arith.constant 1 : index
    %c0_167 = arith.constant 0 : index
    %c0_168 = arith.constant 0 : index
    %316 = vector.load %arg15[%c1_166, %c0_167, %c0_168] : memref<2x1x32xf32, #tpu.memory_space<vmem>>, vector<1x1x32xf32>
    %317 = vector.shape_cast %316 : vector<1x1x32xf32> to vector<1x32xf32>
    %c1_169 = arith.constant 1 : index
    %c0_170 = arith.constant 0 : index
    %c0_171 = arith.constant 0 : index
    %318 = vector.load %arg16[%c1_169, %c0_170, %c0_171] : memref<2x1x32xf32, #tpu.memory_space<vmem>>, vector<1x1x32xf32>
    %319 = vector.shape_cast %318 : vector<1x1x32xf32> to vector<1x32xf32>
    %cst_172 = arith.constant dense<0.000000e+00> : vector<16xf32>
    %320 = vector.multi_reduction <add>, %315, %cst_172 [1] : vector<16x32xf32> to vector<16xf32>
    %321 = vector.shape_cast %320 : vector<16xf32> to vector<16x1xf32>
    %cst_173 = arith.constant 3.200000e+01 : f32
    %322 = vector.broadcast %cst_173 : f32 to vector<16x1xf32>
    %323 = arith.divf %321, %322 : vector<16x1xf32>
    %324 = vector.broadcast %323 : vector<16x1xf32> to vector<16x32xf32>
    %325 = arith.subf %315, %324 : vector<16x32xf32>
    %326 = arith.mulf %325, %325 : vector<16x32xf32>
    %cst_174 = arith.constant dense<0.000000e+00> : vector<16xf32>
    %327 = vector.multi_reduction <add>, %326, %cst_174 [1] : vector<16x32xf32> to vector<16xf32>
    %328 = vector.shape_cast %327 : vector<16xf32> to vector<16x1xf32>
    %cst_175 = arith.constant 3.200000e+01 : f32
    %329 = vector.broadcast %cst_175 : f32 to vector<16x1xf32>
    %330 = arith.divf %328, %329 : vector<16x1xf32>
    %331 = vector.broadcast %323 : vector<16x1xf32> to vector<16x32xf32>
    %332 = arith.subf %315, %331 : vector<16x32xf32>
    %cst_176 = arith.constant 9.99999974E-6 : f32
    %333 = vector.broadcast %cst_176 : f32 to vector<16x1xf32>
    %334 = arith.addf %330, %333 : vector<16x1xf32>
    %335 = math.rsqrt %334 : vector<16x1xf32>
    %336 = vector.broadcast %335 : vector<16x1xf32> to vector<16x32xf32>
    %337 = arith.mulf %332, %336 : vector<16x32xf32>
    %338 = vector.broadcast %317 : vector<1x32xf32> to vector<16x32xf32>
    %339 = arith.mulf %337, %338 : vector<16x32xf32>
    %340 = vector.broadcast %319 : vector<1x32xf32> to vector<16x32xf32>
    %341 = arith.addf %339, %340 : vector<16x32xf32>
    %c1_177 = arith.constant 1 : index
    %c0_178 = arith.constant 0 : index
    %c0_179 = arith.constant 0 : index
    %342 = vector.load %arg17[%c1_177, %c0_178, %c0_179] : memref<2x32x32xf32, #tpu.memory_space<vmem>>, vector<1x32x32xf32>
    %343 = vector.shape_cast %342 : vector<1x32x32xf32> to vector<32x32xf32>
    %cst_180 = arith.constant dense<0.000000e+00> : vector<16x32xf32>
    %344 = tpu.matmul %341, %343, %cst_180 {dimension_numbers = #tpu.dot_dimension_numbers<[1], [0], [0], [1], [0, 0, 1, 1], [], []>} : vector<16x32xf32>, vector<32x32xf32>, vector<16x32xf32> -> vector<16x32xf32>
    %c1_181 = arith.constant 1 : index
    %c0_182 = arith.constant 0 : index
    %c0_183 = arith.constant 0 : index
    %345 = vector.load %arg18[%c1_181, %c0_182, %c0_183] : memref<2x1x32xf32, #tpu.memory_space<vmem>>, vector<1x1x32xf32>
    %346 = vector.shape_cast %345 : vector<1x1x32xf32> to vector<1x32xf32>
    %347 = vector.broadcast %346 : vector<1x32xf32> to vector<16x32xf32>
    %348 = arith.addf %344, %347 : vector<16x32xf32>
    %cst_184 = arith.constant 0.000000e+00 : f32
    %349 = vector.broadcast %cst_184 : f32 to vector<16x32xf32>
    %350 = arith.maximumf %348, %349 : vector<16x32xf32>
    %c1_185 = arith.constant 1 : index
    %c0_186 = arith.constant 0 : index
    %c0_187 = arith.constant 0 : index
    %351 = vector.load %arg19[%c1_185, %c0_186, %c0_187] : memref<2x32x32xf32, #tpu.memory_space<vmem>>, vector<1x32x32xf32>
    %352 = vector.shape_cast %351 : vector<1x32x32xf32> to vector<32x32xf32>
    %cst_188 = arith.constant dense<0.000000e+00> : vector<16x32xf32>
    %353 = tpu.matmul %350, %352, %cst_188 {dimension_numbers = #tpu.dot_dimension_numbers<[1], [0], [0], [1], [0, 0, 1, 1], [], []>} : vector<16x32xf32>, vector<32x32xf32>, vector<16x32xf32> -> vector<16x32xf32>
    %c1_189 = arith.constant 1 : index
    %c0_190 = arith.constant 0 : index
    %c0_191 = arith.constant 0 : index
    %354 = vector.load %arg20[%c1_189, %c0_190, %c0_191] : memref<2x1x32xf32, #tpu.memory_space<vmem>>, vector<1x1x32xf32>
    %355 = vector.shape_cast %354 : vector<1x1x32xf32> to vector<1x32xf32>
    %356 = vector.broadcast %355 : vector<1x32xf32> to vector<16x32xf32>
    %357 = arith.addf %353, %356 : vector<16x32xf32>
    %358 = arith.addf %341, %357 : vector<16x32xf32>
    %c1_192 = arith.constant 1 : index
    %c0_193 = arith.constant 0 : index
    %c0_194 = arith.constant 0 : index
    %359 = vector.load %arg21[%c1_192, %c0_193, %c0_194] : memref<2x1x32xf32, #tpu.memory_space<vmem>>, vector<1x1x32xf32>
    %360 = vector.shape_cast %359 : vector<1x1x32xf32> to vector<1x32xf32>
    %c1_195 = arith.constant 1 : index
    %c0_196 = arith.constant 0 : index
    %c0_197 = arith.constant 0 : index
    %361 = vector.load %arg22[%c1_195, %c0_196, %c0_197] : memref<2x1x32xf32, #tpu.memory_space<vmem>>, vector<1x1x32xf32>
    %362 = vector.shape_cast %361 : vector<1x1x32xf32> to vector<1x32xf32>
    %cst_198 = arith.constant dense<0.000000e+00> : vector<16xf32>
    %363 = vector.multi_reduction <add>, %358, %cst_198 [1] : vector<16x32xf32> to vector<16xf32>
    %364 = vector.shape_cast %363 : vector<16xf32> to vector<16x1xf32>
    %cst_199 = arith.constant 3.200000e+01 : f32
    %365 = vector.broadcast %cst_199 : f32 to vector<16x1xf32>
    %366 = arith.divf %364, %365 : vector<16x1xf32>
    %367 = vector.broadcast %366 : vector<16x1xf32> to vector<16x32xf32>
    %368 = arith.subf %358, %367 : vector<16x32xf32>
    %369 = arith.mulf %368, %368 : vector<16x32xf32>
    %cst_200 = arith.constant dense<0.000000e+00> : vector<16xf32>
    %370 = vector.multi_reduction <add>, %369, %cst_200 [1] : vector<16x32xf32> to vector<16xf32>
    %371 = vector.shape_cast %370 : vector<16xf32> to vector<16x1xf32>
    %cst_201 = arith.constant 3.200000e+01 : f32
    %372 = vector.broadcast %cst_201 : f32 to vector<16x1xf32>
    %373 = arith.divf %371, %372 : vector<16x1xf32>
    %374 = vector.broadcast %366 : vector<16x1xf32> to vector<16x32xf32>
    %375 = arith.subf %358, %374 : vector<16x32xf32>
    %cst_202 = arith.constant 9.99999974E-6 : f32
    %376 = vector.broadcast %cst_202 : f32 to vector<16x1xf32>
    %377 = arith.addf %373, %376 : vector<16x1xf32>
    %378 = math.rsqrt %377 : vector<16x1xf32>
    %379 = vector.broadcast %378 : vector<16x1xf32> to vector<16x32xf32>
    %380 = arith.mulf %375, %379 : vector<16x32xf32>
    %381 = vector.broadcast %360 : vector<1x32xf32> to vector<16x32xf32>
    %382 = arith.mulf %380, %381 : vector<16x32xf32>
    %383 = vector.broadcast %362 : vector<1x32xf32> to vector<16x32xf32>
    %384 = arith.addf %382, %383 : vector<16x32xf32>
    %c0_203 = arith.constant 0 : index
    %c0_204 = arith.constant 0 : index
    %385 = vector.load %arg23[%c0_203, %c0_204] : memref<16x32xf32, #tpu.memory_space<vmem>>, vector<16x32xf32>
    tpu.vector_store %arg23[%c0_203, %c0_204], %384 {strides = array<i32>} : memref<16x32xf32, #tpu.memory_space<vmem>>, vector<16x32xf32>,
    return
  }
  func.func @transform_0(%arg0: i32) -> (i32, i32) {
    %c0_i32 = arith.constant 0 : i32
    %c0_i32_0 = arith.constant 0 : i32
    return %arg0, %c0_i32 : i32, i32
  }
  func.func @transform_1(%arg0: i32) -> (i32, i32) {
    %c0_i32 = arith.constant 0 : i32
    %c0_i32_0 = arith.constant 0 : i32
    %c0_i32_1 = arith.constant 0 : i32
    return %c0_i32, %c0_i32_0 : i32, i32
  }
  func.func @transform_2(%arg0: i32) -> (i32, i32) {
    %c0_i32 = arith.constant 0 : i32
    %c0_i32_0 = arith.constant 0 : i32
    %c0_i32_1 = arith.constant 0 : i32
    return %c0_i32, %c0_i32_0 : i32, i32
  }
  func.func @transform_3(%arg0: i32) -> (i32, i32, i32) {
    %c0_i32 = arith.constant 0 : i32
    %c0_i32_0 = arith.constant 0 : i32
    %c0_i32_1 = arith.constant 0 : i32
    %c0_i32_2 = arith.constant 0 : i32
    return %c0_i32, %c0_i32_0, %c0_i32_1 : i32, i32, i32
  }
  func.func @transform_4(%arg0: i32) -> (i32, i32) {
    %c0_i32 = arith.constant 0 : i32
    %c0_i32_0 = arith.constant 0 : i32
    %c0_i32_1 = arith.constant 0 : i32
    return %c0_i32, %c0_i32_0 : i32, i32
  }
  func.func @transform_5(%arg0: i32) -> (i32, i32) {
    %c0_i32 = arith.constant 0 : i32
    %c0_i32_0 = arith.constant 0 : i32
    %c0_i32_1 = arith.constant 0 : i32
    return %c0_i32, %c0_i32_0 : i32, i32
  }
  func.func @transform_6(%arg0: i32) -> (i32, i32, i32) {
    %c0_i32 = arith.constant 0 : i32
    %c0_i32_0 = arith.constant 0 : i32
    %c0_i32_1 = arith.constant 0 : i32
    %c0_i32_2 = arith.constant 0 : i32
    return %c0_i32, %c0_i32_0, %c0_i32_1 : i32, i32, i32
  }
  func.func @transform_7(%arg0: i32) -> (i32, i32, i32) {
    %c0_i32 = arith.constant 0 : i32
    %c0_i32_0 = arith.constant 0 : i32
    %c0_i32_1 = arith.constant 0 : i32
    %c0_i32_2 = arith.constant 0 : i32
    return %c0_i32, %c0_i32_0, %c0_i32_1 : i32, i32, i32
  }
  func.func @transform_8(%arg0: i32) -> (i32, i32, i32) {
    %c0_i32 = arith.constant 0 : i32
    %c0_i32_0 = arith.constant 0 : i32
    %c0_i32_1 = arith.constant 0 : i32
    %c0_i32_2 = arith.constant 0 : i32
    return %c0_i32, %c0_i32_0, %c0_i32_1 : i32, i32, i32
  }
  func.func @transform_9(%arg0: i32) -> (i32, i32, i32) {
    %c0_i32 = arith.constant 0 : i32
    %c0_i32_0 = arith.constant 0 : i32
    %c0_i32_1 = arith.constant 0 : i32
    %c0_i32_2 = arith.constant 0 : i32
    return %c0_i32, %c0_i32_0, %c0_i32_1 : i32, i32, i32
  }
  func.func @transform_10(%arg0: i32) -> (i32, i32, i32) {
    %c0_i32 = arith.constant 0 : i32
    %c0_i32_0 = arith.constant 0 : i32
    %c0_i32_1 = arith.constant 0 : i32
    %c0_i32_2 = arith.constant 0 : i32
    return %c0_i32, %c0_i32_0, %c0_i32_1 : i32, i32, i32
  }
  func.func @transform_11(%arg0: i32) -> (i32, i32, i32) {
    %c0_i32 = arith.constant 0 : i32
    %c0_i32_0 = arith.constant 0 : i32
    %c0_i32_1 = arith.constant 0 : i32
    %c0_i32_2 = arith.constant 0 : i32
    return %c0_i32, %c0_i32_0, %c0_i32_1 : i32, i32, i32
  }
  func.func @transform_12(%arg0: i32) -> (i32, i32, i32) {
    %c0_i32 = arith.constant 0 : i32
    %c0_i32_0 = arith.constant 0 : i32
    %c0_i32_1 = arith.constant 0 : i32
    %c0_i32_2 = arith.constant 0 : i32
    return %c0_i32, %c0_i32_0, %c0_i32_1 : i32, i32, i32
  }
  func.func @transform_13(%arg0: i32) -> (i32, i32, i32) {
    %c0_i32 = arith.constant 0 : i32
    %c0_i32_0 = arith.constant 0 : i32
    %c0_i32_1 = arith.constant 0 : i32
    %c0_i32_2 = arith.constant 0 : i32
    return %c0_i32, %c0_i32_0, %c0_i32_1 : i32, i32, i32
  }
  func.func @transform_14(%arg0: i32) -> (i32, i32, i32) {
    %c0_i32 = arith.constant 0 : i32
    %c0_i32_0 = arith.constant 0 : i32
    %c0_i32_1 = arith.constant 0 : i32
    %c0_i32_2 = arith.constant 0 : i32
    return %c0_i32, %c0_i32_0, %c0_i32_1 : i32, i32, i32
  }
  func.func @transform_15(%arg0: i32) -> (i32, i32, i32) {
    %c0_i32 = arith.constant 0 : i32
    %c0_i32_0 = arith.constant 0 : i32
    %c0_i32_1 = arith.constant 0 : i32
    %c0_i32_2 = arith.constant 0 : i32
    return %c0_i32, %c0_i32_0, %c0_i32_1 : i32, i32, i32
  }
  func.func @transform_16(%arg0: i32) -> (i32, i32, i32) {
    %c0_i32 = arith.constant 0 : i32
    %c0_i32_0 = arith.constant 0 : i32
    %c0_i32_1 = arith.constant 0 : i32
    %c0_i32_2 = arith.constant 0 : i32
    return %c0_i32, %c0_i32_0, %c0_i32_1 : i32, i32, i32
  }
  func.func @transform_17(%arg0: i32) -> (i32, i32, i32) {
    %c0_i32 = arith.constant 0 : i32
    %c0_i32_0 = arith.constant 0 : i32
    %c0_i32_1 = arith.constant 0 : i32
    %c0_i32_2 = arith.constant 0 : i32
    return %c0_i32, %c0_i32_0, %c0_i32_1 : i32, i32, i32
  }
  func.func @transform_18(%arg0: i32) -> (i32, i32, i32) {
    %c0_i32 = arith.constant 0 : i32
    %c0_i32_0 = arith.constant 0 : i32
    %c0_i32_1 = arith.constant 0 : i32
    %c0_i32_2 = arith.constant 0 : i32
    return %c0_i32, %c0_i32_0, %c0_i32_1 : i32, i32, i32
  }
  func.func @transform_19(%arg0: i32) -> (i32, i32, i32) {
    %c0_i32 = arith.constant 0 : i32
    %c0_i32_0 = arith.constant 0 : i32
    %c0_i32_1 = arith.constant 0 : i32
    %c0_i32_2 = arith.constant 0 : i32
    return %c0_i32, %c0_i32_0, %c0_i32_1 : i32, i32, i32
  }
  func.func @transform_20(%arg0: i32) -> (i32, i32, i32) {
    %c0_i32 = arith.constant 0 : i32
    %c0_i32_0 = arith.constant 0 : i32
    %c0_i32_1 = arith.constant 0 : i32
    %c0_i32_2 = arith.constant 0 : i32
    return %c0_i32, %c0_i32_0, %c0_i32_1 : i32, i32, i32
  }
  func.func @transform_21(%arg0: i32) -> (i32, i32, i32) {
    %c0_i32 = arith.constant 0 : i32
    %c0_i32_0 = arith.constant 0 : i32
    %c0_i32_1 = arith.constant 0 : i32
    %c0_i32_2 = arith.constant 0 : i32
    return %c0_i32, %c0_i32_0, %c0_i32_1 : i32, i32, i32
  }
  func.func @transform_22(%arg0: i32) -> (i32, i32) {
    %c0_i32 = arith.constant 0 : i32
    %c0_i32_0 = arith.constant 0 : i32
    return %arg0, %c0_i32 : i32, i32
  }
}

</mosaic_0001>

<llo_original>
// kernel: tpu_custom_call.1
$region0: #{tpu_custom_call.1}
  #allocation0 [shape = 'u32[]', space=smem, size = 0x4, offset = 0x4, fixed_abs, tag = 'smem constant byte address 0x4 - core index']
  #allocation1 [shape = 'u32[144,128]{1,0:T(1,128)}', space=vmem, size = 0x12000, scoped, tag = 'internal scratch']
  %s0 = inlined_call_operand.vmem [shape: f32[16,4], index: 0, kind: input, shape index: {}]
  %s1 = inlined_call_operand.vmem [shape: f32[16,32], index: 1, kind: input, shape index: {}]
  %s2 = inlined_call_operand.hbm [shape: f32[16,16], index: 2, kind: input, shape index: {}]
  %s3 = inlined_call_operand.vmem [shape: f32[4,1,32], index: 3, kind: input, shape index: {}]
  %s4 = inlined_call_operand.vmem [shape: f32[4,32], index: 4, kind: input, shape index: {}]
  %s5 = inlined_call_operand.hbm [shape: f32[1,32], index: 5, kind: input, shape index: {}]
  %s6 = inlined_call_operand.hbm [shape: f32[2,32,32], index: 6, kind: input, shape index: {}]
  %s7 = inlined_call_operand.vmem [shape: f32[2,1,32], index: 7, kind: input, shape index: {}]
  %s8 = inlined_call_operand.hbm [shape: f32[2,32,32], index: 8, kind: input, shape index: {}]
  %s9 = inlined_call_operand.vmem [shape: f32[2,1,32], index: 9, kind: input, shape index: {}]
  %s10 = inlined_call_operand.hbm [shape: f32[2,32,32], index: 10, kind: input, shape index: {}]
  %s11 = inlined_call_operand.vmem [shape: f32[2,1,32], index: 11, kind: input, shape index: {}]
  %s12 = inlined_call_operand.hbm [shape: f32[2,32,32], index: 12, kind: input, shape index: {}]
  %s13 = inlined_call_operand.vmem [shape: f32[2,1,32], index: 13, kind: input, shape index: {}]
  %s14 = inlined_call_operand.vmem [shape: f32[2,1,32], index: 14, kind: input, shape index: {}]
  %s15 = inlined_call_operand.vmem [shape: f32[2,1,32], index: 15, kind: input, shape index: {}]
  %s16 = inlined_call_operand.hbm [shape: f32[2,32,32], index: 16, kind: input, shape index: {}]
  %s17 = inlined_call_operand.vmem [shape: f32[2,1,32], index: 17, kind: input, shape index: {}]
  %s18 = inlined_call_operand.hbm [shape: f32[2,32,32], index: 18, kind: input, shape index: {}]
  %s19 = inlined_call_operand.vmem [shape: f32[2,1,32], index: 19, kind: input, shape index: {}]
  %s20 = inlined_call_operand.vmem [shape: f32[2,1,32], index: 20, kind: input, shape index: {}]
  %s21 = inlined_call_operand.vmem [shape: f32[2,1,32], index: 21, kind: input, shape index: {}]
  %s22 = inlined_call_operand.hbm [shape: f32[16,32], index: 22, kind: output, shape index: {}]
  %s23 = sld [smem:[#allocation0]]
  $region130: #{tpu_custom_call.1} parent=0
    _
  %s25 = ssub.s32 1, %s23
  %s26 = scalar_select 0, %s25, %s23
  $region1: #{tpu_custom_call.1} parent=0
    #allocation2 [shape = 'u8[8192]{0}', space=vmem, size = 0x2000, scoped, tag = 'input window, operand 2, single buffered']
    #allocation3 [shape = 's32[1]{0}', space=sflag, size = 0x4, scoped, tag = 'scoped memory for tpu_custom_call.1']
    #allocation4 [shape = 's32[1]{0}', space=sflag, size = 0x4, scoped, tag = 'scoped memory for tpu_custom_call.1']
    #allocation5 [shape = 'u8[512]{0}', space=vmem, size = 0x400, scoped, tag = 'input window, operand 5, single buffered']
    #allocation6 [shape = 's32[1]{0}', space=sflag, size = 0x4, scoped, tag = 'scoped memory for tpu_custom_call.1']
    #allocation7 [shape = 'u8[32768]{0}', space=vmem, size = 0x8000, scoped, tag = 'input window, operand 6, single buffered']
    #allocation8 [shape = 'u8[32768]{0}', space=vmem, size = 0x8000, scoped, tag = 'input window, operand 8, single buffered']
    #allocation9 [shape = 's32[1]{0}', space=sflag, size = 0x4, scoped, tag = 'scoped memory for tpu_custom_call.1']
    #allocation10 [shape = 'u8[32768]{0}', space=vmem, size = 0x8000, scoped, tag = 'input window, operand 10, single buffered']
    #allocation11 [shape = 'u8[32768]{0}', space=vmem, size = 0x8000, scoped, tag = 'input window, operand 12, single buffered']
    #allocation12 [shape = 's32[1]{0}', space=sflag, size = 0x4, scoped, tag = 'scoped memory for tpu_custom_call.1']
    #allocation13 [shape = 'u8[32768]{0}', space=vmem, size = 0x8000, scoped, tag = 'input window, operand 16, single buffered']
    #allocation14 [shape = 'u8[32768]{0}', space=vmem, size = 0x8000, scoped, tag = 'input window, operand 18, single buffered']
    #allocation15 [shape = 's32[1]{0}', space=sflag, size = 0x4, scoped, tag = 'scoped memory for tpu_custom_call.1']
    #allocation16 [shape = 'u8[8192]{0}', space=vmem, size = 0x2000, scoped, tag = 'output window, operand 0, single buffered']
    %27 = vsyncpa [#allocation3], 0
    %28 = vsyncpa [#allocation6], 0
    %29 = vsyncpa [#allocation9], 0
    %30 = vsyncpa [#allocation12], 0
    %31 = vsyncpa [#allocation15], 0
    %32 = vsyncpa [#allocation4], 0
    // Predicated region
    $region2: #{tpu_custom_call.1} parent=1 // pred_check
      _
    $region3: #{tpu_custom_call.1} parent=1 // pred_check_branch
      %34 = sbr.rel (0) target = $region5
    $region4: #{tpu_custom_call.1} parent=1 // pred_region
      _
    $region5: #{tpu_custom_call.1} parent=1 // pred_fallthru
      _
    // Predicated region
    $region6: #{tpu_custom_call.1} parent=1 // pred_check
      _
    $region7: #{tpu_custom_call.1} parent=1 // pred_check_branch
      %36 = sbr.rel (0) target = $region9
    $region8: #{tpu_custom_call.1} parent=1 // pred_region
      _
    $region9: #{tpu_custom_call.1} parent=1 // pred_fallthru
      _
    // Predicated region
    $region10: #{tpu_custom_call.1} parent=1 // pred_check
      _
    $region11: #{tpu_custom_call.1} parent=1 // pred_check_branch
      %38 = sbr.rel (0) target = $region13
    $region12: #{tpu_custom_call.1} parent=1 // pred_region
      %s40 = ssub.s32 256, 256
      %41 = vsyncadd [#allocation3], %s40
      %s42 = sshll.u32 [#allocation2], 4
      %s43 = int_to_ptr.vmem [resolvable:$true] %s42
      %48 = dma.hbm_to_vmem [thread:$0]  %s2, 256, %s43, [#allocation3], 128, 128, 8
    $region13: #{tpu_custom_call.1} parent=1 // pred_fallthru
      _
    // Predicated region
    $region14: #{tpu_custom_call.1} parent=1 // pred_check
      _
    $region15: #{tpu_custom_call.1} parent=1 // pred_check_branch
      %50 = sbr.rel (0) target = $region17
    $region16: #{tpu_custom_call.1} parent=1 // pred_region
      _
    $region17: #{tpu_custom_call.1} parent=1 // pred_fallthru
      _
    // Predicated region
    $region18: #{tpu_custom_call.1} parent=1 // pred_check
      _
    $region19: #{tpu_custom_call.1} parent=1 // pred_check_branch
      %52 = sbr.rel (0) target = $region21
    $region20: #{tpu_custom_call.1} parent=1 // pred_region
      _
    $region21: #{tpu_custom_call.1} parent=1 // pred_fallthru
      _
    // Predicated region
    $region22: #{tpu_custom_call.1} parent=1 // pred_check
      _
    $region23: #{tpu_custom_call.1} parent=1 // pred_check_branch
      %54 = sbr.rel (0) target = $region25
    $region24: #{tpu_custom_call.1} parent=1 // pred_region
      %s56 = ssub.s32 16, 16
      %57 = vsyncadd [#allocation6], %s56
      %s59 = sshll.u32 [#allocation5], 4
      %s60 = int_to_ptr.vmem [resolvable:$true] %s59
      %62 = dma.hbm_to_vmem [thread:$0]  %s5, 16, %s60, [#allocation6]
    $region25: #{tpu_custom_call.1} parent=1 // pred_fallthru
      _
    // Predicated region
    $region26: #{tpu_custom_call.1} parent=1 // pred_check
      _
    $region27: #{tpu_custom_call.1} parent=1 // pred_check_branch
      %64 = sbr.rel (0) target = $region29
    $region28: #{tpu_custom_call.1} parent=1 // pred_region
      %s66 = ssub.s32 1024, 1024
      %67 = vsyncadd [#allocation6], %s66
      %s68 = sshll.u32 [#allocation7], 4
      %s69 = int_to_ptr.vmem [resolvable:$true] %s68
      %74 = dma.hbm_to_vmem [thread:$0]  %s6, 1024, %s69, [#allocation6], 128, 128, 8
    $region29: #{tpu_custom_call.1} parent=1 // pred_fallthru
      _
    // Predicated region
    $region30: #{tpu_custom_call.1} parent=1 // pred_check
      _
    $region31: #{tpu_custom_call.1} parent=1 // pred_check_branch
      %76 = sbr.rel (0) target = $region33
    $region32: #{tpu_custom_call.1} parent=1 // pred_region
      _
    $region33: #{tpu_custom_call.1} parent=1 // pred_fallthru
      _
    // Predicated region
    $region34: #{tpu_custom_call.1} parent=1 // pred_check
      _
    $region35: #{tpu_custom_call.1} parent=1 // pred_check_branch
      %78 = sbr.rel (0) target = $region37
    $region36: #{tpu_custom_call.1} parent=1 // pred_region
      %s80 = ssub.s32 1024, 1024
      %81 = vsyncadd [#allocation9], %s80
      %s82 = sshll.u32 [#allocation8], 4
      %s83 = int_to_ptr.vmem [resolvable:$true] %s82
      %88 = dma.hbm_to_vmem [thread:$0]  %s8, 1024, %s83, [#allocation9], 128, 128, 8
    $region37: #{tpu_custom_call.1} parent=1 // pred_fallthru
      _
    // Predicated region
    $region38: #{tpu_custom_call.1} parent=1 // pred_check
      _
    $region39: #{tpu_custom_call.1} parent=1 // pred_check_branch
      %90 = sbr.rel (0) target = $region41
    $region40: #{tpu_custom_call.1} parent=1 // pred_region
      _
    $region41: #{tpu_custom_call.1} parent=1 // pred_fallthru
      _
    // Predicated region
    $region42: #{tpu_custom_call.1} parent=1 // pred_check
      _
    $region43: #{tpu_custom_call.1} parent=1 // pred_check_branch
      %92 = sbr.rel (0) target = $region45
    $region44: #{tpu_custom_call.1} parent=1 // pred_region
      %s94 = ssub.s32 1024, 1024
      %95 = vsyncadd [#allocation9], %s94
      %s96 = sshll.u32 [#allocation10], 4
      %s97 = int_to_ptr.vmem [resolvable:$true] %s96
      %102 = dma.hbm_to_vmem [thread:$0]  %s10, 1024, %s97, [#allocation9], 128, 128, 8
    $region45: #{tpu_custom_call.1} parent=1 // pred_fallthru
      _
    // Predicated region
    $region46: #{tpu_custom_call.1} parent=1 // pred_check
      _
    $region47: #{tpu_custom_call.1} parent=1 // pred_check_branch
      %104 = sbr.rel (0) target = $region49
    $region48: #{tpu_custom_call.1} parent=1 // pred_region
      _
    $region49: #{tpu_custom_call.1} parent=1 // pred_fallthru
      _
    // Predicated region
    $region50: #{tpu_custom_call.1} parent=1 // pred_check
      _
    $region51: #{tpu_custom_call.1} parent=1 // pred_check_branch
      %106 = sbr.rel (0) target = $region53
    $region52: #{tpu_custom_call.1} parent=1 // pred_region
      %s108 = ssub.s32 1024, 1024
      %109 = vsyncadd [#allocation12], %s108
      %s110 = sshll.u32 [#allocation11], 4
      %s111 = int_to_ptr.vmem [resolvable:$true] %s110
      %116 = dma.hbm_to_vmem [thread:$0]  %s12, 1024, %s111, [#allocation12], 128, 128, 8
    $region53: #{tpu_custom_call.1} parent=1 // pred_fallthru
      _
    // Predicated region
    $region54: #{tpu_custom_call.1} parent=1 // pred_check
      _
    $region55: #{tpu_custom_call.1} parent=1 // pred_check_branch
      %118 = sbr.rel (0) target = $region57
    $region56: #{tpu_custom_call.1} parent=1 // pred_region
      _
    $region57: #{tpu_custom_call.1} parent=1 // pred_fallthru
      _
    // Predicated region
    $region58: #{tpu_custom_call.1} parent=1 // pred_check
      _
    $region59: #{tpu_custom_call.1} parent=1 // pred_check_branch
      %120 = sbr.rel (0) target = $region61
    $region60: #{tpu_custom_call.1} parent=1 // pred_region
      _
    $region61: #{tpu_custom_call.1} parent=1 // pred_fallthru
      _
    // Predicated region
    $region62: #{tpu_custom_call.1} parent=1 // pred_check
      _
    $region63: #{tpu_custom_call.1} parent=1 // pred_check_branch
      %122 = sbr.rel (0) target = $region65
    $region64: #{tpu_custom_call.1} parent=1 // pred_region
      _
    $region65: #{tpu_custom_call.1} parent=1 // pred_fallthru
      _
    // Predicated region
    $region66: #{tpu_custom_call.1} parent=1 // pred_check
      _
    $region67: #{tpu_custom_call.1} parent=1 // pred_check_branch
      %124 = sbr.rel (0) target = $region69
    $region68: #{tpu_custom_call.1} parent=1 // pred_region
      %s126 = ssub.s32 1024, 1024
      %127 = vsyncadd [#allocation12], %s126
      %s128 = sshll.u32 [#allocation13], 4
      %s129 = int_to_ptr.vmem [resolvable:$true] %s128
      %134 = dma.hbm_to_vmem [thread:$0]  %s16, 1024, %s129, [#allocation12], 128, 128, 8
    $region69: #{tpu_custom_call.1} parent=1 // pred_fallthru
      _
    // Predicated region
    $region70: #{tpu_custom_call.1} parent=1 // pred_check
      _
    $region71: #{tpu_custom_call.1} parent=1 // pred_check_branch
      %136 = sbr.rel (0) target = $region73
    $region72: #{tpu_custom_call.1} parent=1 // pred_region
      _
    $region73: #{tpu_custom_call.1} parent=1 // pred_fallthru
      _
    // Predicated region
    $region74: #{tpu_custom_call.1} parent=1 // pred_check
      _
    $region75: #{tpu_custom_call.1} parent=1 // pred_check_branch
      %138 = sbr.rel (0) target = $region77
    $region76: #{tpu_custom_call.1} parent=1 // pred_region
      %s140 = ssub.s32 1024, 1024
      %141 = vsyncadd [#allocation15], %s140
      %s142 = sshll.u32 [#allocation14], 4
      %s143 = int_to_ptr.vmem [resolvable:$true] %s142
      %148 = dma.hbm_to_vmem [thread:$0]  %s18, 1024, %s143, [#allocation15], 128, 128, 8
    $region77: #{tpu_custom_call.1} parent=1 // pred_fallthru
      _
    // Predicated region
    $region78: #{tpu_custom_call.1} parent=1 // pred_check
      _
    $region79: #{tpu_custom_call.1} parent=1 // pred_check_branch
      %150 = sbr.rel (0) target = $region81
    $region80: #{tpu_custom_call.1} parent=1 // pred_region
      _
    $region81: #{tpu_custom_call.1} parent=1 // pred_fallthru
      _
    // Predicated region
    $region82: #{tpu_custom_call.1} parent=1 // pred_check
      _
    $region83: #{tpu_custom_call.1} parent=1 // pred_check_branch
      %152 = sbr.rel (0) target = $region85
    $region84: #{tpu_custom_call.1} parent=1 // pred_region
      _
    $region85: #{tpu_custom_call.1} parent=1 // pred_fallthru
      _
    // Predicated region
    $region86: #{tpu_custom_call.1} parent=1 // pred_check
      _
    $region87: #{tpu_custom_call.1} parent=1 // pred_check_branch
      %154 = sbr.rel (0) target = $region89
    $region88: #{tpu_custom_call.1} parent=1 // pred_region
      _
    $region89: #{tpu_custom_call.1} parent=1 // pred_fallthru
      _
    // Predicated region
    $region90: #{tpu_custom_call.1} parent=1 // pred_check
      _
    $region91: #{tpu_custom_call.1} parent=1 // pred_check_branch
      %156 = sbr.rel (0) target = $region93
    $region92: #{tpu_custom_call.1} parent=1 // pred_region
      %157 = dma.done [#allocation3], 256
    $region93: #{tpu_custom_call.1} parent=1 // pred_fallthru
      _
    // Predicated region
    $region94: #{tpu_custom_call.1} parent=1 // pred_check
      _
    $region95: #{tpu_custom_call.1} parent=1 // pred_check_branch
      %159 = sbr.rel (0) target = $region97
    $region96: #{tpu_custom_call.1} parent=1 // pred_region
      %160 = dma.done [#allocation6], 16
    $region97: #{tpu_custom_call.1} parent=1 // pred_fallthru
      _
    // Predicated region
    $region98: #{tpu_custom_call.1} parent=1 // pred_check
      _
    $region99: #{tpu_custom_call.1} parent=1 // pred_check_branch
      %162 = sbr.rel (0) target = $region101
    $region100: #{tpu_custom_call.1} parent=1 // pred_region
      %163 = dma.done [#allocation6], 1024
    $region101: #{tpu_custom_call.1} parent=1 // pred_fallthru
      _
    // Predicated region
    $region102: #{tpu_custom_call.1} parent=1 // pred_check
      _
    $region103: #{tpu_custom_call.1} parent=1 // pred_check_branch
      %165 = sbr.rel (0) target = $region105
    $region104: #{tpu_custom_call.1} parent=1 // pred_region
      %166 = dma.done [#allocation9], 1024
    $region105: #{tpu_custom_call.1} parent=1 // pred_fallthru
      _
    // Predicated region
    $region106: #{tpu_custom_call.1} parent=1 // pred_check
      _
    $region107: #{tpu_custom_call.1} parent=1 // pred_check_branch
      %168 = sbr.rel (0) target = $region109
    $region108: #{tpu_custom_call.1} parent=1 // pred_region
      %169 = dma.done [#allocation9], 1024
    $region109: #{tpu_custom_call.1} parent=1 // pred_fallthru
      _
    // Predicated region
    $region110: #{tpu_custom_call.1} parent=1 // pred_check
      _
    $region111: #{tpu_custom_call.1} parent=1 // pred_check_branch
      %171 = sbr.rel (0) target = $region113
    $region112: #{tpu_custom_call.1} parent=1 // pred_region
      %172 = dma.done [#allocation12], 1024
    $region113: #{tpu_custom_call.1} parent=1 // pred_fallthru
      _
    // Predicated region
    $region114: #{tpu_custom_call.1} parent=1 // pred_check
      _
    $region115: #{tpu_custom_call.1} parent=1 // pred_check_branch
      %174 = sbr.rel (0) target = $region117
    $region116: #{tpu_custom_call.1} parent=1 // pred_region
      %175 = dma.done [#allocation12], 1024
    $region117: #{tpu_custom_call.1} parent=1 // pred_fallthru
      _
    // Predicated region
    $region118: #{tpu_custom_call.1} parent=1 // pred_check
      _
    $region119: #{tpu_custom_call.1} parent=1 // pred_check_branch
      %177 = sbr.rel (0) target = $region121
    $region120: #{tpu_custom_call.1} parent=1 // pred_region
      %178 = dma.done [#allocation15], 1024
    $region121: #{tpu_custom_call.1} parent=1 // pred_fallthru
      _
    %v179 = vld [vmem:[%s0] sm:$0xff]
    %v180 = vld [vmem:[%s0 + $0x8] sm:$0xff]
    %v181 = vld [vmem:[%s4] sm:$0xf]
    %v182 = vld [vmem:[#allocation5] sm:$0x1]
    %v184 = vlaneseq
    %v185 = vshrl.u32 %v184, 7
    %v186 = vsub.s32 0, %v185
    %v187 = vrot.slane %v182, %v186
    %vm189 = vcmask 31744
    %v191 = vsel %vm189, %v179, 0
    %v194 = vsel %vm189, %v180, 0
    %vm196 = vcmask 1043456
    %v198 = vsel %vm196, %v181, 0
    %200 = vmatprep.subr.mxu0 0.0
    %201 = vmatpush1.msra.mxu0 0.0
    %202 = vmatprep.subr.mxu0 0.0
    %203 = vmatpush1.msra.mxu0 0.0
    %204 = vmatprep.subr.mxu0 0.0
    %205 = vmatpush1.msra.mxu0 0.0
    %206 = vmatprep.subr.mxu0 0.0
    %207 = vmatpush1.msra.mxu0 0.0
    %208 = vmatprep.subr.mxu0 0.0
    %209 = vmatpush1.msra.mxu0 0.0
    %210 = vmatprep.subr.mxu0 0.0
    %211 = vmatpush1.msra.mxu0 0.0
    %212 = vmatprep.subr.mxu0 0.0
    %213 = vmatpush1.msra.mxu0 0.0
    %214 = vmatprep.subr.mxu0 0.0
    %215 = vmatpush1.msra.mxu0 0.0
    %216 = vmatprep.subr.mxu0 0.0
    %217 = vmatpush1.msra.mxu0 0.0
    %218 = vmatprep.subr.mxu0 0.0
    %219 = vmatpush1.msra.mxu0 0.0
    %220 = vmatprep.subr.mxu0 0.0
    %221 = vmatpush1.msra.mxu0 0.0
    %222 = vmatprep.subr.mxu0 0.0
    %223 = vmatpush1.msra.mxu0 0.0
    %224 = vmatprep.subr.mxu0 0.0
    %225 = vmatpush1.msra.mxu0 0.0
    %226 = vmatprep.subr.mxu0 0.0
    %227 = vmatpush1.msra.mxu0 0.0
    %228 = vmatprep.subr.mxu0 0.0
    %229 = vmatpush1.msra.mxu0 0.0
    %230 = vmatprep.subr.mxu0 0.0
    %231 = vmatpush1.msra.mxu0 %v198
    %232 = vmatprep.subr.mxu0 0.0
    %233 = vmatpush2.msra.mxu0 0.0
    %234 = vmatprep.subr.mxu0 0.0
    %235 = vmatpush2.msra.mxu0 0.0
    %236 = vmatprep.subr.mxu0 0.0
    %237 = vmatpush2.msra.mxu0 0.0
    %238 = vmatprep.subr.mxu0 0.0
    %239 = vmatpush2.msra.mxu0 0.0
    %240 = vmatprep.subr.mxu0 0.0
    %241 = vmatpush2.msra.mxu0 0.0
    %242 = vmatprep.subr.mxu0 0.0
    %243 = vmatpush2.msra.mxu0 0.0
    %244 = vmatprep.subr.mxu0 0.0
    %245 = vmatpush2.msra.mxu0 0.0
    %246 = vmatprep.subr.mxu0 0.0
    %247 = vmatpush2.msra.mxu0 0.0
    %248 = vmatprep.subr.mxu0 0.0
    %249 = vmatpush2.msra.mxu0 0.0
    %250 = vmatprep.subr.mxu0 0.0
    %251 = vmatpush2.msra.mxu0 0.0
    %252 = vmatprep.subr.mxu0 0.0
    %253 = vmatpush2.msra.mxu0 0.0
    %254 = vmatprep.subr.mxu0 0.0
    %255 = vmatpush2.msra.mxu0 0.0
    %256 = vmatprep.subr.mxu0 0.0
    %257 = vmatpush2.msra.mxu0 0.0
    %258 = vmatprep.subr.mxu0 0.0
    %259 = vmatpush2.msra.mxu0 0.0
    %260 = vmatprep.subr.mxu0 0.0
    %261 = vmatpush2.msra.mxu0 0.0
    %262 = vmatprep.subr.mxu0 0.0
    %263 = vmatpush2.msra.mxu0 0.0
    %264 = vmatprep.mubr.f32.mxu0 0.0
    %265 = vmatmul.mubr.f32.gmra.mxu0 %v191
    %v266 = vpop.f32.mrf.mxu0
    %v267 = vadd.f32 %v187, %v266
    %v268 = vpop.f32.mrf.mxu0
    %269 = vmatprep.mubr.f32.mxu0 0.0
    %270 = vmatmul.mubr.f32.gmra.mxu0 %v194
    %v271 = vpop.f32.mrf.mxu0
    %v272 = vadd.f32 %v187, %v271
    %v273 = vpop.f32.mrf.mxu0
    %274 = vdwg.mxu0
    %v275 = vld [vmem:[%s1] sm:$0xff]
    %v276 = vld [vmem:[%s1 + $0x8] sm:$0xff]
    %v277 = vadd.f32 %v267, %v275
    %v278 = vadd.f32 %v272, %v276
    %v279 = vmul.f32 %v277, 2.828427
    %v280 = vmul.f32 %v278, 2.828427
    %v281 = vld [vmem:[#allocation2] sm:$0xff]
    %v282 = vld [vmem:[#allocation2 + $0x8] sm:$0xff]
    %v283 = vld [vmem:[#allocation7] sm:$0xff]
    %v284 = vld [vmem:[#allocation7 + $0x8] sm:$0xff]
    %v285 = vld [vmem:[#allocation7 + $0x10] sm:$0xff]
    %v286 = vld [vmem:[#allocation7 + $0x18] sm:$0xff]
    %v287 = vld [vmem:[%s7] sm:$0x1]
    %v289 = vlaneseq
    %v290 = vshrl.u32 %v289, 7
    %v291 = vsub.s32 0, %v290
    %v292 = vrot.slane %v287, %v291
    %vm294 = vcmask 261120
    %v296 = vsel %vm294, %v279, 0
    %v299 = vsel %vm294, %v280, 0
    %301 = vmatprep.subr.mxu0 0.0
    %302 = vmatpush1.msra.mxu0 0.0
    %303 = vmatprep.subr.mxu0 0.0
    %304 = vmatpush1.msra.mxu0 0.0
    %305 = vmatprep.subr.mxu0 0.0
    %306 = vmatpush1.msra.mxu0 0.0
    %307 = vmatprep.subr.mxu0 0.0
    %308 = vmatpush1.msra.mxu0 0.0
    %309 = vmatprep.subr.mxu0 0.0
    %310 = vmatpush1.msra.mxu0 0.0
    %311 = vmatprep.subr.mxu0 0.0
    %312 = vmatpush1.msra.mxu0 0.0
    %313 = vmatprep.subr.mxu0 0.0
    %314 = vmatpush1.msra.mxu0 0.0
    %315 = vmatprep.subr.mxu0 0.0
    %316 = vmatpush1.msra.mxu0 0.0
    %317 = vmatprep.subr.mxu0 0.0
    %318 = vmatpush1.msra.mxu0 0.0
    %319 = vmatprep.subr.mxu0 0.0
    %320 = vmatpush1.msra.mxu0 0.0
    %321 = vmatprep.subr.mxu0 0.0
    %322 = vmatpush1.msra.mxu0 0.0
    %323 = vmatprep.subr.mxu0 0.0
    %324 = vmatpush1.msra.mxu0 0.0
    %325 = vmatprep.subr.mxu0 0.0
    %326 = vmatpush1.msra.mxu0 %v286
    %327 = vmatprep.subr.mxu0 0.0
    %328 = vmatpush1.msra.mxu0 %v285
    %329 = vmatprep.subr.mxu0 0.0
    %330 = vmatpush1.msra.mxu0 %v284
    %331 = vmatprep.subr.mxu0 0.0
    %332 = vmatpush1.msra.mxu0 %v283
    %333 = vmatprep.subr.mxu0 0.0
    %334 = vmatpush2.msra.mxu0 0.0
    %335 = vmatprep.subr.mxu0 0.0
    %336 = vmatpush2.msra.mxu0 0.0
    %337 = vmatprep.subr.mxu0 0.0
    %338 = vmatpush2.msra.mxu0 0.0
    %339 = vmatprep.subr.mxu0 0.0
    %340 = vmatpush2.msra.mxu0 0.0
    %341 = vmatprep.subr.mxu0 0.0
    %342 = vmatpush2.msra.mxu0 0.0
    %343 = vmatprep.subr.mxu0 0.0
    %344 = vmatpush2.msra.mxu0 0.0
    %345 = vmatprep.subr.mxu0 0.0
    %346 = vmatpush2.msra.mxu0 0.0
    %347 = vmatprep.subr.mxu0 0.0
    %348 = vmatpush2.msra.mxu0 0.0
    %349 = vmatprep.subr.mxu0 0.0
    %350 = vmatpush2.msra.mxu0 0.0
    %351 = vmatprep.subr.mxu0 0.0
    %352 = vmatpush2.msra.mxu0 0.0
    %353 = vmatprep.subr.mxu0 0.0
    %354 = vmatpush2.msra.mxu0 0.0
    %355 = vmatprep.subr.mxu0 0.0
    %356 = vmatpush2.msra.mxu0 0.0
    %357 = vmatprep.subr.mxu0 0.0
    %358 = vmatpush2.msra.mxu0 0.0
    %359 = vmatprep.subr.mxu0 0.0
    %360 = vmatpush2.msra.mxu0 0.0
    %361 = vmatprep.subr.mxu0 0.0
    %362 = vmatpush2.msra.mxu0 0.0
    %363 = vmatprep.subr.mxu0 0.0
    %364 = vmatpush2.msra.mxu0 0.0
    %365 = vmatprep.mubr.f32.mxu0 0.0
    %366 = vmatmul.mubr.f32.gmra.mxu0 %v296
    %v367 = vpop.f32.mrf.mxu0
    %v368 = vadd.f32 %v292, %v367
    %v369 = vpop.f32.mrf.mxu0
    %370 = vmatprep.mubr.f32.mxu0 0.0
    %371 = vmatmul.mubr.f32.gmra.mxu0 %v299
    %v372 = vpop.f32.mrf.mxu0
    %v373 = vadd.f32 %v292, %v372
    %v374 = vpop.f32.mrf.mxu0
    %375 = vdwg.mxu0
    %v376 = vld [vmem:[#allocation8] sm:$0xff]
    %v377 = vld [vmem:[#allocation8 + $0x8] sm:$0xff]
    %v378 = vld [vmem:[#allocation8 + $0x10] sm:$0xff]
    %v379 = vld [vmem:[#allocation8 + $0x18] sm:$0xff]
    %v380 = vld [vmem:[%s9] sm:$0x1]
    %v382 = vlaneseq
    %v383 = vshrl.u32 %v382, 7
    %v384 = vsub.s32 0, %v383
    %v385 = vrot.slane %v380, %v384
    %387 = vmatprep.subr.mxu0 0.0
    %388 = vmatpush1.msra.mxu0 0.0
    %389 = vmatprep.subr.mxu0 0.0
    %390 = vmatpush1.msra.mxu0 0.0
    %391 = vmatprep.subr.mxu0 0.0
    %392 = vmatpush1.msra.mxu0 0.0
    %393 = vmatprep.subr.mxu0 0.0
    %394 = vmatpush1.msra.mxu0 0.0
    %395 = vmatprep.subr.mxu0 0.0
    %396 = vmatpush1.msra.mxu0 0.0
    %397 = vmatprep.subr.mxu0 0.0
    %398 = vmatpush1.msra.mxu0 0.0
    %399 = vmatprep.subr.mxu0 0.0
    %400 = vmatpush1.msra.mxu0 0.0
    %401 = vmatprep.subr.mxu0 0.0
    %402 = vmatpush1.msra.mxu0 0.0
    %403 = vmatprep.subr.mxu0 0.0
    %404 = vmatpush1.msra.mxu0 0.0
    %405 = vmatprep.subr.mxu0 0.0
    %406 = vmatpush1.msra.mxu0 0.0
    %407 = vmatprep.subr.mxu0 0.0
    %408 = vmatpush1.msra.mxu0 0.0
    %409 = vmatprep.subr.mxu0 0.0
    %410 = vmatpush1.msra.mxu0 0.0
    %411 = vmatprep.subr.mxu0 0.0
    %412 = vmatpush1.msra.mxu0 %v379
    %413 = vmatprep.subr.mxu0 0.0
    %414 = vmatpush1.msra.mxu0 %v378
    %415 = vmatprep.subr.mxu0 0.0
    %416 = vmatpush1.msra.mxu0 %v377
    %417 = vmatprep.subr.mxu0 0.0
    %418 = vmatpush1.msra.mxu0 %v376
    %419 = vmatprep.subr.mxu0 0.0
    %420 = vmatpush2.msra.mxu0 0.0
    %421 = vmatprep.subr.mxu0 0.0
    %422 = vmatpush2.msra.mxu0 0.0
    %423 = vmatprep.subr.mxu0 0.0
    %424 = vmatpush2.msra.mxu0 0.0
    %425 = vmatprep.subr.mxu0 0.0
    %426 = vmatpush2.msra.mxu0 0.0
    %427 = vmatprep.subr.mxu0 0.0
    %428 = vmatpush2.msra.mxu0 0.0
    %429 = vmatprep.subr.mxu0 0.0
    %430 = vmatpush2.msra.mxu0 0.0
    %431 = vmatprep.subr.mxu0 0.0
    %432 = vmatpush2.msra.mxu0 0.0
    %433 = vmatprep.subr.mxu0 0.0
    %434 = vmatpush2.msra.mxu0 0.0
    %435 = vmatprep.subr.mxu0 0.0
    %436 = vmatpush2.msra.mxu0 0.0
    %437 = vmatprep.subr.mxu0 0.0
    %438 = vmatpush2.msra.mxu0 0.0
    %439 = vmatprep.subr.mxu0 0.0
    %440 = vmatpush2.msra.mxu0 0.0
    %441 = vmatprep.subr.mxu0 0.0
    %442 = vmatpush2.msra.mxu0 0.0
    %443 = vmatprep.subr.mxu0 0.0
    %444 = vmatpush2.msra.mxu0 0.0
    %445 = vmatprep.subr.mxu0 0.0
    %446 = vmatpush2.msra.mxu0 0.0
    %447 = vmatprep.subr.mxu0 0.0
    %448 = vmatpush2.msra.mxu0 0.0
    %449 = vmatprep.subr.mxu0 0.0
    %450 = vmatpush2.msra.mxu0 0.0
    %451 = vmatprep.mubr.f32.mxu0 0.0
    %452 = vmatmul.mubr.f32.gmra.mxu0 %v296
    %v453 = vpop.f32.mrf.mxu0
    %v454 = vadd.f32 %v385, %v453
    %v455 = vpop.f32.mrf.mxu0
    %456 = vmatprep.mubr.f32.mxu0 0.0
    %457 = vmatmul.mubr.f32.gmra.mxu0 %v299
    %v458 = vpop.f32.mrf.mxu0
    %v459 = vadd.f32 %v385, %v458
    %v460 = vpop.f32.mrf.mxu0
    %461 = vdwg.mxu0
    %v462 = vld [vmem:[#allocation10] sm:$0xff]
    %v463 = vld [vmem:[#allocation10 + $0x8] sm:$0xff]
    %v464 = vld [vmem:[#allocation10 + $0x10] sm:$0xff]
    %v465 = vld [vmem:[#allocation10 + $0x18] sm:$0xff]
    %v466 = vld [vmem:[%s11] sm:$0x1]
    %v468 = vlaneseq
    %v469 = vshrl.u32 %v468, 7
    %v470 = vsub.s32 0, %v469
    %v471 = vrot.slane %v466, %v470
    %473 = vmatprep.subr.mxu0 0.0
    %474 = vmatpush1.msra.mxu0 0.0
    %475 = vmatprep.subr.mxu0 0.0
    %476 = vmatpush1.msra.mxu0 0.0
    %477 = vmatprep.subr.mxu0 0.0
    %478 = vmatpush1.msra.mxu0 0.0
    %479 = vmatprep.subr.mxu0 0.0
    %480 = vmatpush1.msra.mxu0 0.0
    %481 = vmatprep.subr.mxu0 0.0
    %482 = vmatpush1.msra.mxu0 0.0
    %483 = vmatprep.subr.mxu0 0.0
    %484 = vmatpush1.msra.mxu0 0.0
    %485 = vmatprep.subr.mxu0 0.0
    %486 = vmatpush1.msra.mxu0 0.0
    %487 = vmatprep.subr.mxu0 0.0
    %488 = vmatpush1.msra.mxu0 0.0
    %489 = vmatprep.subr.mxu0 0.0
    %490 = vmatpush1.msra.mxu0 0.0
    %491 = vmatprep.subr.mxu0 0.0
    %492 = vmatpush1.msra.mxu0 0.0
    %493 = vmatprep.subr.mxu0 0.0
    %494 = vmatpush1.msra.mxu0 0.0
    %495 = vmatprep.subr.mxu0 0.0
    %496 = vmatpush1.msra.mxu0 0.0
    %497 = vmatprep.subr.mxu0 0.0
    %498 = vmatpush1.msra.mxu0 %v465
    %499 = vmatprep.subr.mxu0 0.0
    %500 = vmatpush1.msra.mxu0 %v464
    %501 = vmatprep.subr.mxu0 0.0
    %502 = vmatpush1.msra.mxu0 %v463
    %503 = vmatprep.subr.mxu0 0.0
    %504 = vmatpush1.msra.mxu0 %v462
    %505 = vmatprep.subr.mxu0 0.0
    %506 = vmatpush2.msra.mxu0 0.0
    %507 = vmatprep.subr.mxu0 0.0
    %508 = vmatpush2.msra.mxu0 0.0
    %509 = vmatprep.subr.mxu0 0.0
    %510 = vmatpush2.msra.mxu0 0.0
    %511 = vmatprep.subr.mxu0 0.0
    %512 = vmatpush2.msra.mxu0 0.0
    %513 = vmatprep.subr.mxu0 0.0
    %514 = vmatpush2.msra.mxu0 0.0
    %515 = vmatprep.subr.mxu0 0.0
    %516 = vmatpush2.msra.mxu0 0.0
    %517 = vmatprep.subr.mxu0 0.0
    %518 = vmatpush2.msra.mxu0 0.0
    %519 = vmatprep.subr.mxu0 0.0
    %520 = vmatpush2.msra.mxu0 0.0
    %521 = vmatprep.subr.mxu0 0.0
    %522 = vmatpush2.msra.mxu0 0.0
    %523 = vmatprep.subr.mxu0 0.0
    %524 = vmatpush2.msra.mxu0 0.0
    %525 = vmatprep.subr.mxu0 0.0
    %526 = vmatpush2.msra.mxu0 0.0
    %527 = vmatprep.subr.mxu0 0.0
    %528 = vmatpush2.msra.mxu0 0.0
    %529 = vmatprep.subr.mxu0 0.0
    %530 = vmatpush2.msra.mxu0 0.0
    %531 = vmatprep.subr.mxu0 0.0
    %532 = vmatpush2.msra.mxu0 0.0
    %533 = vmatprep.subr.mxu0 0.0
    %534 = vmatpush2.msra.mxu0 0.0
    %535 = vmatprep.subr.mxu0 0.0
    %536 = vmatpush2.msra.mxu0 0.0
    %537 = vmatprep.mubr.f32.mxu0 0.0
    %538 = vmatmul.mubr.f32.gmra.mxu0 %v296
    %v539 = vpop.f32.mrf.mxu0
    %v540 = vadd.f32 %v471, %v539
    %v541 = vpop.f32.mrf.mxu0
    %542 = vmatprep.mubr.f32.mxu0 0.0
    %543 = vmatmul.mubr.f32.gmra.mxu0 %v299
    %v544 = vpop.f32.mrf.mxu0
    %v545 = vadd.f32 %v471, %v544
    %v546 = vpop.f32.mrf.mxu0
    %547 = vdwg.mxu0
    %v548 = vld [vmem:[%s3] sm:$0x1]
    %v550 = vlaneseq
    %v551 = vshrl.u32 %v550, 7
    %v552 = vsub.s32 0, %v551
    %v553 = vrot.slane %v548, %v552
    %v555 = vmul.f32 %v368, %v553
    %v556 = vmul.f32 %v373, %v553
    %v558 = vsel %vm294, %v555, 0
    %v561 = vsel %vm294, %v556, 0
    %v564 = vsel %vm294, %v454, 0
    %v567 = vsel %vm294, %v459, 0
    %569 = vmatprep.subr.mxu0 0.0
    %570 = vmatpush1.xpose.msra.mxu0 0.0
    %571 = vmatprep.subr.mxu0 0.0
    %572 = vmatpush1.xpose.msra.mxu0 0.0
    %573 = vmatprep.subr.mxu0 0.0
    %574 = vmatpush1.xpose.msra.mxu0 0.0
    %575 = vmatprep.subr.mxu0 0.0
    %576 = vmatpush1.xpose.msra.mxu0 0.0
    %577 = vmatprep.subr.mxu0 0.0
    %578 = vmatpush1.xpose.msra.mxu0 0.0
    %579 = vmatprep.subr.mxu0 0.0
    %580 = vmatpush1.xpose.msra.mxu0 0.0
    %581 = vmatprep.subr.mxu0 0.0
    %582 = vmatpush1.xpose.msra.mxu0 0.0
    %583 = vmatprep.subr.mxu0 0.0
    %584 = vmatpush1.xpose.msra.mxu0 0.0
    %585 = vmatprep.subr.mxu0 0.0
    %586 = vmatpush1.xpose.msra.mxu0 0.0
    %587 = vmatprep.subr.mxu0 0.0
    %588 = vmatpush1.xpose.msra.mxu0 0.0
    %589 = vmatprep.subr.mxu0 0.0
    %590 = vmatpush1.xpose.msra.mxu0 0.0
    %591 = vmatprep.subr.mxu0 0.0
    %592 = vmatpush1.xpose.msra.mxu0 0.0
    %593 = vmatprep.subr.mxu0 0.0
    %594 = vmatpush1.xpose.msra.mxu0 0.0
    %595 = vmatprep.subr.mxu0 0.0
    %596 = vmatpush1.xpose.msra.mxu0 0.0
    %597 = vmatprep.subr.mxu0 0.0
    %598 = vmatpush1.xpose.msra.mxu0 %v567
    %599 = vmatprep.subr.mxu0 0.0
    %600 = vmatpush1.xpose.msra.mxu0 %v564
    %601 = vmatprep.subr.mxu0 0.0
    %602 = vmatpush2.xpose.msra.mxu0 0.0
    %603 = vmatprep.subr.mxu0 0.0
    %604 = vmatpush2.xpose.msra.mxu0 0.0
    %605 = vmatprep.subr.mxu0 0.0
    %606 = vmatpush2.xpose.msra.mxu0 0.0
    %607 = vmatprep.subr.mxu0 0.0
    %608 = vmatpush2.xpose.msra.mxu0 0.0
    %609 = vmatprep.subr.mxu0 0.0
    %610 = vmatpush2.xpose.msra.mxu0 0.0
    %611 = vmatprep.subr.mxu0 0.0
    %612 = vmatpush2.xpose.msra.mxu0 0.0
    %613 = vmatprep.subr.mxu0 0.0
    %614 = vmatpush2.xpose.msra.mxu0 0.0
    %615 = vmatprep.subr.mxu0 0.0
    %616 = vmatpush2.xpose.msra.mxu0 0.0
    %617 = vmatprep.subr.mxu0 0.0
    %618 = vmatpush2.xpose.msra.mxu0 0.0
    %619 = vmatprep.subr.mxu0 0.0
    %620 = vmatpush2.xpose.msra.mxu0 0.0
    %621 = vmatprep.subr.mxu0 0.0
    %622 = vmatpush2.xpose.msra.mxu0 0.0
    %623 = vmatprep.subr.mxu0 0.0
    %624 = vmatpush2.xpose.msra.mxu0 0.0
    %625 = vmatprep.subr.mxu0 0.0
    %626 = vmatpush2.xpose.msra.mxu0 0.0
    %627 = vmatprep.subr.mxu0 0.0
    %628 = vmatpush2.xpose.msra.mxu0 0.0
    %629 = vmatprep.subr.mxu0 0.0
    %630 = vmatpush2.xpose.msra.mxu0 0.0
    %631 = vmatprep.subr.mxu0 0.0
    %632 = vmatpush2.xpose.msra.mxu0 0.0
    %633 = vmatprep.mubr.f32.mxu0 0.0
    %634 = vmatmul.mubr.f32.gmra.mxu0 %v558
    %v635 = vpop.f32.mrf.mxu0
    %v636 = vadd.f32 0.0, %v635
    %v637 = vpop.f32.mrf.mxu0
    %638 = vmatprep.mubr.f32.mxu0 0.0
    %639 = vmatmul.mubr.f32.gmra.mxu0 %v561
    %v640 = vpop.f32.mrf.mxu0
    %v641 = vadd.f32 0.0, %v640
    %v642 = vpop.f32.mrf.mxu0
    %643 = vdwg.mxu0
    %v644 = vmul.f32 %v636, 0.35355338
    %v645 = vmul.f32 %v641, 0.35355338
    %v646 = vadd.f32 %v644, %v281
    %v647 = vadd.f32 %v645, %v282
    %vm648 = vcmask 130048
    %v649 = vsel %vm648, %v646, -inf
    %650 = vmax.xlane.f32.xlu0 %v649
    %v651 = vpop.xlane.xlu0 %650
    %v652 = vsel %vm648, %v647, -inf
    %653 = vmax.xlane.f32.xlu0 %v652
    %v654 = vpop.xlane.xlu0 %653
    %v655 = vsub.f32 %v646, %v651
    %v656 = vsub.f32 %v647, %v654
    %v657 = vmul.f32 %v655, 1.442695
    %v658 = vpow.pop %v657
    %v659 = vmul.f32 %v656, 1.442695
    %v660 = vpow.pop %v659
    %v661 = vsel %vm648, %v658, 0.0
    %662 = vadd.xlane.f32.xlu0 %v661
    %v663 = vpop.xlane.xlu0 %662
    %v664 = vsel %vm648, %v660, 0.0
    %665 = vadd.xlane.f32.xlu0 %v664
    %v666 = vpop.xlane.xlu0 %665
    %v667 = vrcp.pop %v663
    %v668 = vrcp.pop %v666
    %v669 = vmul.f32 %v658, %v667
    %v670 = vmul.f32 %v660, %v668
    %v671 = vmul.f32 %v540, %v553
    %v672 = vmul.f32 %v545, %v553
    %s673 = scalar_lea.vmem %s3, 1
    %v674 = vld [vmem:[%s673] sm:$0x1]
    %v676 = vlaneseq
    %v677 = vshrl.u32 %v676, 7
    %v678 = vsub.s32 0, %v677
    %v679 = vrot.slane %v674, %v678
    %v681 = vmul.f32 %v368, %v679
    %v682 = vmul.f32 %v373, %v679
    %v684 = vsel %vm294, %v681, 0
    %v687 = vsel %vm294, %v682, 0
    %689 = vmatprep.subr.mxu0 0.0
    %690 = vmatpush1.xpose.msra.mxu0 0.0
    %691 = vmatprep.subr.mxu0 0.0
    %692 = vmatpush1.xpose.msra.mxu0 0.0
    %693 = vmatprep.subr.mxu0 0.0
    %694 = vmatpush1.xpose.msra.mxu0 0.0
    %695 = vmatprep.subr.mxu0 0.0
    %696 = vmatpush1.xpose.msra.mxu0 0.0
    %697 = vmatprep.subr.mxu0 0.0
    %698 = vmatpush1.xpose.msra.mxu0 0.0
    %699 = vmatprep.subr.mxu0 0.0
    %700 = vmatpush1.xpose.msra.mxu0 0.0
    %701 = vmatprep.subr.mxu0 0.0
    %702 = vmatpush1.xpose.msra.mxu0 0.0
    %703 = vmatprep.subr.mxu0 0.0
    %704 = vmatpush1.xpose.msra.mxu0 0.0
    %705 = vmatprep.subr.mxu0 0.0
    %706 = vmatpush1.xpose.msra.mxu0 0.0
    %707 = vmatprep.subr.mxu0 0.0
    %708 = vmatpush1.xpose.msra.mxu0 0.0
    %709 = vmatprep.subr.mxu0 0.0
    %710 = vmatpush1.xpose.msra.mxu0 0.0
    %711 = vmatprep.subr.mxu0 0.0
    %712 = vmatpush1.xpose.msra.mxu0 0.0
    %713 = vmatprep.subr.mxu0 0.0
    %714 = vmatpush1.xpose.msra.mxu0 0.0
    %715 = vmatprep.subr.mxu0 0.0
    %716 = vmatpush1.xpose.msra.mxu0 0.0
    %717 = vmatprep.subr.mxu0 0.0
    %718 = vmatpush1.xpose.msra.mxu0 %v567
    %719 = vmatprep.subr.mxu0 0.0
    %720 = vmatpush1.xpose.msra.mxu0 %v564
    %721 = vmatprep.subr.mxu0 0.0
    %722 = vmatpush2.xpose.msra.mxu0 0.0
    %723 = vmatprep.subr.mxu0 0.0
    %724 = vmatpush2.xpose.msra.mxu0 0.0
    %725 = vmatprep.subr.mxu0 0.0
    %726 = vmatpush2.xpose.msra.mxu0 0.0
    %727 = vmatprep.subr.mxu0 0.0
    %728 = vmatpush2.xpose.msra.mxu0 0.0
    %729 = vmatprep.subr.mxu0 0.0
    %730 = vmatpush2.xpose.msra.mxu0 0.0
    %731 = vmatprep.subr.mxu0 0.0
    %732 = vmatpush2.xpose.msra.mxu0 0.0
    %733 = vmatprep.subr.mxu0 0.0
    %734 = vmatpush2.xpose.msra.mxu0 0.0
    %735 = vmatprep.subr.mxu0 0.0
    %736 = vmatpush2.xpose.msra.mxu0 0.0
    %737 = vmatprep.subr.mxu0 0.0
    %738 = vmatpush2.xpose.msra.mxu0 0.0
    %739 = vmatprep.subr.mxu0 0.0
    %740 = vmatpush2.xpose.msra.mxu0 0.0
    %741 = vmatprep.subr.mxu0 0.0
    %742 = vmatpush2.xpose.msra.mxu0 0.0
    %743 = vmatprep.subr.mxu0 0.0
    %744 = vmatpush2.xpose.msra.mxu0 0.0
    %745 = vmatprep.subr.mxu0 0.0
    %746 = vmatpush2.xpose.msra.mxu0 0.0
    %747 = vmatprep.subr.mxu0 0.0
    %748 = vmatpush2.xpose.msra.mxu0 0.0
    %749 = vmatprep.subr.mxu0 0.0
    %750 = vmatpush2.xpose.msra.mxu0 0.0
    %751 = vmatprep.subr.mxu0 0.0
    %752 = vmatpush2.xpose.msra.mxu0 0.0
    %753 = vmatprep.mubr.f32.mxu0 0.0
    %754 = vmatmul.mubr.f32.gmra.mxu0 %v684
    %v755 = vpop.f32.mrf.mxu0
    %v756 = vadd.f32 0.0, %v755
    %v757 = vpop.f32.mrf.mxu0
    %758 = vmatprep.mubr.f32.mxu0 0.0
    %759 = vmatmul.mubr.f32.gmra.mxu0 %v687
    %v760 = vpop.f32.mrf.mxu0
    %v761 = vadd.f32 0.0, %v760
    %v762 = vpop.f32.mrf.mxu0
    %763 = vdwg.mxu0
    %v764 = vmul.f32 %v756, 0.35355338
    %v765 = vmul.f32 %v761, 0.35355338
    %v766 = vadd.f32 %v764, %v281
    %v767 = vadd.f32 %v765, %v282
    %v768 = vsel %vm648, %v766, -inf
    %769 = vmax.xlane.f32.xlu0 %v768
    %v770 = vpop.xlane.xlu0 %769
    %v771 = vsel %vm648, %v767, -inf
    %772 = vmax.xlane.f32.xlu0 %v771
    %v773 = vpop.xlane.xlu0 %772
    %v774 = vsub.f32 %v766, %v770
    %v775 = vsub.f32 %v767, %v773
    %v776 = vmul.f32 %v774, 1.442695
    %v777 = vpow.pop %v776
    %v778 = vmul.f32 %v775, 1.442695
    %v779 = vpow.pop %v778
    %v780 = vsel %vm648, %v777, 0.0
    %781 = vadd.xlane.f32.xlu0 %v780
    %v782 = vpop.xlane.xlu0 %781
    %v783 = vsel %vm648, %v779, 0.0
    %784 = vadd.xlane.f32.xlu0 %v783
    %v785 = vpop.xlane.xlu0 %784
    %v786 = vrcp.pop %v782
    %v787 = vrcp.pop %v785
    %v788 = vmul.f32 %v777, %v786
    %v789 = vmul.f32 %v779, %v787
    %v790 = vmul.f32 %v540, %v679
    %v791 = vmul.f32 %v545, %v679
    %v793 = vsel %vm648, %v788, 0
    %v796 = vsel %vm648, %v789, 0
    %798 = vmatprep.subr.mxu0 0.0
    %799 = vmatpush1.msra.mxu0 0.0
    %800 = vmatprep.subr.mxu0 0.0
    %801 = vmatpush1.msra.mxu0 0.0
    %802 = vmatprep.subr.mxu0 0.0
    %803 = vmatpush1.msra.mxu0 0.0
    %804 = vmatprep.subr.mxu0 0.0
    %805 = vmatpush1.msra.mxu0 0.0
    %806 = vmatprep.subr.mxu0 0.0
    %807 = vmatpush1.msra.mxu0 0.0
    %808 = vmatprep.subr.mxu0 0.0
    %809 = vmatpush1.msra.mxu0 0.0
    %810 = vmatprep.subr.mxu0 0.0
    %811 = vmatpush1.msra.mxu0 0.0
    %812 = vmatprep.subr.mxu0 0.0
    %813 = vmatpush1.msra.mxu0 0.0
    %814 = vmatprep.subr.mxu0 0.0
    %815 = vmatpush1.msra.mxu0 0.0
    %816 = vmatprep.subr.mxu0 0.0
    %817 = vmatpush1.msra.mxu0 0.0
    %818 = vmatprep.subr.mxu0 0.0
    %819 = vmatpush1.msra.mxu0 0.0
    %820 = vmatprep.subr.mxu0 0.0
    %821 = vmatpush1.msra.mxu0 0.0
    %822 = vmatprep.subr.mxu0 0.0
    %823 = vmatpush1.msra.mxu0 0.0
    %824 = vmatprep.subr.mxu0 0.0
    %825 = vmatpush1.msra.mxu0 0.0
    %826 = vmatprep.subr.mxu0 0.0
    %827 = vmatpush1.msra.mxu0 %v791
    %828 = vmatprep.subr.mxu0 0.0
    %829 = vmatpush1.msra.mxu0 %v790
    %830 = vmatprep.subr.mxu0 0.0
    %831 = vmatpush2.msra.mxu0 0.0
    %832 = vmatprep.subr.mxu0 0.0
    %833 = vmatpush2.msra.mxu0 0.0
    %834 = vmatprep.subr.mxu0 0.0
    %835 = vmatpush2.msra.mxu0 0.0
    %836 = vmatprep.subr.mxu0 0.0
    %837 = vmatpush2.msra.mxu0 0.0
    %838 = vmatprep.subr.mxu0 0.0
    %839 = vmatpush2.msra.mxu0 0.0
    %840 = vmatprep.subr.mxu0 0.0
    %841 = vmatpush2.msra.mxu0 0.0
    %842 = vmatprep.subr.mxu0 0.0
    %843 = vmatpush2.msra.mxu0 0.0
    %844 = vmatprep.subr.mxu0 0.0
    %845 = vmatpush2.msra.mxu0 0.0
    %846 = vmatprep.subr.mxu0 0.0
    %847 = vmatpush2.msra.mxu0 0.0
    %848 = vmatprep.subr.mxu0 0.0
    %849 = vmatpush2.msra.mxu0 0.0
    %850 = vmatprep.subr.mxu0 0.0
    %851 = vmatpush2.msra.mxu0 0.0
    %852 = vmatprep.subr.mxu0 0.0
    %853 = vmatpush2.msra.mxu0 0.0
    %854 = vmatprep.subr.mxu0 0.0
    %855 = vmatpush2.msra.mxu0 0.0
    %856 = vmatprep.subr.mxu0 0.0
    %857 = vmatpush2.msra.mxu0 0.0
    %858 = vmatprep.subr.mxu0 0.0
    %859 = vmatpush2.msra.mxu0 0.0
    %860 = vmatprep.subr.mxu0 0.0
    %861 = vmatpush2.msra.mxu0 0.0
    %862 = vmatprep.mubr.f32.mxu0 0.0
    %863 = vmatmul.mubr.f32.gmra.mxu0 %v793
    %v864 = vpop.f32.mrf.mxu0
    %v865 = vadd.f32 0.0, %v864
    %v866 = vpop.f32.mrf.mxu0
    %867 = vmatprep.mubr.f32.mxu0 0.0
    %868 = vmatmul.mubr.f32.gmra.mxu0 %v796
    %v869 = vpop.f32.mrf.mxu0
    %v870 = vadd.f32 0.0, %v869
    %v871 = vpop.f32.mrf.mxu0
    %872 = vdwg.mxu0
    %v874 = vsel %vm648, %v669, 0
    %v877 = vsel %vm648, %v670, 0
    %879 = vmatprep.subr.mxu0 0.0
    %880 = vmatpush1.msra.mxu0 0.0
    %881 = vmatprep.subr.mxu0 0.0
    %882 = vmatpush1.msra.mxu0 0.0
    %883 = vmatprep.subr.mxu0 0.0
    %884 = vmatpush1.msra.mxu0 0.0
    %885 = vmatprep.subr.mxu0 0.0
    %886 = vmatpush1.msra.mxu0 0.0
    %887 = vmatprep.subr.mxu0 0.0
    %888 = vmatpush1.msra.mxu0 0.0
    %889 = vmatprep.subr.mxu0 0.0
    %890 = vmatpush1.msra.mxu0 0.0
    %891 = vmatprep.subr.mxu0 0.0
    %892 = vmatpush1.msra.mxu0 0.0
    %893 = vmatprep.subr.mxu0 0.0
    %894 = vmatpush1.msra.mxu0 0.0
    %895 = vmatprep.subr.mxu0 0.0
    %896 = vmatpush1.msra.mxu0 0.0
    %897 = vmatprep.subr.mxu0 0.0
    %898 = vmatpush1.msra.mxu0 0.0
    %899 = vmatprep.subr.mxu0 0.0
    %900 = vmatpush1.msra.mxu0 0.0
    %901 = vmatprep.subr.mxu0 0.0
    %902 = vmatpush1.msra.mxu0 0.0
    %903 = vmatprep.subr.mxu0 0.0
    %904 = vmatpush1.msra.mxu0 0.0
    %905 = vmatprep.subr.mxu0 0.0
    %906 = vmatpush1.msra.mxu0 0.0
    %907 = vmatprep.subr.mxu0 0.0
    %908 = vmatpush1.msra.mxu0 %v672
    %909 = vmatprep.subr.mxu0 0.0
    %910 = vmatpush1.msra.mxu0 %v671
    %911 = vmatprep.subr.mxu0 0.0
    %912 = vmatpush2.msra.mxu0 0.0
    %913 = vmatprep.subr.mxu0 0.0
    %914 = vmatpush2.msra.mxu0 0.0
    %915 = vmatprep.subr.mxu0 0.0
    %916 = vmatpush2.msra.mxu0 0.0
    %917 = vmatprep.subr.mxu0 0.0
    %918 = vmatpush2.msra.mxu0 0.0
    %919 = vmatprep.subr.mxu0 0.0
    %920 = vmatpush2.msra.mxu0 0.0
    %921 = vmatprep.subr.mxu0 0.0
    %922 = vmatpush2.msra.mxu0 0.0
    %923 = vmatprep.subr.mxu0 0.0
    %924 = vmatpush2.msra.mxu0 0.0
    %925 = vmatprep.subr.mxu0 0.0
    %926 = vmatpush2.msra.mxu0 0.0
    %927 = vmatprep.subr.mxu0 0.0
    %928 = vmatpush2.msra.mxu0 0.0
    %929 = vmatprep.subr.mxu0 0.0
    %930 = vmatpush2.msra.mxu0 0.0
    %931 = vmatprep.subr.mxu0 0.0
    %932 = vmatpush2.msra.mxu0 0.0
    %933 = vmatprep.subr.mxu0 0.0
    %934 = vmatpush2.msra.mxu0 0.0
    %935 = vmatprep.subr.mxu0 0.0
    %936 = vmatpush2.msra.mxu0 0.0
    %937 = vmatprep.subr.mxu0 0.0
    %938 = vmatpush2.msra.mxu0 0.0
    %939 = vmatprep.subr.mxu0 0.0
    %940 = vmatpush2.msra.mxu0 0.0
    %941 = vmatprep.subr.mxu0 0.0
    %942 = vmatpush2.msra.mxu0 0.0
    %943 = vmatprep.mubr.f32.mxu0 0.0
    %944 = vmatmul.mubr.f32.gmra.mxu0 %v874
    %v945 = vpop.f32.mrf.mxu0
    %v946 = vadd.f32 %v865, %v945
    %v947 = vpop.f32.mrf.mxu0
    %948 = vmatprep.mubr.f32.mxu0 0.0
    %949 = vmatmul.mubr.f32.gmra.mxu0 %v877
    %v950 = vpop.f32.mrf.mxu0
    %v951 = vadd.f32 %v870, %v950
    %v952 = vpop.f32.mrf.mxu0
    %953 = vdwg.mxu0
    %s954 = scalar_lea.vmem %s3, 2
    %v955 = vld [vmem:[%s954] sm:$0x1]
    %v957 = vlaneseq
    %v958 = vshrl.u32 %v957, 7
    %v959 = vsub.s32 0, %v958
    %v960 = vrot.slane %v955, %v959
    %v962 = vmul.f32 %v368, %v960
    %v963 = vmul.f32 %v373, %v960
    %v965 = vsel %vm294, %v962, 0
    %v968 = vsel %vm294, %v963, 0
    %970 = vmatprep.subr.mxu0 0.0
    %971 = vmatpush1.xpose.msra.mxu0 0.0
    %972 = vmatprep.subr.mxu0 0.0
    %973 = vmatpush1.xpose.msra.mxu0 0.0
    %974 = vmatprep.subr.mxu0 0.0
    %975 = vmatpush1.xpose.msra.mxu0 0.0
    %976 = vmatprep.subr.mxu0 0.0
    %977 = vmatpush1.xpose.msra.mxu0 0.0
    %978 = vmatprep.subr.mxu0 0.0
    %979 = vmatpush1.xpose.msra.mxu0 0.0
    %980 = vmatprep.subr.mxu0 0.0
    %981 = vmatpush1.xpose.msra.mxu0 0.0
    %982 = vmatprep.subr.mxu0 0.0
    %983 = vmatpush1.xpose.msra.mxu0 0.0
    %984 = vmatprep.subr.mxu0 0.0
    %985 = vmatpush1.xpose.msra.mxu0 0.0
    %986 = vmatprep.subr.mxu0 0.0
    %987 = vmatpush1.xpose.msra.mxu0 0.0
    %988 = vmatprep.subr.mxu0 0.0
    %989 = vmatpush1.xpose.msra.mxu0 0.0
    %990 = vmatprep.subr.mxu0 0.0
    %991 = vmatpush1.xpose.msra.mxu0 0.0
    %992 = vmatprep.subr.mxu0 0.0
    %993 = vmatpush1.xpose.msra.mxu0 0.0
    %994 = vmatprep.subr.mxu0 0.0
    %995 = vmatpush1.xpose.msra.mxu0 0.0
    %996 = vmatprep.subr.mxu0 0.0
    %997 = vmatpush1.xpose.msra.mxu0 0.0
    %998 = vmatprep.subr.mxu0 0.0
    %999 = vmatpush1.xpose.msra.mxu0 %v567
    %1000 = vmatprep.subr.mxu0 0.0
    %1001 = vmatpush1.xpose.msra.mxu0 %v564
    %1002 = vmatprep.subr.mxu0 0.0
    %1003 = vmatpush2.xpose.msra.mxu0 0.0
    %1004 = vmatprep.subr.mxu0 0.0
    %1005 = vmatpush2.xpose.msra.mxu0 0.0
    %1006 = vmatprep.subr.mxu0 0.0
    %1007 = vmatpush2.xpose.msra.mxu0 0.0
    %1008 = vmatprep.subr.mxu0 0.0
    %1009 = vmatpush2.xpose.msra.mxu0 0.0
    %1010 = vmatprep.subr.mxu0 0.0
    %1011 = vmatpush2.xpose.msra.mxu0 0.0
    %1012 = vmatprep.subr.mxu0 0.0
    %1013 = vmatpush2.xpose.msra.mxu0 0.0
    %1014 = vmatprep.subr.mxu0 0.0
    %1015 = vmatpush2.xpose.msra.mxu0 0.0
    %1016 = vmatprep.subr.mxu0 0.0
    %1017 = vmatpush2.xpose.msra.mxu0 0.0
    %1018 = vmatprep.subr.mxu0 0.0
    %1019 = vmatpush2.xpose.msra.mxu0 0.0
    %1020 = vmatprep.subr.mxu0 0.0
    %1021 = vmatpush2.xpose.msra.mxu0 0.0
    %1022 = vmatprep.subr.mxu0 0.0
    %1023 = vmatpush2.xpose.msra.mxu0 0.0
    %1024 = vmatprep.subr.mxu0 0.0
    %1025 = vmatpush2.xpose.msra.mxu0 0.0
    %1026 = vmatprep.subr.mxu0 0.0
    %1027 = vmatpush2.xpose.msra.mxu0 0.0
    %1028 = vmatprep.subr.mxu0 0.0
    %1029 = vmatpush2.xpose.msra.mxu0 0.0
    %1030 = vmatprep.subr.mxu0 0.0
    %1031 = vmatpush2.xpose.msra.mxu0 0.0
    %1032 = vmatprep.subr.mxu0 0.0
    %1033 = vmatpush2.xpose.msra.mxu0 0.0
    %1034 = vmatprep.mubr.f32.mxu0 0.0
    %1035 = vmatmul.mubr.f32.gmra.mxu0 %v965
    %v1036 = vpop.f32.mrf.mxu0
    %v1037 = vadd.f32 0.0, %v1036
    %v1038 = vpop.f32.mrf.mxu0
    %1039 = vmatprep.mubr.f32.mxu0 0.0
    %1040 = vmatmul.mubr.f32.gmra.mxu0 %v968
    %v1041 = vpop.f32.mrf.mxu0
    %v1042 = vadd.f32 0.0, %v1041
    %v1043 = vpop.f32.mrf.mxu0
    %1044 = vdwg.mxu0
    %v1045 = vmul.f32 %v1037, 0.35355338
    %v1046 = vmul.f32 %v1042, 0.35355338
    %v1047 = vadd.f32 %v1045, %v281
    %v1048 = vadd.f32 %v1046, %v282
    %v1049 = vsel %vm648, %v1047, -inf
    %1050 = vmax.xlane.f32.xlu0 %v1049
    %v1051 = vpop.xlane.xlu0 %1050
    %v1052 = vsel %vm648, %v1048, -inf
    %1053 = vmax.xlane.f32.xlu0 %v1052
    %v1054 = vpop.xlane.xlu0 %1053
    %v1055 = vsub.f32 %v1047, %v1051
    %v1056 = vsub.f32 %v1048, %v1054
    %v1057 = vmul.f32 %v1055, 1.442695
    %v1058 = vpow.pop %v1057
    %v1059 = vmul.f32 %v1056, 1.442695
    %v1060 = vpow.pop %v1059
    %v1061 = vsel %vm648, %v1058, 0.0
    %1062 = vadd.xlane.f32.xlu0 %v1061
    %v1063 = vpop.xlane.xlu0 %1062
    %v1064 = vsel %vm648, %v1060, 0.0
    %1065 = vadd.xlane.f32.xlu0 %v1064
    %v1066 = vpop.xlane.xlu0 %1065
    %v1067 = vrcp.pop %v1063
    %v1068 = vrcp.pop %v1066
    %v1069 = vmul.f32 %v1058, %v1067
    %v1070 = vmul.f32 %v1060, %v1068
    %v1071 = vmul.f32 %v540, %v960
    %v1072 = vmul.f32 %v545, %v960
    %v1074 = vsel %vm648, %v1069, 0
    %v1077 = vsel %vm648, %v1070, 0
    %1079 = vmatprep.subr.mxu0 0.0
    %1080 = vmatpush1.msra.mxu0 0.0
    %1081 = vmatprep.subr.mxu0 0.0
    %1082 = vmatpush1.msra.mxu0 0.0
    %1083 = vmatprep.subr.mxu0 0.0
    %1084 = vmatpush1.msra.mxu0 0.0
    %1085 = vmatprep.subr.mxu0 0.0
    %1086 = vmatpush1.msra.mxu0 0.0
    %1087 = vmatprep.subr.mxu0 0.0
    %1088 = vmatpush1.msra.mxu0 0.0
    %1089 = vmatprep.subr.mxu0 0.0
    %1090 = vmatpush1.msra.mxu0 0.0
    %1091 = vmatprep.subr.mxu0 0.0
    %1092 = vmatpush1.msra.mxu0 0.0
    %1093 = vmatprep.subr.mxu0 0.0
    %1094 = vmatpush1.msra.mxu0 0.0
    %1095 = vmatprep.subr.mxu0 0.0
    %1096 = vmatpush1.msra.mxu0 0.0
    %1097 = vmatprep.subr.mxu0 0.0
    %1098 = vmatpush1.msra.mxu0 0.0
    %1099 = vmatprep.subr.mxu0 0.0
    %1100 = vmatpush1.msra.mxu0 0.0
    %1101 = vmatprep.subr.mxu0 0.0
    %1102 = vmatpush1.msra.mxu0 0.0
    %1103 = vmatprep.subr.mxu0 0.0
    %1104 = vmatpush1.msra.mxu0 0.0
    %1105 = vmatprep.subr.mxu0 0.0
    %1106 = vmatpush1.msra.mxu0 0.0
    %1107 = vmatprep.subr.mxu0 0.0
    %1108 = vmatpush1.msra.mxu0 %v1072
    %1109 = vmatprep.subr.mxu0 0.0
    %1110 = vmatpush1.msra.mxu0 %v1071
    %1111 = vmatprep.subr.mxu0 0.0
    %1112 = vmatpush2.msra.mxu0 0.0
    %1113 = vmatprep.subr.mxu0 0.0
    %1114 = vmatpush2.msra.mxu0 0.0
    %1115 = vmatprep.subr.mxu0 0.0
    %1116 = vmatpush2.msra.mxu0 0.0
    %1117 = vmatprep.subr.mxu0 0.0
    %1118 = vmatpush2.msra.mxu0 0.0
    %1119 = vmatprep.subr.mxu0 0.0
    %1120 = vmatpush2.msra.mxu0 0.0
    %1121 = vmatprep.subr.mxu0 0.0
    %1122 = vmatpush2.msra.mxu0 0.0
    %1123 = vmatprep.subr.mxu0 0.0
    %1124 = vmatpush2.msra.mxu0 0.0
    %1125 = vmatprep.subr.mxu0 0.0
    %1126 = vmatpush2.msra.mxu0 0.0
    %1127 = vmatprep.subr.mxu0 0.0
    %1128 = vmatpush2.msra.mxu0 0.0
    %1129 = vmatprep.subr.mxu0 0.0
    %1130 = vmatpush2.msra.mxu0 0.0
    %1131 = vmatprep.subr.mxu0 0.0
    %1132 = vmatpush2.msra.mxu0 0.0
    %1133 = vmatprep.subr.mxu0 0.0
    %1134 = vmatpush2.msra.mxu0 0.0
    %1135 = vmatprep.subr.mxu0 0.0
    %1136 = vmatpush2.msra.mxu0 0.0
    %1137 = vmatprep.subr.mxu0 0.0
    %1138 = vmatpush2.msra.mxu0 0.0
    %1139 = vmatprep.subr.mxu0 0.0
    %1140 = vmatpush2.msra.mxu0 0.0
    %1141 = vmatprep.subr.mxu0 0.0
    %1142 = vmatpush2.msra.mxu0 0.0
    %1143 = vmatprep.mubr.f32.mxu0 0.0
    %1144 = vmatmul.mubr.f32.gmra.mxu0 %v1074
    %v1145 = vpop.f32.mrf.mxu0
    %v1146 = vadd.f32 0.0, %v1145
    %v1147 = vpop.f32.mrf.mxu0
    %1148 = vmatprep.mubr.f32.mxu0 0.0
    %1149 = vmatmul.mubr.f32.gmra.mxu0 %v1077
    %v1150 = vpop.f32.mrf.mxu0
    %v1151 = vadd.f32 0.0, %v1150
    %v1152 = vpop.f32.mrf.mxu0
    %1153 = vdwg.mxu0
    %v1154 = vadd.f32 %v946, %v1146
    %v1155 = vadd.f32 %v951, %v1151
    %s1156 = scalar_lea.vmem %s3, 3
    %v1157 = vld [vmem:[%s1156] sm:$0x1]
    %v1159 = vlaneseq
    %v1160 = vshrl.u32 %v1159, 7
    %v1161 = vsub.s32 0, %v1160
    %v1162 = vrot.slane %v1157, %v1161
    %v1164 = vmul.f32 %v368, %v1162
    %v1165 = vmul.f32 %v373, %v1162
    %v1167 = vsel %vm294, %v1164, 0
    %v1170 = vsel %vm294, %v1165, 0
    %1172 = vmatprep.subr.mxu0 0.0
    %1173 = vmatpush1.xpose.msra.mxu0 0.0
    %1174 = vmatprep.subr.mxu0 0.0
    %1175 = vmatpush1.xpose.msra.mxu0 0.0
    %1176 = vmatprep.subr.mxu0 0.0
    %1177 = vmatpush1.xpose.msra.mxu0 0.0
    %1178 = vmatprep.subr.mxu0 0.0
    %1179 = vmatpush1.xpose.msra.mxu0 0.0
    %1180 = vmatprep.subr.mxu0 0.0
    %1181 = vmatpush1.xpose.msra.mxu0 0.0
    %1182 = vmatprep.subr.mxu0 0.0
    %1183 = vmatpush1.xpose.msra.mxu0 0.0
    %1184 = vmatprep.subr.mxu0 0.0
    %1185 = vmatpush1.xpose.msra.mxu0 0.0
    %1186 = vmatprep.subr.mxu0 0.0
    %1187 = vmatpush1.xpose.msra.mxu0 0.0
    %1188 = vmatprep.subr.mxu0 0.0
    %1189 = vmatpush1.xpose.msra.mxu0 0.0
    %1190 = vmatprep.subr.mxu0 0.0
    %1191 = vmatpush1.xpose.msra.mxu0 0.0
    %1192 = vmatprep.subr.mxu0 0.0
    %1193 = vmatpush1.xpose.msra.mxu0 0.0
    %1194 = vmatprep.subr.mxu0 0.0
    %1195 = vmatpush1.xpose.msra.mxu0 0.0
    %1196 = vmatprep.subr.mxu0 0.0
    %1197 = vmatpush1.xpose.msra.mxu0 0.0
    %1198 = vmatprep.subr.mxu0 0.0
    %1199 = vmatpush1.xpose.msra.mxu0 0.0
    %1200 = vmatprep.subr.mxu0 0.0
    %1201 = vmatpush1.xpose.msra.mxu0 %v567
    %1202 = vmatprep.subr.mxu0 0.0
    %1203 = vmatpush1.xpose.msra.mxu0 %v564
    %1204 = vmatprep.subr.mxu0 0.0
    %1205 = vmatpush2.xpose.msra.mxu0 0.0
    %1206 = vmatprep.subr.mxu0 0.0
    %1207 = vmatpush2.xpose.msra.mxu0 0.0
    %1208 = vmatprep.subr.mxu0 0.0
    %1209 = vmatpush2.xpose.msra.mxu0 0.0
    %1210 = vmatprep.subr.mxu0 0.0
    %1211 = vmatpush2.xpose.msra.mxu0 0.0
    %1212 = vmatprep.subr.mxu0 0.0
    %1213 = vmatpush2.xpose.msra.mxu0 0.0
    %1214 = vmatprep.subr.mxu0 0.0
    %1215 = vmatpush2.xpose.msra.mxu0 0.0
    %1216 = vmatprep.subr.mxu0 0.0
    %1217 = vmatpush2.xpose.msra.mxu0 0.0
    %1218 = vmatprep.subr.mxu0 0.0
    %1219 = vmatpush2.xpose.msra.mxu0 0.0
    %1220 = vmatprep.subr.mxu0 0.0
    %1221 = vmatpush2.xpose.msra.mxu0 0.0
    %1222 = vmatprep.subr.mxu0 0.0
    %1223 = vmatpush2.xpose.msra.mxu0 0.0
    %1224 = vmatprep.subr.mxu0 0.0
    %1225 = vmatpush2.xpose.msra.mxu0 0.0
    %1226 = vmatprep.subr.mxu0 0.0
    %1227 = vmatpush2.xpose.msra.mxu0 0.0
    %1228 = vmatprep.subr.mxu0 0.0
    %1229 = vmatpush2.xpose.msra.mxu0 0.0
    %1230 = vmatprep.subr.mxu0 0.0
    %1231 = vmatpush2.xpose.msra.mxu0 0.0
    %1232 = vmatprep.subr.mxu0 0.0
    %1233 = vmatpush2.xpose.msra.mxu0 0.0
    %1234 = vmatprep.subr.mxu0 0.0
    %1235 = vmatpush2.xpose.msra.mxu0 0.0
    %1236 = vmatprep.mubr.f32.mxu0 0.0
    %1237 = vmatmul.mubr.f32.gmra.mxu0 %v1167
    %v1238 = vpop.f32.mrf.mxu0
    %v1239 = vadd.f32 0.0, %v1238
    %v1240 = vpop.f32.mrf.mxu0
    %1241 = vmatprep.mubr.f32.mxu0 0.0
    %1242 = vmatmul.mubr.f32.gmra.mxu0 %v1170
    %v1243 = vpop.f32.mrf.mxu0
    %v1244 = vadd.f32 0.0, %v1243
    %v1245 = vpop.f32.mrf.mxu0
    %1246 = vdwg.mxu0
    %v1247 = vmul.f32 %v1239, 0.35355338
    %v1248 = vmul.f32 %v1244, 0.35355338
    %v1249 = vadd.f32 %v1247, %v281
    %v1250 = vadd.f32 %v1248, %v282
    %v1251 = vsel %vm648, %v1249, -inf
    %1252 = vmax.xlane.f32.xlu0 %v1251
    %v1253 = vpop.xlane.xlu0 %1252
    %v1254 = vsel %vm648, %v1250, -inf
    %1255 = vmax.xlane.f32.xlu0 %v1254
    %v1256 = vpop.xlane.xlu0 %1255
    %v1257 = vsub.f32 %v1249, %v1253
    %v1258 = vsub.f32 %v1250, %v1256
    %v1259 = vmul.f32 %v1257, 1.442695
    %v1260 = vpow.pop %v1259
    %v1261 = vmul.f32 %v1258, 1.442695
    %v1262 = vpow.pop %v1261
    %v1263 = vsel %vm648, %v1260, 0.0
    %1264 = vadd.xlane.f32.xlu0 %v1263
    %v1265 = vpop.xlane.xlu0 %1264
    %v1266 = vsel %vm648, %v1262, 0.0
    %1267 = vadd.xlane.f32.xlu0 %v1266
    %v1268 = vpop.xlane.xlu0 %1267
    %v1269 = vrcp.pop %v1265
    %v1270 = vrcp.pop %v1268
    %v1271 = vmul.f32 %v1260, %v1269
    %v1272 = vmul.f32 %v1262, %v1270
    %v1273 = vmul.f32 %v540, %v1162
    %v1274 = vmul.f32 %v545, %v1162
    %v1276 = vsel %vm648, %v1271, 0
    %v1279 = vsel %vm648, %v1272, 0
    %1281 = vmatprep.subr.mxu0 0.0
    %1282 = vmatpush1.msra.mxu0 0.0
    %1283 = vmatprep.subr.mxu0 0.0
    %1284 = vmatpush1.msra.mxu0 0.0
    %1285 = vmatprep.subr.mxu0 0.0
    %1286 = vmatpush1.msra.mxu0 0.0
    %1287 = vmatprep.subr.mxu0 0.0
    %1288 = vmatpush1.msra.mxu0 0.0
    %1289 = vmatprep.subr.mxu0 0.0
    %1290 = vmatpush1.msra.mxu0 0.0
    %1291 = vmatprep.subr.mxu0 0.0
    %1292 = vmatpush1.msra.mxu0 0.0
    %1293 = vmatprep.subr.mxu0 0.0
    %1294 = vmatpush1.msra.mxu0 0.0
    %1295 = vmatprep.subr.mxu0 0.0
    %1296 = vmatpush1.msra.mxu0 0.0
    %1297 = vmatprep.subr.mxu0 0.0
    %1298 = vmatpush1.msra.mxu0 0.0
    %1299 = vmatprep.subr.mxu0 0.0
    %1300 = vmatpush1.msra.mxu0 0.0
    %1301 = vmatprep.subr.mxu0 0.0
    %1302 = vmatpush1.msra.mxu0 0.0
    %1303 = vmatprep.subr.mxu0 0.0
    %1304 = vmatpush1.msra.mxu0 0.0
    %1305 = vmatprep.subr.mxu0 0.0
    %1306 = vmatpush1.msra.mxu0 0.0
    %1307 = vmatprep.subr.mxu0 0.0
    %1308 = vmatpush1.msra.mxu0 0.0
    %1309 = vmatprep.subr.mxu0 0.0
    %1310 = vmatpush1.msra.mxu0 %v1274
    %1311 = vmatprep.subr.mxu0 0.0
    %1312 = vmatpush1.msra.mxu0 %v1273
    %1313 = vmatprep.subr.mxu0 0.0
    %1314 = vmatpush2.msra.mxu0 0.0
    %1315 = vmatprep.subr.mxu0 0.0
    %1316 = vmatpush2.msra.mxu0 0.0
    %1317 = vmatprep.subr.mxu0 0.0
    %1318 = vmatpush2.msra.mxu0 0.0
    %1319 = vmatprep.subr.mxu0 0.0
    %1320 = vmatpush2.msra.mxu0 0.0
    %1321 = vmatprep.subr.mxu0 0.0
    %1322 = vmatpush2.msra.mxu0 0.0
    %1323 = vmatprep.subr.mxu0 0.0
    %1324 = vmatpush2.msra.mxu0 0.0
    %1325 = vmatprep.subr.mxu0 0.0
    %1326 = vmatpush2.msra.mxu0 0.0
    %1327 = vmatprep.subr.mxu0 0.0
    %1328 = vmatpush2.msra.mxu0 0.0
    %1329 = vmatprep.subr.mxu0 0.0
    %1330 = vmatpush2.msra.mxu0 0.0
    %1331 = vmatprep.subr.mxu0 0.0
    %1332 = vmatpush2.msra.mxu0 0.0
    %1333 = vmatprep.subr.mxu0 0.0
    %1334 = vmatpush2.msra.mxu0 0.0
    %1335 = vmatprep.subr.mxu0 0.0
    %1336 = vmatpush2.msra.mxu0 0.0
    %1337 = vmatprep.subr.mxu0 0.0
    %1338 = vmatpush2.msra.mxu0 0.0
    %1339 = vmatprep.subr.mxu0 0.0
    %1340 = vmatpush2.msra.mxu0 0.0
    %1341 = vmatprep.subr.mxu0 0.0
    %1342 = vmatpush2.msra.mxu0 0.0
    %1343 = vmatprep.subr.mxu0 0.0
    %1344 = vmatpush2.msra.mxu0 0.0
    %1345 = vmatprep.mubr.f32.mxu0 0.0
    %1346 = vmatmul.mubr.f32.gmra.mxu0 %v1276
    %v1347 = vpop.f32.mrf.mxu0
    %v1348 = vadd.f32 0.0, %v1347
    %v1349 = vpop.f32.mrf.mxu0
    %1350 = vmatprep.mubr.f32.mxu0 0.0
    %1351 = vmatmul.mubr.f32.gmra.mxu0 %v1279
    %v1352 = vpop.f32.mrf.mxu0
    %v1353 = vadd.f32 0.0, %v1352
    %v1354 = vpop.f32.mrf.mxu0
    %1355 = vdwg.mxu0
    %v1356 = vadd.f32 %v1154, %v1348
    %v1357 = vadd.f32 %v1155, %v1353
    %v1358 = vld [vmem:[#allocation11] sm:$0xff]
    %v1359 = vld [vmem:[#allocation11 + $0x8] sm:$0xff]
    %v1360 = vld [vmem:[#allocation11 + $0x10] sm:$0xff]
    %v1361 = vld [vmem:[#allocation11 + $0x18] sm:$0xff]
    %v1362 = vld [vmem:[%s13] sm:$0x1]
    %v1364 = vlaneseq
    %v1365 = vshrl.u32 %v1364, 7
    %v1366 = vsub.s32 0, %v1365
    %v1367 = vrot.slane %v1362, %v1366
    %v1370 = vsel %vm294, %v1356, 0
    %v1373 = vsel %vm294, %v1357, 0
    %1375 = vmatprep.subr.mxu0 0.0
    %1376 = vmatpush1.msra.mxu0 0.0
    %1377 = vmatprep.subr.mxu0 0.0
    %1378 = vmatpush1.msra.mxu0 0.0
    %1379 = vmatprep.subr.mxu0 0.0
    %1380 = vmatpush1.msra.mxu0 0.0
    %1381 = vmatprep.subr.mxu0 0.0
    %1382 = vmatpush1.msra.mxu0 0.0
    %1383 = vmatprep.subr.mxu0 0.0
    %1384 = vmatpush1.msra.mxu0 0.0
    %1385 = vmatprep.subr.mxu0 0.0
    %1386 = vmatpush1.msra.mxu0 0.0
    %1387 = vmatprep.subr.mxu0 0.0
    %1388 = vmatpush1.msra.mxu0 0.0
    %1389 = vmatprep.subr.mxu0 0.0
    %1390 = vmatpush1.msra.mxu0 0.0
    %1391 = vmatprep.subr.mxu0 0.0
    %1392 = vmatpush1.msra.mxu0 0.0
    %1393 = vmatprep.subr.mxu0 0.0
    %1394 = vmatpush1.msra.mxu0 0.0
    %1395 = vmatprep.subr.mxu0 0.0
    %1396 = vmatpush1.msra.mxu0 0.0
    %1397 = vmatprep.subr.mxu0 0.0
    %1398 = vmatpush1.msra.mxu0 0.0
    %1399 = vmatprep.subr.mxu0 0.0
    %1400 = vmatpush1.msra.mxu0 %v1361
    %1401 = vmatprep.subr.mxu0 0.0
    %1402 = vmatpush1.msra.mxu0 %v1360
    %1403 = vmatprep.subr.mxu0 0.0
    %1404 = vmatpush1.msra.mxu0 %v1359
    %1405 = vmatprep.subr.mxu0 0.0
    %1406 = vmatpush1.msra.mxu0 %v1358
    %1407 = vmatprep.subr.mxu0 0.0
    %1408 = vmatpush2.msra.mxu0 0.0
    %1409 = vmatprep.subr.mxu0 0.0
    %1410 = vmatpush2.msra.mxu0 0.0
    %1411 = vmatprep.subr.mxu0 0.0
    %1412 = vmatpush2.msra.mxu0 0.0
    %1413 = vmatprep.subr.mxu0 0.0
    %1414 = vmatpush2.msra.mxu0 0.0
    %1415 = vmatprep.subr.mxu0 0.0
    %1416 = vmatpush2.msra.mxu0 0.0
    %1417 = vmatprep.subr.mxu0 0.0
    %1418 = vmatpush2.msra.mxu0 0.0
    %1419 = vmatprep.subr.mxu0 0.0
    %1420 = vmatpush2.msra.mxu0 0.0
    %1421 = vmatprep.subr.mxu0 0.0
    %1422 = vmatpush2.msra.mxu0 0.0
    %1423 = vmatprep.subr.mxu0 0.0
    %1424 = vmatpush2.msra.mxu0 0.0
    %1425 = vmatprep.subr.mxu0 0.0
    %1426 = vmatpush2.msra.mxu0 0.0
    %1427 = vmatprep.subr.mxu0 0.0
    %1428 = vmatpush2.msra.mxu0 0.0
    %1429 = vmatprep.subr.mxu0 0.0
    %1430 = vmatpush2.msra.mxu0 0.0
    %1431 = vmatprep.subr.mxu0 0.0
    %1432 = vmatpush2.msra.mxu0 0.0
    %1433 = vmatprep.subr.mxu0 0.0
    %1434 = vmatpush2.msra.mxu0 0.0
    %1435 = vmatprep.subr.mxu0 0.0
    %1436 = vmatpush2.msra.mxu0 0.0
    %1437 = vmatprep.subr.mxu0 0.0
    %1438 = vmatpush2.msra.mxu0 0.0
    %1439 = vmatprep.mubr.f32.mxu0 0.0
    %1440 = vmatmul.mubr.f32.gmra.mxu0 %v1370
    %v1441 = vpop.f32.mrf.mxu0
    %v1442 = vadd.f32 %v1367, %v1441
    %v1443 = vpop.f32.mrf.mxu0
    %1444 = vmatprep.mubr.f32.mxu0 0.0
    %1445 = vmatmul.mubr.f32.gmra.mxu0 %v1373
    %v1446 = vpop.f32.mrf.mxu0
    %v1447 = vadd.f32 %v1367, %v1446
    %v1448 = vpop.f32.mrf.mxu0
    %1449 = vdwg.mxu0
    %v1450 = vadd.f32 %v279, %v1442
    %v1451 = vadd.f32 %v280, %v1447
    %v1452 = vld [vmem:[%s14] sm:$0x1]
    %v1453 = vld [vmem:[%s15] sm:$0x1]
    %v1454 = vsel %vm294, %v1450, 0.0
    %1455 = vadd.xlane.f32.xlu0 %v1454
    %v1456 = vpop.xlane.xlu0 %1455
    %v1457 = vsel %vm294, %v1451, 0.0
    %1458 = vadd.xlane.f32.xlu0 %v1457
    %v1459 = vpop.xlane.xlu0 %1458
    %v1460 = vrcp.pop 32.0
    %v1461 = vmul.f32 %v1456, %v1460
    %v1462 = vmul.f32 %v1459, %v1460
    %v1463 = vsub.f32 %v1450, %v1461
    %v1464 = vsub.f32 %v1451, %v1462
    %v1465 = vmul.f32 %v1463, %v1463
    %v1466 = vmul.f32 %v1464, %v1464
    %v1467 = vsel %vm294, %v1465, 0.0
    %1468 = vadd.xlane.f32.xlu0 %v1467
    %v1469 = vpop.xlane.xlu0 %1468
    %v1470 = vsel %vm294, %v1466, 0.0
    %1471 = vadd.xlane.f32.xlu0 %v1470
    %v1472 = vpop.xlane.xlu0 %1471
    %v1473 = vmul.f32 %v1469, %v1460
    %v1474 = vmul.f32 %v1472, %v1460
    %v1475 = vadd.f32 %v1473, 1e-05
    %v1476 = vadd.f32 %v1474, 1e-05
    %v1477 = vrsqrt.pop %v1475
    %v1478 = vrsqrt.pop %v1476
    %v1479 = vmul.f32 %v1463, %v1477
    %v1480 = vmul.f32 %v1464, %v1478
    %v1482 = vlaneseq
    %v1483 = vshrl.u32 %v1482, 7
    %v1484 = vsub.s32 0, %v1483
    %v1485 = vrot.slane %v1452, %v1484
    %v1487 = vmul.f32 %v1479, %v1485
    %v1488 = vmul.f32 %v1480, %v1485
    %v1490 = vlaneseq
    %v1491 = vshrl.u32 %v1490, 7
    %v1492 = vsub.s32 0, %v1491
    %v1493 = vrot.slane %v1453, %v1492
    %v1495 = vadd.f32 %v1487, %v1493
    %v1496 = vadd.f32 %v1488, %v1493
    %v1497 = vld [vmem:[#allocation13] sm:$0xff]
    %v1498 = vld [vmem:[#allocation13 + $0x8] sm:$0xff]
    %v1499 = vld [vmem:[#allocation13 + $0x10] sm:$0xff]
    %v1500 = vld [vmem:[#allocation13 + $0x18] sm:$0xff]
    %v1501 = vld [vmem:[%s17] sm:$0x1]
    %v1503 = vlaneseq
    %v1504 = vshrl.u32 %v1503, 7
    %v1505 = vsub.s32 0, %v1504
    %v1506 = vrot.slane %v1501, %v1505
    %v1509 = vsel %vm294, %v1495, 0
    %v1512 = vsel %vm294, %v1496, 0
    %1514 = vmatprep.subr.mxu0 0.0
    %1515 = vmatpush1.msra.mxu0 0.0
    %1516 = vmatprep.subr.mxu0 0.0
    %1517 = vmatpush1.msra.mxu0 0.0
    %1518 = vmatprep.subr.mxu0 0.0
    %1519 = vmatpush1.msra.mxu0 0.0
    %1520 = vmatprep.subr.mxu0 0.0
    %1521 = vmatpush1.msra.mxu0 0.0
    %1522 = vmatprep.subr.mxu0 0.0
    %1523 = vmatpush1.msra.mxu0 0.0
    %1524 = vmatprep.subr.mxu0 0.0
    %1525 = vmatpush1.msra.mxu0 0.0
    %1526 = vmatprep.subr.mxu0 0.0
    %1527 = vmatpush1.msra.mxu0 0.0
    %1528 = vmatprep.subr.mxu0 0.0
    %1529 = vmatpush1.msra.mxu0 0.0
    %1530 = vmatprep.subr.mxu0 0.0
    %1531 = vmatpush1.msra.mxu0 0.0
    %1532 = vmatprep.subr.mxu0 0.0
    %1533 = vmatpush1.msra.mxu0 0.0
    %1534 = vmatprep.subr.mxu0 0.0
    %1535 = vmatpush1.msra.mxu0 0.0
    %1536 = vmatprep.subr.mxu0 0.0
    %1537 = vmatpush1.msra.mxu0 0.0
    %1538 = vmatprep.subr.mxu0 0.0
    %1539 = vmatpush1.msra.mxu0 %v1500
    %1540 = vmatprep.subr.mxu0 0.0
    %1541 = vmatpush1.msra.mxu0 %v1499
    %1542 = vmatprep.subr.mxu0 0.0
    %1543 = vmatpush1.msra.mxu0 %v1498
    %1544 = vmatprep.subr.mxu0 0.0
    %1545 = vmatpush1.msra.mxu0 %v1497
    %1546 = vmatprep.subr.mxu0 0.0
    %1547 = vmatpush2.msra.mxu0 0.0
    %1548 = vmatprep.subr.mxu0 0.0
    %1549 = vmatpush2.msra.mxu0 0.0
    %1550 = vmatprep.subr.mxu0 0.0
    %1551 = vmatpush2.msra.mxu0 0.0
    %1552 = vmatprep.subr.mxu0 0.0
    %1553 = vmatpush2.msra.mxu0 0.0
    %1554 = vmatprep.subr.mxu0 0.0
    %1555 = vmatpush2.msra.mxu0 0.0
    %1556 = vmatprep.subr.mxu0 0.0
    %1557 = vmatpush2.msra.mxu0 0.0
    %1558 = vmatprep.subr.mxu0 0.0
    %1559 = vmatpush2.msra.mxu0 0.0
    %1560 = vmatprep.subr.mxu0 0.0
    %1561 = vmatpush2.msra.mxu0 0.0
    %1562 = vmatprep.subr.mxu0 0.0
    %1563 = vmatpush2.msra.mxu0 0.0
    %1564 = vmatprep.subr.mxu0 0.0
    %1565 = vmatpush2.msra.mxu0 0.0
    %1566 = vmatprep.subr.mxu0 0.0
    %1567 = vmatpush2.msra.mxu0 0.0
    %1568 = vmatprep.subr.mxu0 0.0
    %1569 = vmatpush2.msra.mxu0 0.0
    %1570 = vmatprep.subr.mxu0 0.0
    %1571 = vmatpush2.msra.mxu0 0.0
    %1572 = vmatprep.subr.mxu0 0.0
    %1573 = vmatpush2.msra.mxu0 0.0
    %1574 = vmatprep.subr.mxu0 0.0
    %1575 = vmatpush2.msra.mxu0 0.0
    %1576 = vmatprep.subr.mxu0 0.0
    %1577 = vmatpush2.msra.mxu0 0.0
    %1578 = vmatprep.mubr.f32.mxu0 0.0
    %1579 = vmatmul.mubr.f32.gmra.mxu0 %v1509
    %v1580 = vpop.f32.mrf.mxu0
    %v1581 = vadd.f32 %v1506, %v1580
    %v1582 = vpop.f32.mrf.mxu0
    %1583 = vmatprep.mubr.f32.mxu0 0.0
    %1584 = vmatmul.mubr.f32.gmra.mxu0 %v1512
    %v1585 = vpop.f32.mrf.mxu0
    %v1586 = vadd.f32 %v1506, %v1585
    %v1587 = vpop.f32.mrf.mxu0
    %1588 = vdwg.mxu0
    %v1589 = vmax.f32 %v1581, 0.0
    %v1590 = vmax.f32 %v1586, 0.0
    %v1591 = vld [vmem:[#allocation14] sm:$0xff]
    %v1592 = vld [vmem:[#allocation14 + $0x8] sm:$0xff]
    %v1593 = vld [vmem:[#allocation14 + $0x10] sm:$0xff]
    %v1594 = vld [vmem:[#allocation14 + $0x18] sm:$0xff]
    %v1595 = vld [vmem:[%s19] sm:$0x1]
    %v1597 = vlaneseq
    %v1598 = vshrl.u32 %v1597, 7
    %v1599 = vsub.s32 0, %v1598
    %v1600 = vrot.slane %v1595, %v1599
    %v1603 = vsel %vm294, %v1589, 0
    %v1606 = vsel %vm294, %v1590, 0
    %1608 = vmatprep.subr.mxu0 0.0
    %1609 = vmatpush1.msra.mxu0 0.0
    %1610 = vmatprep.subr.mxu0 0.0
    %1611 = vmatpush1.msra.mxu0 0.0
    %1612 = vmatprep.subr.mxu0 0.0
    %1613 = vmatpush1.msra.mxu0 0.0
    %1614 = vmatprep.subr.mxu0 0.0
    %1615 = vmatpush1.msra.mxu0 0.0
    %1616 = vmatprep.subr.mxu0 0.0
    %1617 = vmatpush1.msra.mxu0 0.0
    %1618 = vmatprep.subr.mxu0 0.0
    %1619 = vmatpush1.msra.mxu0 0.0
    %1620 = vmatprep.subr.mxu0 0.0
    %1621 = vmatpush1.msra.mxu0 0.0
    %1622 = vmatprep.subr.mxu0 0.0
    %1623 = vmatpush1.msra.mxu0 0.0
    %1624 = vmatprep.subr.mxu0 0.0
    %1625 = vmatpush1.msra.mxu0 0.0
    %1626 = vmatprep.subr.mxu0 0.0
    %1627 = vmatpush1.msra.mxu0 0.0
    %1628 = vmatprep.subr.mxu0 0.0
    %1629 = vmatpush1.msra.mxu0 0.0
    %1630 = vmatprep.subr.mxu0 0.0
    %1631 = vmatpush1.msra.mxu0 0.0
    %1632 = vmatprep.subr.mxu0 0.0
    %1633 = vmatpush1.msra.mxu0 %v1594
    %1634 = vmatprep.subr.mxu0 0.0
    %1635 = vmatpush1.msra.mxu0 %v1593
    %1636 = vmatprep.subr.mxu0 0.0
    %1637 = vmatpush1.msra.mxu0 %v1592
    %1638 = vmatprep.subr.mxu0 0.0
    %1639 = vmatpush1.msra.mxu0 %v1591
    %1640 = vmatprep.subr.mxu0 0.0
    %1641 = vmatpush2.msra.mxu0 0.0
    %1642 = vmatprep.subr.mxu0 0.0
    %1643 = vmatpush2.msra.mxu0 0.0
    %1644 = vmatprep.subr.mxu0 0.0
    %1645 = vmatpush2.msra.mxu0 0.0
    %1646 = vmatprep.subr.mxu0 0.0
    %1647 = vmatpush2.msra.mxu0 0.0
    %1648 = vmatprep.subr.mxu0 0.0
    %1649 = vmatpush2.msra.mxu0 0.0
    %1650 = vmatprep.subr.mxu0 0.0
    %1651 = vmatpush2.msra.mxu0 0.0
    %1652 = vmatprep.subr.mxu0 0.0
    %1653 = vmatpush2.msra.mxu0 0.0
    %1654 = vmatprep.subr.mxu0 0.0
    %1655 = vmatpush2.msra.mxu0 0.0
    %1656 = vmatprep.subr.mxu0 0.0
    %1657 = vmatpush2.msra.mxu0 0.0
    %1658 = vmatprep.subr.mxu0 0.0
    %1659 = vmatpush2.msra.mxu0 0.0
    %1660 = vmatprep.subr.mxu0 0.0
    %1661 = vmatpush2.msra.mxu0 0.0
    %1662 = vmatprep.subr.mxu0 0.0
    %1663 = vmatpush2.msra.mxu0 0.0
    %1664 = vmatprep.subr.mxu0 0.0
    %1665 = vmatpush2.msra.mxu0 0.0
    %1666 = vmatprep.subr.mxu0 0.0
    %1667 = vmatpush2.msra.mxu0 0.0
    %1668 = vmatprep.subr.mxu0 0.0
    %1669 = vmatpush2.msra.mxu0 0.0
    %1670 = vmatprep.subr.mxu0 0.0
    %1671 = vmatpush2.msra.mxu0 0.0
    %1672 = vmatprep.mubr.f32.mxu0 0.0
    %1673 = vmatmul.mubr.f32.gmra.mxu0 %v1603
    %v1674 = vpop.f32.mrf.mxu0
    %v1675 = vadd.f32 %v1600, %v1674
    %v1676 = vpop.f32.mrf.mxu0
    %1677 = vmatprep.mubr.f32.mxu0 0.0
    %1678 = vmatmul.mubr.f32.gmra.mxu0 %v1606
    %v1679 = vpop.f32.mrf.mxu0
    %v1680 = vadd.f32 %v1600, %v1679
    %v1681 = vpop.f32.mrf.mxu0
    %1682 = vdwg.mxu0
    %v1683 = vadd.f32 %v1495, %v1675
    %v1684 = vadd.f32 %v1496, %v1680
    %v1685 = vld [vmem:[%s20] sm:$0x1]
    %v1686 = vld [vmem:[%s21] sm:$0x1]
    %v1687 = vsel %vm294, %v1683, 0.0
    %1688 = vadd.xlane.f32.xlu0 %v1687
    %v1689 = vpop.xlane.xlu0 %1688
    %v1690 = vsel %vm294, %v1684, 0.0
    %1691 = vadd.xlane.f32.xlu0 %v1690
    %v1692 = vpop.xlane.xlu0 %1691
    %v1693 = vmul.f32 %v1689, %v1460
    %v1694 = vmul.f32 %v1692, %v1460
    %v1695 = vsub.f32 %v1683, %v1693
    %v1696 = vsub.f32 %v1684, %v1694
    %v1697 = vmul.f32 %v1695, %v1695
    %v1698 = vmul.f32 %v1696, %v1696
    %v1699 = vsel %vm294, %v1697, 0.0
    %1700 = vadd.xlane.f32.xlu0 %v1699
    %v1701 = vpop.xlane.xlu0 %1700
    %v1702 = vsel %vm294, %v1698, 0.0
    %1703 = vadd.xlane.f32.xlu0 %v1702
    %v1704 = vpop.xlane.xlu0 %1703
    %v1705 = vmul.f32 %v1701, %v1460
    %v1706 = vmul.f32 %v1704, %v1460
    %v1707 = vadd.f32 %v1705, 1e-05
    %v1708 = vadd.f32 %v1706, 1e-05
    %v1709 = vrsqrt.pop %v1707
    %v1710 = vrsqrt.pop %v1708
    %v1711 = vmul.f32 %v1695, %v1709
    %v1712 = vmul.f32 %v1696, %v1710
    %v1714 = vlaneseq
    %v1715 = vshrl.u32 %v1714, 7
    %v1716 = vsub.s32 0, %v1715
    %v1717 = vrot.slane %v1685, %v1716
    %v1719 = vmul.f32 %v1711, %v1717
    %v1720 = vmul.f32 %v1712, %v1717
    %v1722 = vlaneseq
    %v1723 = vshrl.u32 %v1722, 7
    %v1724 = vsub.s32 0, %v1723
    %v1725 = vrot.slane %v1686, %v1724
    %v1727 = vadd.f32 %v1719, %v1725
    %v1728 = vadd.f32 %v1720, %v1725
    %s1729 = scalar_lea.vmem [#allocation7], 32
    %v1730 = vld [vmem:[%s1729] sm:$0xff]
    %v1731 = vld [vmem:[%s1729 + $0x8] sm:$0xff]
    %v1732 = vld [vmem:[%s1729 + $0x10] sm:$0xff]
    %v1733 = vld [vmem:[%s1729 + $0x18] sm:$0xff]
    %s1734 = scalar_lea.vmem %s7, 1
    %v1735 = vld [vmem:[%s1734] sm:$0x1]
    %v1737 = vlaneseq
    %v1738 = vshrl.u32 %v1737, 7
    %v1739 = vsub.s32 0, %v1738
    %v1740 = vrot.slane %v1735, %v1739
    %v1743 = vsel %vm294, %v1727, 0
    %v1746 = vsel %vm294, %v1728, 0
    %1748 = vmatprep.subr.mxu0 0.0
    %1749 = vmatpush1.msra.mxu0 0.0
    %1750 = vmatprep.subr.mxu0 0.0
    %1751 = vmatpush1.msra.mxu0 0.0
    %1752 = vmatprep.subr.mxu0 0.0
    %1753 = vmatpush1.msra.mxu0 0.0
    %1754 = vmatprep.subr.mxu0 0.0
    %1755 = vmatpush1.msra.mxu0 0.0
    %1756 = vmatprep.subr.mxu0 0.0
    %1757 = vmatpush1.msra.mxu0 0.0
    %1758 = vmatprep.subr.mxu0 0.0
    %1759 = vmatpush1.msra.mxu0 0.0
    %1760 = vmatprep.subr.mxu0 0.0
    %1761 = vmatpush1.msra.mxu0 0.0
    %1762 = vmatprep.subr.mxu0 0.0
    %1763 = vmatpush1.msra.mxu0 0.0
    %1764 = vmatprep.subr.mxu0 0.0
    %1765 = vmatpush1.msra.mxu0 0.0
    %1766 = vmatprep.subr.mxu0 0.0
    %1767 = vmatpush1.msra.mxu0 0.0
    %1768 = vmatprep.subr.mxu0 0.0
    %1769 = vmatpush1.msra.mxu0 0.0
    %1770 = vmatprep.subr.mxu0 0.0
    %1771 = vmatpush1.msra.mxu0 0.0
    %1772 = vmatprep.subr.mxu0 0.0
    %1773 = vmatpush1.msra.mxu0 %v1733
    %1774 = vmatprep.subr.mxu0 0.0
    %1775 = vmatpush1.msra.mxu0 %v1732
    %1776 = vmatprep.subr.mxu0 0.0
    %1777 = vmatpush1.msra.mxu0 %v1731
    %1778 = vmatprep.subr.mxu0 0.0
    %1779 = vmatpush1.msra.mxu0 %v1730
    %1780 = vmatprep.subr.mxu0 0.0
    %1781 = vmatpush2.msra.mxu0 0.0
    %1782 = vmatprep.subr.mxu0 0.0
    %1783 = vmatpush2.msra.mxu0 0.0
    %1784 = vmatprep.subr.mxu0 0.0
    %1785 = vmatpush2.msra.mxu0 0.0
    %1786 = vmatprep.subr.mxu0 0.0
    %1787 = vmatpush2.msra.mxu0 0.0
    %1788 = vmatprep.subr.mxu0 0.0
    %1789 = vmatpush2.msra.mxu0 0.0
    %1790 = vmatprep.subr.mxu0 0.0
    %1791 = vmatpush2.msra.mxu0 0.0
    %1792 = vmatprep.subr.mxu0 0.0
    %1793 = vmatpush2.msra.mxu0 0.0
    %1794 = vmatprep.subr.mxu0 0.0
    %1795 = vmatpush2.msra.mxu0 0.0
    %1796 = vmatprep.subr.mxu0 0.0
    %1797 = vmatpush2.msra.mxu0 0.0
    %1798 = vmatprep.subr.mxu0 0.0
    %1799 = vmatpush2.msra.mxu0 0.0
    %1800 = vmatprep.subr.mxu0 0.0
    %1801 = vmatpush2.msra.mxu0 0.0
    %1802 = vmatprep.subr.mxu0 0.0
    %1803 = vmatpush2.msra.mxu0 0.0
    %1804 = vmatprep.subr.mxu0 0.0
    %1805 = vmatpush2.msra.mxu0 0.0
    %1806 = vmatprep.subr.mxu0 0.0
    %1807 = vmatpush2.msra.mxu0 0.0
    %1808 = vmatprep.subr.mxu0 0.0
    %1809 = vmatpush2.msra.mxu0 0.0
    %1810 = vmatprep.subr.mxu0 0.0
    %1811 = vmatpush2.msra.mxu0 0.0
    %1812 = vmatprep.mubr.f32.mxu0 0.0
    %1813 = vmatmul.mubr.f32.gmra.mxu0 %v1743
    %v1814 = vpop.f32.mrf.mxu0
    %v1815 = vadd.f32 %v1740, %v1814
    %v1816 = vpop.f32.mrf.mxu0
    %1817 = vmatprep.mubr.f32.mxu0 0.0
    %1818 = vmatmul.mubr.f32.gmra.mxu0 %v1746
    %v1819 = vpop.f32.mrf.mxu0
    %v1820 = vadd.f32 %v1740, %v1819
    %v1821 = vpop.f32.mrf.mxu0
    %1822 = vdwg.mxu0
    %s1823 = scalar_lea.vmem [#allocation8], 32
    %v1824 = vld [vmem:[%s1823] sm:$0xff]
    %v1825 = vld [vmem:[%s1823 + $0x8] sm:$0xff]
    %v1826 = vld [vmem:[%s1823 + $0x10] sm:$0xff]
    %v1827 = vld [vmem:[%s1823 + $0x18] sm:$0xff]
    %s1828 = scalar_lea.vmem %s9, 1
    %v1829 = vld [vmem:[%s1828] sm:$0x1]
    %v1831 = vlaneseq
    %v1832 = vshrl.u32 %v1831, 7
    %v1833 = vsub.s32 0, %v1832
    %v1834 = vrot.slane %v1829, %v1833
    %1836 = vmatprep.subr.mxu0 0.0
    %1837 = vmatpush1.msra.mxu0 0.0
    %1838 = vmatprep.subr.mxu0 0.0
    %1839 = vmatpush1.msra.mxu0 0.0
    %1840 = vmatprep.subr.mxu0 0.0
    %1841 = vmatpush1.msra.mxu0 0.0
    %1842 = vmatprep.subr.mxu0 0.0
    %1843 = vmatpush1.msra.mxu0 0.0
    %1844 = vmatprep.subr.mxu0 0.0
    %1845 = vmatpush1.msra.mxu0 0.0
    %1846 = vmatprep.subr.mxu0 0.0
    %1847 = vmatpush1.msra.mxu0 0.0
    %1848 = vmatprep.subr.mxu0 0.0
    %1849 = vmatpush1.msra.mxu0 0.0
    %1850 = vmatprep.subr.mxu0 0.0
    %1851 = vmatpush1.msra.mxu0 0.0
    %1852 = vmatprep.subr.mxu0 0.0
    %1853 = vmatpush1.msra.mxu0 0.0
    %1854 = vmatprep.subr.mxu0 0.0
    %1855 = vmatpush1.msra.mxu0 0.0
    %1856 = vmatprep.subr.mxu0 0.0
    %1857 = vmatpush1.msra.mxu0 0.0
    %1858 = vmatprep.subr.mxu0 0.0
    %1859 = vmatpush1.msra.mxu0 0.0
    %1860 = vmatprep.subr.mxu0 0.0
    %1861 = vmatpush1.msra.mxu0 %v1827
    %1862 = vmatprep.subr.mxu0 0.0
    %1863 = vmatpush1.msra.mxu0 %v1826
    %1864 = vmatprep.subr.mxu0 0.0
    %1865 = vmatpush1.msra.mxu0 %v1825
    %1866 = vmatprep.subr.mxu0 0.0
    %1867 = vmatpush1.msra.mxu0 %v1824
    %1868 = vmatprep.subr.mxu0 0.0
    %1869 = vmatpush2.msra.mxu0 0.0
    %1870 = vmatprep.subr.mxu0 0.0
    %1871 = vmatpush2.msra.mxu0 0.0
    %1872 = vmatprep.subr.mxu0 0.0
    %1873 = vmatpush2.msra.mxu0 0.0
    %1874 = vmatprep.subr.mxu0 0.0
    %1875 = vmatpush2.msra.mxu0 0.0
    %1876 = vmatprep.subr.mxu0 0.0
    %1877 = vmatpush2.msra.mxu0 0.0
    %1878 = vmatprep.subr.mxu0 0.0
    %1879 = vmatpush2.msra.mxu0 0.0
    %1880 = vmatprep.subr.mxu0 0.0
    %1881 = vmatpush2.msra.mxu0 0.0
    %1882 = vmatprep.subr.mxu0 0.0
    %1883 = vmatpush2.msra.mxu0 0.0
    %1884 = vmatprep.subr.mxu0 0.0
    %1885 = vmatpush2.msra.mxu0 0.0
    %1886 = vmatprep.subr.mxu0 0.0
    %1887 = vmatpush2.msra.mxu0 0.0
    %1888 = vmatprep.subr.mxu0 0.0
    %1889 = vmatpush2.msra.mxu0 0.0
    %1890 = vmatprep.subr.mxu0 0.0
    %1891 = vmatpush2.msra.mxu0 0.0
    %1892 = vmatprep.subr.mxu0 0.0
    %1893 = vmatpush2.msra.mxu0 0.0
    %1894 = vmatprep.subr.mxu0 0.0
    %1895 = vmatpush2.msra.mxu0 0.0
    %1896 = vmatprep.subr.mxu0 0.0
    %1897 = vmatpush2.msra.mxu0 0.0
    %1898 = vmatprep.subr.mxu0 0.0
    %1899 = vmatpush2.msra.mxu0 0.0
    %1900 = vmatprep.mubr.f32.mxu0 0.0
    %1901 = vmatmul.mubr.f32.gmra.mxu0 %v1743
    %v1902 = vpop.f32.mrf.mxu0
    %v1903 = vadd.f32 %v1834, %v1902
    %v1904 = vpop.f32.mrf.mxu0
    %1905 = vmatprep.mubr.f32.mxu0 0.0
    %1906 = vmatmul.mubr.f32.gmra.mxu0 %v1746
    %v1907 = vpop.f32.mrf.mxu0
    %v1908 = vadd.f32 %v1834, %v1907
    %v1909 = vpop.f32.mrf.mxu0
    %1910 = vdwg.mxu0
    %s1911 = scalar_lea.vmem [#allocation10], 32
    %v1912 = vld [vmem:[%s1911] sm:$0xff]
    %v1913 = vld [vmem:[%s1911 + $0x8] sm:$0xff]
    %v1914 = vld [vmem:[%s1911 + $0x10] sm:$0xff]
    %v1915 = vld [vmem:[%s1911 + $0x18] sm:$0xff]
    %s1916 = scalar_lea.vmem %s11, 1
    %v1917 = vld [vmem:[%s1916] sm:$0x1]
    %v1919 = vlaneseq
    %v1920 = vshrl.u32 %v1919, 7
    %v1921 = vsub.s32 0, %v1920
    %v1922 = vrot.slane %v1917, %v1921
    %1924 = vmatprep.subr.mxu0 0.0
    %1925 = vmatpush1.msra.mxu0 0.0
    %1926 = vmatprep.subr.mxu0 0.0
    %1927 = vmatpush1.msra.mxu0 0.0
    %1928 = vmatprep.subr.mxu0 0.0
    %1929 = vmatpush1.msra.mxu0 0.0
    %1930 = vmatprep.subr.mxu0 0.0
    %1931 = vmatpush1.msra.mxu0 0.0
    %1932 = vmatprep.subr.mxu0 0.0
    %1933 = vmatpush1.msra.mxu0 0.0
    %1934 = vmatprep.subr.mxu0 0.0
    %1935 = vmatpush1.msra.mxu0 0.0
    %1936 = vmatprep.subr.mxu0 0.0
    %1937 = vmatpush1.msra.mxu0 0.0
    %1938 = vmatprep.subr.mxu0 0.0
    %1939 = vmatpush1.msra.mxu0 0.0
    %1940 = vmatprep.subr.mxu0 0.0
    %1941 = vmatpush1.msra.mxu0 0.0
    %1942 = vmatprep.subr.mxu0 0.0
    %1943 = vmatpush1.msra.mxu0 0.0
    %1944 = vmatprep.subr.mxu0 0.0
    %1945 = vmatpush1.msra.mxu0 0.0
    %1946 = vmatprep.subr.mxu0 0.0
    %1947 = vmatpush1.msra.mxu0 0.0
    %1948 = vmatprep.subr.mxu0 0.0
    %1949 = vmatpush1.msra.mxu0 %v1915
    %1950 = vmatprep.subr.mxu0 0.0
    %1951 = vmatpush1.msra.mxu0 %v1914
    %1952 = vmatprep.subr.mxu0 0.0
    %1953 = vmatpush1.msra.mxu0 %v1913
    %1954 = vmatprep.subr.mxu0 0.0
    %1955 = vmatpush1.msra.mxu0 %v1912
    %1956 = vmatprep.subr.mxu0 0.0
    %1957 = vmatpush2.msra.mxu0 0.0
    %1958 = vmatprep.subr.mxu0 0.0
    %1959 = vmatpush2.msra.mxu0 0.0
    %1960 = vmatprep.subr.mxu0 0.0
    %1961 = vmatpush2.msra.mxu0 0.0
    %1962 = vmatprep.subr.mxu0 0.0
    %1963 = vmatpush2.msra.mxu0 0.0
    %1964 = vmatprep.subr.mxu0 0.0
    %1965 = vmatpush2.msra.mxu0 0.0
    %1966 = vmatprep.subr.mxu0 0.0
    %1967 = vmatpush2.msra.mxu0 0.0
    %1968 = vmatprep.subr.mxu0 0.0
    %1969 = vmatpush2.msra.mxu0 0.0
    %1970 = vmatprep.subr.mxu0 0.0
    %1971 = vmatpush2.msra.mxu0 0.0
    %1972 = vmatprep.subr.mxu0 0.0
    %1973 = vmatpush2.msra.mxu0 0.0
    %1974 = vmatprep.subr.mxu0 0.0
    %1975 = vmatpush2.msra.mxu0 0.0
    %1976 = vmatprep.subr.mxu0 0.0
    %1977 = vmatpush2.msra.mxu0 0.0
    %1978 = vmatprep.subr.mxu0 0.0
    %1979 = vmatpush2.msra.mxu0 0.0
    %1980 = vmatprep.subr.mxu0 0.0
    %1981 = vmatpush2.msra.mxu0 0.0
    %1982 = vmatprep.subr.mxu0 0.0
    %1983 = vmatpush2.msra.mxu0 0.0
    %1984 = vmatprep.subr.mxu0 0.0
    %1985 = vmatpush2.msra.mxu0 0.0
    %1986 = vmatprep.subr.mxu0 0.0
    %1987 = vmatpush2.msra.mxu0 0.0
    %1988 = vmatprep.mubr.f32.mxu0 0.0
    %1989 = vmatmul.mubr.f32.gmra.mxu0 %v1743
    %v1990 = vpop.f32.mrf.mxu0
    %v1991 = vadd.f32 %v1922, %v1990
    %v1992 = vpop.f32.mrf.mxu0
    %1993 = vmatprep.mubr.f32.mxu0 0.0
    %1994 = vmatmul.mubr.f32.gmra.mxu0 %v1746
    %v1995 = vpop.f32.mrf.mxu0
    %v1996 = vadd.f32 %v1922, %v1995
    %v1997 = vpop.f32.mrf.mxu0
    %1998 = vdwg.mxu0
    %v1999 = vmul.f32 %v1815, %v553
    %v2000 = vmul.f32 %v1820, %v553
    %v2002 = vsel %vm294, %v1999, 0
    %v2005 = vsel %vm294, %v2000, 0
    %v2008 = vsel %vm294, %v1903, 0
    %v2011 = vsel %vm294, %v1908, 0
    %2013 = vmatprep.subr.mxu0 0.0
    %2014 = vmatpush1.xpose.msra.mxu0 0.0
    %2015 = vmatprep.subr.mxu0 0.0
    %2016 = vmatpush1.xpose.msra.mxu0 0.0
    %2017 = vmatprep.subr.mxu0 0.0
    %2018 = vmatpush1.xpose.msra.mxu0 0.0
    %2019 = vmatprep.subr.mxu0 0.0
    %2020 = vmatpush1.xpose.msra.mxu0 0.0
    %2021 = vmatprep.subr.mxu0 0.0
    %2022 = vmatpush1.xpose.msra.mxu0 0.0
    %2023 = vmatprep.subr.mxu0 0.0
    %2024 = vmatpush1.xpose.msra.mxu0 0.0
    %2025 = vmatprep.subr.mxu0 0.0
    %2026 = vmatpush1.xpose.msra.mxu0 0.0
    %2027 = vmatprep.subr.mxu0 0.0
    %2028 = vmatpush1.xpose.msra.mxu0 0.0
    %2029 = vmatprep.subr.mxu0 0.0
    %2030 = vmatpush1.xpose.msra.mxu0 0.0
    %2031 = vmatprep.subr.mxu0 0.0
    %2032 = vmatpush1.xpose.msra.mxu0 0.0
    %2033 = vmatprep.subr.mxu0 0.0
    %2034 = vmatpush1.xpose.msra.mxu0 0.0
    %2035 = vmatprep.subr.mxu0 0.0
    %2036 = vmatpush1.xpose.msra.mxu0 0.0
    %2037 = vmatprep.subr.mxu0 0.0
    %2038 = vmatpush1.xpose.msra.mxu0 0.0
    %2039 = vmatprep.subr.mxu0 0.0
    %2040 = vmatpush1.xpose.msra.mxu0 0.0
    %2041 = vmatprep.subr.mxu0 0.0
    %2042 = vmatpush1.xpose.msra.mxu0 %v2011
    %2043 = vmatprep.subr.mxu0 0.0
    %2044 = vmatpush1.xpose.msra.mxu0 %v2008
    %2045 = vmatprep.subr.mxu0 0.0
    %2046 = vmatpush2.xpose.msra.mxu0 0.0
    %2047 = vmatprep.subr.mxu0 0.0
    %2048 = vmatpush2.xpose.msra.mxu0 0.0
    %2049 = vmatprep.subr.mxu0 0.0
    %2050 = vmatpush2.xpose.msra.mxu0 0.0
    %2051 = vmatprep.subr.mxu0 0.0
    %2052 = vmatpush2.xpose.msra.mxu0 0.0
    %2053 = vmatprep.subr.mxu0 0.0
    %2054 = vmatpush2.xpose.msra.mxu0 0.0
    %2055 = vmatprep.subr.mxu0 0.0
    %2056 = vmatpush2.xpose.msra.mxu0 0.0
    %2057 = vmatprep.subr.mxu0 0.0
    %2058 = vmatpush2.xpose.msra.mxu0 0.0
    %2059 = vmatprep.subr.mxu0 0.0
    %2060 = vmatpush2.xpose.msra.mxu0 0.0
    %2061 = vmatprep.subr.mxu0 0.0
    %2062 = vmatpush2.xpose.msra.mxu0 0.0
    %2063 = vmatprep.subr.mxu0 0.0
    %2064 = vmatpush2.xpose.msra.mxu0 0.0
    %2065 = vmatprep.subr.mxu0 0.0
    %2066 = vmatpush2.xpose.msra.mxu0 0.0
    %2067 = vmatprep.subr.mxu0 0.0
    %2068 = vmatpush2.xpose.msra.mxu0 0.0
    %2069 = vmatprep.subr.mxu0 0.0
    %2070 = vmatpush2.xpose.msra.mxu0 0.0
    %2071 = vmatprep.subr.mxu0 0.0
    %2072 = vmatpush2.xpose.msra.mxu0 0.0
    %2073 = vmatprep.subr.mxu0 0.0
    %2074 = vmatpush2.xpose.msra.mxu0 0.0
    %2075 = vmatprep.subr.mxu0 0.0
    %2076 = vmatpush2.xpose.msra.mxu0 0.0
    %2077 = vmatprep.mubr.f32.mxu0 0.0
    %2078 = vmatmul.mubr.f32.gmra.mxu0 %v2002
    %v2079 = vpop.f32.mrf.mxu0
    %v2080 = vadd.f32 0.0, %v2079
    %v2081 = vpop.f32.mrf.mxu0
    %2082 = vmatprep.mubr.f32.mxu0 0.0
    %2083 = vmatmul.mubr.f32.gmra.mxu0 %v2005
    %v2084 = vpop.f32.mrf.mxu0
    %v2085 = vadd.f32 0.0, %v2084
    %v2086 = vpop.f32.mrf.mxu0
    %2087 = vdwg.mxu0
    %v2088 = vmul.f32 %v2080, 0.35355338
    %v2089 = vmul.f32 %v2085, 0.35355338
    %v2090 = vadd.f32 %v2088, %v281
    %v2091 = vadd.f32 %v2089, %v282
    %v2092 = vsel %vm648, %v2090, -inf
    %2093 = vmax.xlane.f32.xlu0 %v2092
    %v2094 = vpop.xlane.xlu0 %2093
    %v2095 = vsel %vm648, %v2091, -inf
    %2096 = vmax.xlane.f32.xlu0 %v2095
    %v2097 = vpop.xlane.xlu0 %2096
    %v2098 = vsub.f32 %v2090, %v2094
    %v2099 = vsub.f32 %v2091, %v2097
    %v2100 = vmul.f32 %v2098, 1.442695
    %v2101 = vpow.pop %v2100
    %v2102 = vmul.f32 %v2099, 1.442695
    %v2103 = vpow.pop %v2102
    %v2104 = vsel %vm648, %v2101, 0.0
    %2105 = vadd.xlane.f32.xlu0 %v2104
    %v2106 = vpop.xlane.xlu0 %2105
    %v2107 = vsel %vm648, %v2103, 0.0
    %2108 = vadd.xlane.f32.xlu0 %v2107
    %v2109 = vpop.xlane.xlu0 %2108
    %v2110 = vrcp.pop %v2106
    %v2111 = vrcp.pop %v2109
    %v2112 = vmul.f32 %v2101, %v2110
    %v2113 = vmul.f32 %v2103, %v2111
    %v2114 = vmul.f32 %v1991, %v553
    %v2115 = vmul.f32 %v1996, %v553
    %v2116 = vmul.f32 %v1815, %v679
    %v2117 = vmul.f32 %v1820, %v679
    %v2119 = vsel %vm294, %v2116, 0
    %v2122 = vsel %vm294, %v2117, 0
    %2124 = vmatprep.subr.mxu0 0.0
    %2125 = vmatpush1.xpose.msra.mxu0 0.0
    %2126 = vmatprep.subr.mxu0 0.0
    %2127 = vmatpush1.xpose.msra.mxu0 0.0
    %2128 = vmatprep.subr.mxu0 0.0
    %2129 = vmatpush1.xpose.msra.mxu0 0.0
    %2130 = vmatprep.subr.mxu0 0.0
    %2131 = vmatpush1.xpose.msra.mxu0 0.0
    %2132 = vmatprep.subr.mxu0 0.0
    %2133 = vmatpush1.xpose.msra.mxu0 0.0
    %2134 = vmatprep.subr.mxu0 0.0
    %2135 = vmatpush1.xpose.msra.mxu0 0.0
    %2136 = vmatprep.subr.mxu0 0.0
    %2137 = vmatpush1.xpose.msra.mxu0 0.0
    %2138 = vmatprep.subr.mxu0 0.0
    %2139 = vmatpush1.xpose.msra.mxu0 0.0
    %2140 = vmatprep.subr.mxu0 0.0
    %2141 = vmatpush1.xpose.msra.mxu0 0.0
    %2142 = vmatprep.subr.mxu0 0.0
    %2143 = vmatpush1.xpose.msra.mxu0 0.0
    %2144 = vmatprep.subr.mxu0 0.0
    %2145 = vmatpush1.xpose.msra.mxu0 0.0
    %2146 = vmatprep.subr.mxu0 0.0
    %2147 = vmatpush1.xpose.msra.mxu0 0.0
    %2148 = vmatprep.subr.mxu0 0.0
    %2149 = vmatpush1.xpose.msra.mxu0 0.0
    %2150 = vmatprep.subr.mxu0 0.0
    %2151 = vmatpush1.xpose.msra.mxu0 0.0
    %2152 = vmatprep.subr.mxu0 0.0
    %2153 = vmatpush1.xpose.msra.mxu0 %v2011
    %2154 = vmatprep.subr.mxu0 0.0
    %2155 = vmatpush1.xpose.msra.mxu0 %v2008
    %2156 = vmatprep.subr.mxu0 0.0
    %2157 = vmatpush2.xpose.msra.mxu0 0.0
    %2158 = vmatprep.subr.mxu0 0.0
    %2159 = vmatpush2.xpose.msra.mxu0 0.0
    %2160 = vmatprep.subr.mxu0 0.0
    %2161 = vmatpush2.xpose.msra.mxu0 0.0
    %2162 = vmatprep.subr.mxu0 0.0
    %2163 = vmatpush2.xpose.msra.mxu0 0.0
    %2164 = vmatprep.subr.mxu0 0.0
    %2165 = vmatpush2.xpose.msra.mxu0 0.0
    %2166 = vmatprep.subr.mxu0 0.0
    %2167 = vmatpush2.xpose.msra.mxu0 0.0
    %2168 = vmatprep.subr.mxu0 0.0
    %2169 = vmatpush2.xpose.msra.mxu0 0.0
    %2170 = vmatprep.subr.mxu0 0.0
    %2171 = vmatpush2.xpose.msra.mxu0 0.0
    %2172 = vmatprep.subr.mxu0 0.0
    %2173 = vmatpush2.xpose.msra.mxu0 0.0
    %2174 = vmatprep.subr.mxu0 0.0
    %2175 = vmatpush2.xpose.msra.mxu0 0.0
    %2176 = vmatprep.subr.mxu0 0.0
    %2177 = vmatpush2.xpose.msra.mxu0 0.0
    %2178 = vmatprep.subr.mxu0 0.0
    %2179 = vmatpush2.xpose.msra.mxu0 0.0
    %2180 = vmatprep.subr.mxu0 0.0
    %2181 = vmatpush2.xpose.msra.mxu0 0.0
    %2182 = vmatprep.subr.mxu0 0.0
    %2183 = vmatpush2.xpose.msra.mxu0 0.0
    %2184 = vmatprep.subr.mxu0 0.0
    %2185 = vmatpush2.xpose.msra.mxu0 0.0
    %2186 = vmatprep.subr.mxu0 0.0
    %2187 = vmatpush2.xpose.msra.mxu0 0.0
    %2188 = vmatprep.mubr.f32.mxu0 0.0
    %2189 = vmatmul.mubr.f32.gmra.mxu0 %v2119
    %v2190 = vpop.f32.mrf.mxu0
    %v2191 = vadd.f32 0.0, %v2190
    %v2192 = vpop.f32.mrf.mxu0
    %2193 = vmatprep.mubr.f32.mxu0 0.0
    %2194 = vmatmul.mubr.f32.gmra.mxu0 %v2122
    %v2195 = vpop.f32.mrf.mxu0
    %v2196 = vadd.f32 0.0, %v2195
    %v2197 = vpop.f32.mrf.mxu0
    %2198 = vdwg.mxu0
    %v2199 = vmul.f32 %v2191, 0.35355338
    %v2200 = vmul.f32 %v2196, 0.35355338
    %v2201 = vadd.f32 %v2199, %v281
    %v2202 = vadd.f32 %v2200, %v282
    %v2203 = vsel %vm648, %v2201, -inf
    %2204 = vmax.xlane.f32.xlu0 %v2203
    %v2205 = vpop.xlane.xlu0 %2204
    %v2206 = vsel %vm648, %v2202, -inf
    %2207 = vmax.xlane.f32.xlu0 %v2206
    %v2208 = vpop.xlane.xlu0 %2207
    %v2209 = vsub.f32 %v2201, %v2205
    %v2210 = vsub.f32 %v2202, %v2208
    %v2211 = vmul.f32 %v2209, 1.442695
    %v2212 = vpow.pop %v2211
    %v2213 = vmul.f32 %v2210, 1.442695
    %v2214 = vpow.pop %v2213
    %v2215 = vsel %vm648, %v2212, 0.0
    %2216 = vadd.xlane.f32.xlu0 %v2215
    %v2217 = vpop.xlane.xlu0 %2216
    %v2218 = vsel %vm648, %v2214, 0.0
    %2219 = vadd.xlane.f32.xlu0 %v2218
    %v2220 = vpop.xlane.xlu0 %2219
    %v2221 = vrcp.pop %v2217
    %v2222 = vrcp.pop %v2220
    %v2223 = vmul.f32 %v2212, %v2221
    %v2224 = vmul.f32 %v2214, %v2222
    %v2225 = vmul.f32 %v1991, %v679
    %v2226 = vmul.f32 %v1996, %v679
    %v2228 = vsel %vm648, %v2223, 0
    %v2231 = vsel %vm648, %v2224, 0
    %2233 = vmatprep.subr.mxu0 0.0
    %2234 = vmatpush1.msra.mxu0 0.0
    %2235 = vmatprep.subr.mxu0 0.0
    %2236 = vmatpush1.msra.mxu0 0.0
    %2237 = vmatprep.subr.mxu0 0.0
    %2238 = vmatpush1.msra.mxu0 0.0
    %2239 = vmatprep.subr.mxu0 0.0
    %2240 = vmatpush1.msra.mxu0 0.0
    %2241 = vmatprep.subr.mxu0 0.0
    %2242 = vmatpush1.msra.mxu0 0.0
    %2243 = vmatprep.subr.mxu0 0.0
    %2244 = vmatpush1.msra.mxu0 0.0
    %2245 = vmatprep.subr.mxu0 0.0
    %2246 = vmatpush1.msra.mxu0 0.0
    %2247 = vmatprep.subr.mxu0 0.0
    %2248 = vmatpush1.msra.mxu0 0.0
    %2249 = vmatprep.subr.mxu0 0.0
    %2250 = vmatpush1.msra.mxu0 0.0
    %2251 = vmatprep.subr.mxu0 0.0
    %2252 = vmatpush1.msra.mxu0 0.0
    %2253 = vmatprep.subr.mxu0 0.0
    %2254 = vmatpush1.msra.mxu0 0.0
    %2255 = vmatprep.subr.mxu0 0.0
    %2256 = vmatpush1.msra.mxu0 0.0
    %2257 = vmatprep.subr.mxu0 0.0
    %2258 = vmatpush1.msra.mxu0 0.0
    %2259 = vmatprep.subr.mxu0 0.0
    %2260 = vmatpush1.msra.mxu0 0.0
    %2261 = vmatprep.subr.mxu0 0.0
    %2262 = vmatpush1.msra.mxu0 %v2226
    %2263 = vmatprep.subr.mxu0 0.0
    %2264 = vmatpush1.msra.mxu0 %v2225
    %2265 = vmatprep.subr.mxu0 0.0
    %2266 = vmatpush2.msra.mxu0 0.0
    %2267 = vmatprep.subr.mxu0 0.0
    %2268 = vmatpush2.msra.mxu0 0.0
    %2269 = vmatprep.subr.mxu0 0.0
    %2270 = vmatpush2.msra.mxu0 0.0
    %2271 = vmatprep.subr.mxu0 0.0
    %2272 = vmatpush2.msra.mxu0 0.0
    %2273 = vmatprep.subr.mxu0 0.0
    %2274 = vmatpush2.msra.mxu0 0.0
    %2275 = vmatprep.subr.mxu0 0.0
    %2276 = vmatpush2.msra.mxu0 0.0
    %2277 = vmatprep.subr.mxu0 0.0
    %2278 = vmatpush2.msra.mxu0 0.0
    %2279 = vmatprep.subr.mxu0 0.0
    %2280 = vmatpush2.msra.mxu0 0.0
    %2281 = vmatprep.subr.mxu0 0.0
    %2282 = vmatpush2.msra.mxu0 0.0
    %2283 = vmatprep.subr.mxu0 0.0
    %2284 = vmatpush2.msra.mxu0 0.0
    %2285 = vmatprep.subr.mxu0 0.0
    %2286 = vmatpush2.msra.mxu0 0.0
    %2287 = vmatprep.subr.mxu0 0.0
    %2288 = vmatpush2.msra.mxu0 0.0
    %2289 = vmatprep.subr.mxu0 0.0
    %2290 = vmatpush2.msra.mxu0 0.0
    %2291 = vmatprep.subr.mxu0 0.0
    %2292 = vmatpush2.msra.mxu0 0.0
    %2293 = vmatprep.subr.mxu0 0.0
    %2294 = vmatpush2.msra.mxu0 0.0
    %2295 = vmatprep.subr.mxu0 0.0
    %2296 = vmatpush2.msra.mxu0 0.0
    %2297 = vmatprep.mubr.f32.mxu0 0.0
    %2298 = vmatmul.mubr.f32.gmra.mxu0 %v2228
    %v2299 = vpop.f32.mrf.mxu0
    %v2300 = vadd.f32 0.0, %v2299
    %v2301 = vpop.f32.mrf.mxu0
    %2302 = vmatprep.mubr.f32.mxu0 0.0
    %2303 = vmatmul.mubr.f32.gmra.mxu0 %v2231
    %v2304 = vpop.f32.mrf.mxu0
    %v2305 = vadd.f32 0.0, %v2304
    %v2306 = vpop.f32.mrf.mxu0
    %2307 = vdwg.mxu0
    %v2309 = vsel %vm648, %v2112, 0
    %v2312 = vsel %vm648, %v2113, 0
    %2314 = vmatprep.subr.mxu0 0.0
    %2315 = vmatpush1.msra.mxu0 0.0
    %2316 = vmatprep.subr.mxu0 0.0
    %2317 = vmatpush1.msra.mxu0 0.0
    %2318 = vmatprep.subr.mxu0 0.0
    %2319 = vmatpush1.msra.mxu0 0.0
    %2320 = vmatprep.subr.mxu0 0.0
    %2321 = vmatpush1.msra.mxu0 0.0
    %2322 = vmatprep.subr.mxu0 0.0
    %2323 = vmatpush1.msra.mxu0 0.0
    %2324 = vmatprep.subr.mxu0 0.0
    %2325 = vmatpush1.msra.mxu0 0.0
    %2326 = vmatprep.subr.mxu0 0.0
    %2327 = vmatpush1.msra.mxu0 0.0
    %2328 = vmatprep.subr.mxu0 0.0
    %2329 = vmatpush1.msra.mxu0 0.0
    %2330 = vmatprep.subr.mxu0 0.0
    %2331 = vmatpush1.msra.mxu0 0.0
    %2332 = vmatprep.subr.mxu0 0.0
    %2333 = vmatpush1.msra.mxu0 0.0
    %2334 = vmatprep.subr.mxu0 0.0
    %2335 = vmatpush1.msra.mxu0 0.0
    %2336 = vmatprep.subr.mxu0 0.0
    %2337 = vmatpush1.msra.mxu0 0.0
    %2338 = vmatprep.subr.mxu0 0.0
    %2339 = vmatpush1.msra.mxu0 0.0
    %2340 = vmatprep.subr.mxu0 0.0
    %2341 = vmatpush1.msra.mxu0 0.0
    %2342 = vmatprep.subr.mxu0 0.0
    %2343 = vmatpush1.msra.mxu0 %v2115
    %2344 = vmatprep.subr.mxu0 0.0
    %2345 = vmatpush1.msra.mxu0 %v2114
    %2346 = vmatprep.subr.mxu0 0.0
    %2347 = vmatpush2.msra.mxu0 0.0
    %2348 = vmatprep.subr.mxu0 0.0
    %2349 = vmatpush2.msra.mxu0 0.0
    %2350 = vmatprep.subr.mxu0 0.0
    %2351 = vmatpush2.msra.mxu0 0.0
    %2352 = vmatprep.subr.mxu0 0.0
    %2353 = vmatpush2.msra.mxu0 0.0
    %2354 = vmatprep.subr.mxu0 0.0
    %2355 = vmatpush2.msra.mxu0 0.0
    %2356 = vmatprep.subr.mxu0 0.0
    %2357 = vmatpush2.msra.mxu0 0.0
    %2358 = vmatprep.subr.mxu0 0.0
    %2359 = vmatpush2.msra.mxu0 0.0
    %2360 = vmatprep.subr.mxu0 0.0
    %2361 = vmatpush2.msra.mxu0 0.0
    %2362 = vmatprep.subr.mxu0 0.0
    %2363 = vmatpush2.msra.mxu0 0.0
    %2364 = vmatprep.subr.mxu0 0.0
    %2365 = vmatpush2.msra.mxu0 0.0
    %2366 = vmatprep.subr.mxu0 0.0
    %2367 = vmatpush2.msra.mxu0 0.0
    %2368 = vmatprep.subr.mxu0 0.0
    %2369 = vmatpush2.msra.mxu0 0.0
    %2370 = vmatprep.subr.mxu0 0.0
    %2371 = vmatpush2.msra.mxu0 0.0
    %2372 = vmatprep.subr.mxu0 0.0
    %2373 = vmatpush2.msra.mxu0 0.0
    %2374 = vmatprep.subr.mxu0 0.0
    %2375 = vmatpush2.msra.mxu0 0.0
    %2376 = vmatprep.subr.mxu0 0.0
    %2377 = vmatpush2.msra.mxu0 0.0
    %2378 = vmatprep.mubr.f32.mxu0 0.0
    %2379 = vmatmul.mubr.f32.gmra.mxu0 %v2309
    %v2380 = vpop.f32.mrf.mxu0
    %v2381 = vadd.f32 %v2300, %v2380
    %v2382 = vpop.f32.mrf.mxu0
    %2383 = vmatprep.mubr.f32.mxu0 0.0
    %2384 = vmatmul.mubr.f32.gmra.mxu0 %v2312
    %v2385 = vpop.f32.mrf.mxu0
    %v2386 = vadd.f32 %v2305, %v2385
    %v2387 = vpop.f32.mrf.mxu0
    %2388 = vdwg.mxu0
    %v2389 = vmul.f32 %v1815, %v960
    %v2390 = vmul.f32 %v1820, %v960
    %v2392 = vsel %vm294, %v2389, 0
    %v2395 = vsel %vm294, %v2390, 0
    %2397 = vmatprep.subr.mxu0 0.0
    %2398 = vmatpush1.xpose.msra.mxu0 0.0
    %2399 = vmatprep.subr.mxu0 0.0
    %2400 = vmatpush1.xpose.msra.mxu0 0.0
    %2401 = vmatprep.subr.mxu0 0.0
    %2402 = vmatpush1.xpose.msra.mxu0 0.0
    %2403 = vmatprep.subr.mxu0 0.0
    %2404 = vmatpush1.xpose.msra.mxu0 0.0
    %2405 = vmatprep.subr.mxu0 0.0
    %2406 = vmatpush1.xpose.msra.mxu0 0.0
    %2407 = vmatprep.subr.mxu0 0.0
    %2408 = vmatpush1.xpose.msra.mxu0 0.0
    %2409 = vmatprep.subr.mxu0 0.0
    %2410 = vmatpush1.xpose.msra.mxu0 0.0
    %2411 = vmatprep.subr.mxu0 0.0
    %2412 = vmatpush1.xpose.msra.mxu0 0.0
    %2413 = vmatprep.subr.mxu0 0.0
    %2414 = vmatpush1.xpose.msra.mxu0 0.0
    %2415 = vmatprep.subr.mxu0 0.0
    %2416 = vmatpush1.xpose.msra.mxu0 0.0
    %2417 = vmatprep.subr.mxu0 0.0
    %2418 = vmatpush1.xpose.msra.mxu0 0.0
    %2419 = vmatprep.subr.mxu0 0.0
    %2420 = vmatpush1.xpose.msra.mxu0 0.0
    %2421 = vmatprep.subr.mxu0 0.0
    %2422 = vmatpush1.xpose.msra.mxu0 0.0
    %2423 = vmatprep.subr.mxu0 0.0
    %2424 = vmatpush1.xpose.msra.mxu0 0.0
    %2425 = vmatprep.subr.mxu0 0.0
    %2426 = vmatpush1.xpose.msra.mxu0 %v2011
    %2427 = vmatprep.subr.mxu0 0.0
    %2428 = vmatpush1.xpose.msra.mxu0 %v2008
    %2429 = vmatprep.subr.mxu0 0.0
    %2430 = vmatpush2.xpose.msra.mxu0 0.0
    %2431 = vmatprep.subr.mxu0 0.0
    %2432 = vmatpush2.xpose.msra.mxu0 0.0
    %2433 = vmatprep.subr.mxu0 0.0
    %2434 = vmatpush2.xpose.msra.mxu0 0.0
    %2435 = vmatprep.subr.mxu0 0.0
    %2436 = vmatpush2.xpose.msra.mxu0 0.0
    %2437 = vmatprep.subr.mxu0 0.0
    %2438 = vmatpush2.xpose.msra.mxu0 0.0
    %2439 = vmatprep.subr.mxu0 0.0
    %2440 = vmatpush2.xpose.msra.mxu0 0.0
    %2441 = vmatprep.subr.mxu0 0.0
    %2442 = vmatpush2.xpose.msra.mxu0 0.0
    %2443 = vmatprep.subr.mxu0 0.0
    %2444 = vmatpush2.xpose.msra.mxu0 0.0
    %2445 = vmatprep.subr.mxu0 0.0
    %2446 = vmatpush2.xpose.msra.mxu0 0.0
    %2447 = vmatprep.subr.mxu0 0.0
    %2448 = vmatpush2.xpose.msra.mxu0 0.0
    %2449 = vmatprep.subr.mxu0 0.0
    %2450 = vmatpush2.xpose.msra.mxu0 0.0
    %2451 = vmatprep.subr.mxu0 0.0
    %2452 = vmatpush2.xpose.msra.mxu0 0.0
    %2453 = vmatprep.subr.mxu0 0.0
    %2454 = vmatpush2.xpose.msra.mxu0 0.0
    %2455 = vmatprep.subr.mxu0 0.0
    %2456 = vmatpush2.xpose.msra.mxu0 0.0
    %2457 = vmatprep.subr.mxu0 0.0
    %2458 = vmatpush2.xpose.msra.mxu0 0.0
    %2459 = vmatprep.subr.mxu0 0.0
    %2460 = vmatpush2.xpose.msra.mxu0 0.0
    %2461 = vmatprep.mubr.f32.mxu0 0.0
    %2462 = vmatmul.mubr.f32.gmra.mxu0 %v2392
    %v2463 = vpop.f32.mrf.mxu0
    %v2464 = vadd.f32 0.0, %v2463
    %v2465 = vpop.f32.mrf.mxu0
    %2466 = vmatprep.mubr.f32.mxu0 0.0
    %2467 = vmatmul.mubr.f32.gmra.mxu0 %v2395
    %v2468 = vpop.f32.mrf.mxu0
    %v2469 = vadd.f32 0.0, %v2468
    %v2470 = vpop.f32.mrf.mxu0
    %2471 = vdwg.mxu0
    %v2472 = vmul.f32 %v2464, 0.35355338
    %v2473 = vmul.f32 %v2469, 0.35355338
    %v2474 = vadd.f32 %v2472, %v281
    %v2475 = vadd.f32 %v2473, %v282
    %v2476 = vsel %vm648, %v2474, -inf
    %2477 = vmax.xlane.f32.xlu0 %v2476
    %v2478 = vpop.xlane.xlu0 %2477
    %v2479 = vsel %vm648, %v2475, -inf
    %2480 = vmax.xlane.f32.xlu0 %v2479
    %v2481 = vpop.xlane.xlu0 %2480
    %v2482 = vsub.f32 %v2474, %v2478
    %v2483 = vsub.f32 %v2475, %v2481
    %v2484 = vmul.f32 %v2482, 1.442695
    %v2485 = vpow.pop %v2484
    %v2486 = vmul.f32 %v2483, 1.442695
    %v2487 = vpow.pop %v2486
    %v2488 = vsel %vm648, %v2485, 0.0
    %2489 = vadd.xlane.f32.xlu0 %v2488
    %v2490 = vpop.xlane.xlu0 %2489
    %v2491 = vsel %vm648, %v2487, 0.0
    %2492 = vadd.xlane.f32.xlu0 %v2491
    %v2493 = vpop.xlane.xlu0 %2492
    %v2494 = vrcp.pop %v2490
    %v2495 = vrcp.pop %v2493
    %v2496 = vmul.f32 %v2485, %v2494
    %v2497 = vmul.f32 %v2487, %v2495
    %v2498 = vmul.f32 %v1991, %v960
    %v2499 = vmul.f32 %v1996, %v960
    %v2501 = vsel %vm648, %v2496, 0
    %v2504 = vsel %vm648, %v2497, 0
    %2506 = vmatprep.subr.mxu0 0.0
    %2507 = vmatpush1.msra.mxu0 0.0
    %2508 = vmatprep.subr.mxu0 0.0
    %2509 = vmatpush1.msra.mxu0 0.0
    %2510 = vmatprep.subr.mxu0 0.0
    %2511 = vmatpush1.msra.mxu0 0.0
    %2512 = vmatprep.subr.mxu0 0.0
    %2513 = vmatpush1.msra.mxu0 0.0
    %2514 = vmatprep.subr.mxu0 0.0
    %2515 = vmatpush1.msra.mxu0 0.0
    %2516 = vmatprep.subr.mxu0 0.0
    %2517 = vmatpush1.msra.mxu0 0.0
    %2518 = vmatprep.subr.mxu0 0.0
    %2519 = vmatpush1.msra.mxu0 0.0
    %2520 = vmatprep.subr.mxu0 0.0
    %2521 = vmatpush1.msra.mxu0 0.0
    %2522 = vmatprep.subr.mxu0 0.0
    %2523 = vmatpush1.msra.mxu0 0.0
    %2524 = vmatprep.subr.mxu0 0.0
    %2525 = vmatpush1.msra.mxu0 0.0
    %2526 = vmatprep.subr.mxu0 0.0
    %2527 = vmatpush1.msra.mxu0 0.0
    %2528 = vmatprep.subr.mxu0 0.0
    %2529 = vmatpush1.msra.mxu0 0.0
    %2530 = vmatprep.subr.mxu0 0.0
    %2531 = vmatpush1.msra.mxu0 0.0
    %2532 = vmatprep.subr.mxu0 0.0
    %2533 = vmatpush1.msra.mxu0 0.0
    %2534 = vmatprep.subr.mxu0 0.0
    %2535 = vmatpush1.msra.mxu0 %v2499
    %2536 = vmatprep.subr.mxu0 0.0
    %2537 = vmatpush1.msra.mxu0 %v2498
    %2538 = vmatprep.subr.mxu0 0.0
    %2539 = vmatpush2.msra.mxu0 0.0
    %2540 = vmatprep.subr.mxu0 0.0
    %2541 = vmatpush2.msra.mxu0 0.0
    %2542 = vmatprep.subr.mxu0 0.0
    %2543 = vmatpush2.msra.mxu0 0.0
    %2544 = vmatprep.subr.mxu0 0.0
    %2545 = vmatpush2.msra.mxu0 0.0
    %2546 = vmatprep.subr.mxu0 0.0
    %2547 = vmatpush2.msra.mxu0 0.0
    %2548 = vmatprep.subr.mxu0 0.0
    %2549 = vmatpush2.msra.mxu0 0.0
    %2550 = vmatprep.subr.mxu0 0.0
    %2551 = vmatpush2.msra.mxu0 0.0
    %2552 = vmatprep.subr.mxu0 0.0
    %2553 = vmatpush2.msra.mxu0 0.0
    %2554 = vmatprep.subr.mxu0 0.0
    %2555 = vmatpush2.msra.mxu0 0.0
    %2556 = vmatprep.subr.mxu0 0.0
    %2557 = vmatpush2.msra.mxu0 0.0
    %2558 = vmatprep.subr.mxu0 0.0
    %2559 = vmatpush2.msra.mxu0 0.0
    %2560 = vmatprep.subr.mxu0 0.0
    %2561 = vmatpush2.msra.mxu0 0.0
    %2562 = vmatprep.subr.mxu0 0.0
    %2563 = vmatpush2.msra.mxu0 0.0
    %2564 = vmatprep.subr.mxu0 0.0
    %2565 = vmatpush2.msra.mxu0 0.0
    %2566 = vmatprep.subr.mxu0 0.0
    %2567 = vmatpush2.msra.mxu0 0.0
    %2568 = vmatprep.subr.mxu0 0.0
    %2569 = vmatpush2.msra.mxu0 0.0
    %2570 = vmatprep.mubr.f32.mxu0 0.0
    %2571 = vmatmul.mubr.f32.gmra.mxu0 %v2501
    %v2572 = vpop.f32.mrf.mxu0
    %v2573 = vadd.f32 0.0, %v2572
    %v2574 = vpop.f32.mrf.mxu0
    %2575 = vmatprep.mubr.f32.mxu0 0.0
    %2576 = vmatmul.mubr.f32.gmra.mxu0 %v2504
    %v2577 = vpop.f32.mrf.mxu0
    %v2578 = vadd.f32 0.0, %v2577
    %v2579 = vpop.f32.mrf.mxu0
    %2580 = vdwg.mxu0
    %v2581 = vadd.f32 %v2381, %v2573
    %v2582 = vadd.f32 %v2386, %v2578
    %v2583 = vmul.f32 %v1815, %v1162
    %v2584 = vmul.f32 %v1820, %v1162
    %v2586 = vsel %vm294, %v2583, 0
    %v2589 = vsel %vm294, %v2584, 0
    %2591 = vmatprep.subr.mxu0 0.0
    %2592 = vmatpush1.xpose.msra.mxu0 0.0
    %2593 = vmatprep.subr.mxu0 0.0
    %2594 = vmatpush1.xpose.msra.mxu0 0.0
    %2595 = vmatprep.subr.mxu0 0.0
    %2596 = vmatpush1.xpose.msra.mxu0 0.0
    %2597 = vmatprep.subr.mxu0 0.0
    %2598 = vmatpush1.xpose.msra.mxu0 0.0
    %2599 = vmatprep.subr.mxu0 0.0
    %2600 = vmatpush1.xpose.msra.mxu0 0.0
    %2601 = vmatprep.subr.mxu0 0.0
    %2602 = vmatpush1.xpose.msra.mxu0 0.0
    %2603 = vmatprep.subr.mxu0 0.0
    %2604 = vmatpush1.xpose.msra.mxu0 0.0
    %2605 = vmatprep.subr.mxu0 0.0
    %2606 = vmatpush1.xpose.msra.mxu0 0.0
    %2607 = vmatprep.subr.mxu0 0.0
    %2608 = vmatpush1.xpose.msra.mxu0 0.0
    %2609 = vmatprep.subr.mxu0 0.0
    %2610 = vmatpush1.xpose.msra.mxu0 0.0
    %2611 = vmatprep.subr.mxu0 0.0
    %2612 = vmatpush1.xpose.msra.mxu0 0.0
    %2613 = vmatprep.subr.mxu0 0.0
    %2614 = vmatpush1.xpose.msra.mxu0 0.0
    %2615 = vmatprep.subr.mxu0 0.0
    %2616 = vmatpush1.xpose.msra.mxu0 0.0
    %2617 = vmatprep.subr.mxu0 0.0
    %2618 = vmatpush1.xpose.msra.mxu0 0.0
    %2619 = vmatprep.subr.mxu0 0.0
    %2620 = vmatpush1.xpose.msra.mxu0 %v2011
    %2621 = vmatprep.subr.mxu0 0.0
    %2622 = vmatpush1.xpose.msra.mxu0 %v2008
    %2623 = vmatprep.subr.mxu0 0.0
    %2624 = vmatpush2.xpose.msra.mxu0 0.0
    %2625 = vmatprep.subr.mxu0 0.0
    %2626 = vmatpush2.xpose.msra.mxu0 0.0
    %2627 = vmatprep.subr.mxu0 0.0
    %2628 = vmatpush2.xpose.msra.mxu0 0.0
    %2629 = vmatprep.subr.mxu0 0.0
    %2630 = vmatpush2.xpose.msra.mxu0 0.0
    %2631 = vmatprep.subr.mxu0 0.0
    %2632 = vmatpush2.xpose.msra.mxu0 0.0
    %2633 = vmatprep.subr.mxu0 0.0
    %2634 = vmatpush2.xpose.msra.mxu0 0.0
    %2635 = vmatprep.subr.mxu0 0.0
    %2636 = vmatpush2.xpose.msra.mxu0 0.0
    %2637 = vmatprep.subr.mxu0 0.0
    %2638 = vmatpush2.xpose.msra.mxu0 0.0
    %2639 = vmatprep.subr.mxu0 0.0
    %2640 = vmatpush2.xpose.msra.mxu0 0.0
    %2641 = vmatprep.subr.mxu0 0.0
    %2642 = vmatpush2.xpose.msra.mxu0 0.0
    %2643 = vmatprep.subr.mxu0 0.0
    %2644 = vmatpush2.xpose.msra.mxu0 0.0
    %2645 = vmatprep.subr.mxu0 0.0
    %2646 = vmatpush2.xpose.msra.mxu0 0.0
    %2647 = vmatprep.subr.mxu0 0.0
    %2648 = vmatpush2.xpose.msra.mxu0 0.0
    %2649 = vmatprep.subr.mxu0 0.0
    %2650 = vmatpush2.xpose.msra.mxu0 0.0
    %2651 = vmatprep.subr.mxu0 0.0
    %2652 = vmatpush2.xpose.msra.mxu0 0.0
    %2653 = vmatprep.subr.mxu0 0.0
    %2654 = vmatpush2.xpose.msra.mxu0 0.0
    %2655 = vmatprep.mubr.f32.mxu0 0.0
    %2656 = vmatmul.mubr.f32.gmra.mxu0 %v2586
    %v2657 = vpop.f32.mrf.mxu0
    %v2658 = vadd.f32 0.0, %v2657
    %v2659 = vpop.f32.mrf.mxu0
    %2660 = vmatprep.mubr.f32.mxu0 0.0
    %2661 = vmatmul.mubr.f32.gmra.mxu0 %v2589
    %v2662 = vpop.f32.mrf.mxu0
    %v2663 = vadd.f32 0.0, %v2662
    %v2664 = vpop.f32.mrf.mxu0
    %2665 = vdwg.mxu0
    %v2666 = vmul.f32 %v2658, 0.35355338
    %v2667 = vmul.f32 %v2663, 0.35355338
    %v2668 = vadd.f32 %v2666, %v281
    %v2669 = vadd.f32 %v2667, %v282
    %v2670 = vsel %vm648, %v2668, -inf
    %2671 = vmax.xlane.f32.xlu0 %v2670
    %v2672 = vpop.xlane.xlu0 %2671
    %v2673 = vsel %vm648, %v2669, -inf
    %2674 = vmax.xlane.f32.xlu0 %v2673
    %v2675 = vpop.xlane.xlu0 %2674
    %v2676 = vsub.f32 %v2668, %v2672
    %v2677 = vsub.f32 %v2669, %v2675
    %v2678 = vmul.f32 %v2676, 1.442695
    %v2679 = vpow.pop %v2678
    %v2680 = vmul.f32 %v2677, 1.442695
    %v2681 = vpow.pop %v2680
    %v2682 = vsel %vm648, %v2679, 0.0
    %2683 = vadd.xlane.f32.xlu0 %v2682
    %v2684 = vpop.xlane.xlu0 %2683
    %v2685 = vsel %vm648, %v2681, 0.0
    %2686 = vadd.xlane.f32.xlu0 %v2685
    %v2687 = vpop.xlane.xlu0 %2686
    %v2688 = vrcp.pop %v2684
    %v2689 = vrcp.pop %v2687
    %v2690 = vmul.f32 %v2679, %v2688
    %v2691 = vmul.f32 %v2681, %v2689
    %v2692 = vmul.f32 %v1991, %v1162
    %v2693 = vmul.f32 %v1996, %v1162
    %v2695 = vsel %vm648, %v2690, 0
    %v2698 = vsel %vm648, %v2691, 0
    %2700 = vmatprep.subr.mxu0 0.0
    %2701 = vmatpush1.msra.mxu0 0.0
    %2702 = vmatprep.subr.mxu0 0.0
    %2703 = vmatpush1.msra.mxu0 0.0
    %2704 = vmatprep.subr.mxu0 0.0
    %2705 = vmatpush1.msra.mxu0 0.0
    %2706 = vmatprep.subr.mxu0 0.0
    %2707 = vmatpush1.msra.mxu0 0.0
    %2708 = vmatprep.subr.mxu0 0.0
    %2709 = vmatpush1.msra.mxu0 0.0
    %2710 = vmatprep.subr.mxu0 0.0
    %2711 = vmatpush1.msra.mxu0 0.0
    %2712 = vmatprep.subr.mxu0 0.0
    %2713 = vmatpush1.msra.mxu0 0.0
    %2714 = vmatprep.subr.mxu0 0.0
    %2715 = vmatpush1.msra.mxu0 0.0
    %2716 = vmatprep.subr.mxu0 0.0
    %2717 = vmatpush1.msra.mxu0 0.0
    %2718 = vmatprep.subr.mxu0 0.0
    %2719 = vmatpush1.msra.mxu0 0.0
    %2720 = vmatprep.subr.mxu0 0.0
    %2721 = vmatpush1.msra.mxu0 0.0
    %2722 = vmatprep.subr.mxu0 0.0
    %2723 = vmatpush1.msra.mxu0 0.0
    %2724 = vmatprep.subr.mxu0 0.0
    %2725 = vmatpush1.msra.mxu0 0.0
    %2726 = vmatprep.subr.mxu0 0.0
    %2727 = vmatpush1.msra.mxu0 0.0
    %2728 = vmatprep.subr.mxu0 0.0
    %2729 = vmatpush1.msra.mxu0 %v2693
    %2730 = vmatprep.subr.mxu0 0.0
    %2731 = vmatpush1.msra.mxu0 %v2692
    %2732 = vmatprep.subr.mxu0 0.0
    %2733 = vmatpush2.msra.mxu0 0.0
    %2734 = vmatprep.subr.mxu0 0.0
    %2735 = vmatpush2.msra.mxu0 0.0
    %2736 = vmatprep.subr.mxu0 0.0
    %2737 = vmatpush2.msra.mxu0 0.0
    %2738 = vmatprep.subr.mxu0 0.0
    %2739 = vmatpush2.msra.mxu0 0.0
    %2740 = vmatprep.subr.mxu0 0.0
    %2741 = vmatpush2.msra.mxu0 0.0
    %2742 = vmatprep.subr.mxu0 0.0
    %2743 = vmatpush2.msra.mxu0 0.0
    %2744 = vmatprep.subr.mxu0 0.0
    %2745 = vmatpush2.msra.mxu0 0.0
    %2746 = vmatprep.subr.mxu0 0.0
    %2747 = vmatpush2.msra.mxu0 0.0
    %2748 = vmatprep.subr.mxu0 0.0
    %2749 = vmatpush2.msra.mxu0 0.0
    %2750 = vmatprep.subr.mxu0 0.0
    %2751 = vmatpush2.msra.mxu0 0.0
    %2752 = vmatprep.subr.mxu0 0.0
    %2753 = vmatpush2.msra.mxu0 0.0
    %2754 = vmatprep.subr.mxu0 0.0
    %2755 = vmatpush2.msra.mxu0 0.0
    %2756 = vmatprep.subr.mxu0 0.0
    %2757 = vmatpush2.msra.mxu0 0.0
    %2758 = vmatprep.subr.mxu0 0.0
    %2759 = vmatpush2.msra.mxu0 0.0
    %2760 = vmatprep.subr.mxu0 0.0
    %2761 = vmatpush2.msra.mxu0 0.0
    %2762 = vmatprep.subr.mxu0 0.0
    %2763 = vmatpush2.msra.mxu0 0.0
    %2764 = vmatprep.mubr.f32.mxu0 0.0
    %2765 = vmatmul.mubr.f32.gmra.mxu0 %v2695
    %v2766 = vpop.f32.mrf.mxu0
    %v2767 = vadd.f32 0.0, %v2766
    %v2768 = vpop.f32.mrf.mxu0
    %2769 = vmatprep.mubr.f32.mxu0 0.0
    %2770 = vmatmul.mubr.f32.gmra.mxu0 %v2698
    %v2771 = vpop.f32.mrf.mxu0
    %v2772 = vadd.f32 0.0, %v2771
    %v2773 = vpop.f32.mrf.mxu0
    %2774 = vdwg.mxu0
    %v2775 = vadd.f32 %v2581, %v2767
    %v2776 = vadd.f32 %v2582, %v2772
    %s2777 = scalar_lea.vmem [#allocation11], 32
    %v2778 = vld [vmem:[%s2777] sm:$0xff]
    %v2779 = vld [vmem:[%s2777 + $0x8] sm:$0xff]
    %v2780 = vld [vmem:[%s2777 + $0x10] sm:$0xff]
    %v2781 = vld [vmem:[%s2777 + $0x18] sm:$0xff]
    %s2782 = scalar_lea.vmem %s13, 1
    %v2783 = vld [vmem:[%s2782] sm:$0x1]
    %v2785 = vlaneseq
    %v2786 = vshrl.u32 %v2785, 7
    %v2787 = vsub.s32 0, %v2786
    %v2788 = vrot.slane %v2783, %v2787
    %v2791 = vsel %vm294, %v2775, 0
    %v2794 = vsel %vm294, %v2776, 0
    %2796 = vmatprep.subr.mxu0 0.0
    %2797 = vmatpush1.msra.mxu0 0.0
    %2798 = vmatprep.subr.mxu0 0.0
    %2799 = vmatpush1.msra.mxu0 0.0
    %2800 = vmatprep.subr.mxu0 0.0
    %2801 = vmatpush1.msra.mxu0 0.0
    %2802 = vmatprep.subr.mxu0 0.0
    %2803 = vmatpush1.msra.mxu0 0.0
    %2804 = vmatprep.subr.mxu0 0.0
    %2805 = vmatpush1.msra.mxu0 0.0
    %2806 = vmatprep.subr.mxu0 0.0
    %2807 = vmatpush1.msra.mxu0 0.0
    %2808 = vmatprep.subr.mxu0 0.0
    %2809 = vmatpush1.msra.mxu0 0.0
    %2810 = vmatprep.subr.mxu0 0.0
    %2811 = vmatpush1.msra.mxu0 0.0
    %2812 = vmatprep.subr.mxu0 0.0
    %2813 = vmatpush1.msra.mxu0 0.0
    %2814 = vmatprep.subr.mxu0 0.0
    %2815 = vmatpush1.msra.mxu0 0.0
    %2816 = vmatprep.subr.mxu0 0.0
    %2817 = vmatpush1.msra.mxu0 0.0
    %2818 = vmatprep.subr.mxu0 0.0
    %2819 = vmatpush1.msra.mxu0 0.0
    %2820 = vmatprep.subr.mxu0 0.0
    %2821 = vmatpush1.msra.mxu0 %v2781
    %2822 = vmatprep.subr.mxu0 0.0
    %2823 = vmatpush1.msra.mxu0 %v2780
    %2824 = vmatprep.subr.mxu0 0.0
    %2825 = vmatpush1.msra.mxu0 %v2779
    %2826 = vmatprep.subr.mxu0 0.0
    %2827 = vmatpush1.msra.mxu0 %v2778
    %2828 = vmatprep.subr.mxu0 0.0
    %2829 = vmatpush2.msra.mxu0 0.0
    %2830 = vmatprep.subr.mxu0 0.0
    %2831 = vmatpush2.msra.mxu0 0.0
    %2832 = vmatprep.subr.mxu0 0.0
    %2833 = vmatpush2.msra.mxu0 0.0
    %2834 = vmatprep.subr.mxu0 0.0
    %2835 = vmatpush2.msra.mxu0 0.0
    %2836 = vmatprep.subr.mxu0 0.0
    %2837 = vmatpush2.msra.mxu0 0.0
    %2838 = vmatprep.subr.mxu0 0.0
    %2839 = vmatpush2.msra.mxu0 0.0
    %2840 = vmatprep.subr.mxu0 0.0
    %2841 = vmatpush2.msra.mxu0 0.0
    %2842 = vmatprep.subr.mxu0 0.0
    %2843 = vmatpush2.msra.mxu0 0.0
    %2844 = vmatprep.subr.mxu0 0.0
    %2845 = vmatpush2.msra.mxu0 0.0
    %2846 = vmatprep.subr.mxu0 0.0
    %2847 = vmatpush2.msra.mxu0 0.0
    %2848 = vmatprep.subr.mxu0 0.0
    %2849 = vmatpush2.msra.mxu0 0.0
    %2850 = vmatprep.subr.mxu0 0.0
    %2851 = vmatpush2.msra.mxu0 0.0
    %2852 = vmatprep.subr.mxu0 0.0
    %2853 = vmatpush2.msra.mxu0 0.0
    %2854 = vmatprep.subr.mxu0 0.0
    %2855 = vmatpush2.msra.mxu0 0.0
    %2856 = vmatprep.subr.mxu0 0.0
    %2857 = vmatpush2.msra.mxu0 0.0
    %2858 = vmatprep.subr.mxu0 0.0
    %2859 = vmatpush2.msra.mxu0 0.0
    %2860 = vmatprep.mubr.f32.mxu0 0.0
    %2861 = vmatmul.mubr.f32.gmra.mxu0 %v2791
    %v2862 = vpop.f32.mrf.mxu0
    %v2863 = vadd.f32 %v2788, %v2862
    %v2864 = vpop.f32.mrf.mxu0
    %2865 = vmatprep.mubr.f32.mxu0 0.0
    %2866 = vmatmul.mubr.f32.gmra.mxu0 %v2794
    %v2867 = vpop.f32.mrf.mxu0
    %v2868 = vadd.f32 %v2788, %v2867
    %v2869 = vpop.f32.mrf.mxu0
    %2870 = vdwg.mxu0
    %v2871 = vadd.f32 %v1727, %v2863
    %v2872 = vadd.f32 %v1728, %v2868
    %s2873 = scalar_lea.vmem %s14, 1
    %v2874 = vld [vmem:[%s2873] sm:$0x1]
    %s2875 = scalar_lea.vmem %s15, 1
    %v2876 = vld [vmem:[%s2875] sm:$0x1]
    %v2877 = vsel %vm294, %v2871, 0.0
    %2878 = vadd.xlane.f32.xlu0 %v2877
    %v2879 = vpop.xlane.xlu0 %2878
    %v2880 = vsel %vm294, %v2872, 0.0
    %2881 = vadd.xlane.f32.xlu0 %v2880
    %v2882 = vpop.xlane.xlu0 %2881
    %v2883 = vmul.f32 %v2879, %v1460
    %v2884 = vmul.f32 %v2882, %v1460
    %v2885 = vsub.f32 %v2871, %v2883
    %v2886 = vsub.f32 %v2872, %v2884
    %v2887 = vmul.f32 %v2885, %v2885
    %v2888 = vmul.f32 %v2886, %v2886
    %v2889 = vsel %vm294, %v2887, 0.0
    %2890 = vadd.xlane.f32.xlu0 %v2889
    %v2891 = vpop.xlane.xlu0 %2890
    %v2892 = vsel %vm294, %v2888, 0.0
    %2893 = vadd.xlane.f32.xlu0 %v2892
    %v2894 = vpop.xlane.xlu0 %2893
    %v2895 = vmul.f32 %v2891, %v1460
    %v2896 = vmul.f32 %v2894, %v1460
    %v2897 = vadd.f32 %v2895, 1e-05
    %v2898 = vadd.f32 %v2896, 1e-05
    %v2899 = vrsqrt.pop %v2897
    %v2900 = vrsqrt.pop %v2898
    %v2901 = vmul.f32 %v2885, %v2899
    %v2902 = vmul.f32 %v2886, %v2900
    %v2904 = vlaneseq
    %v2905 = vshrl.u32 %v2904, 7
    %v2906 = vsub.s32 0, %v2905
    %v2907 = vrot.slane %v2874, %v2906
    %v2909 = vmul.f32 %v2901, %v2907
    %v2910 = vmul.f32 %v2902, %v2907
    %v2912 = vlaneseq
    %v2913 = vshrl.u32 %v2912, 7
    %v2914 = vsub.s32 0, %v2913
    %v2915 = vrot.slane %v2876, %v2914
    %v2917 = vadd.f32 %v2909, %v2915
    %v2918 = vadd.f32 %v2910, %v2915
    %s2919 = scalar_lea.vmem [#allocation13], 32
    %v2920 = vld [vmem:[%s2919] sm:$0xff]
    %v2921 = vld [vmem:[%s2919 + $0x8] sm:$0xff]
    %v2922 = vld [vmem:[%s2919 + $0x10] sm:$0xff]
    %v2923 = vld [vmem:[%s2919 + $0x18] sm:$0xff]
    %s2924 = scalar_lea.vmem %s17, 1
    %v2925 = vld [vmem:[%s2924] sm:$0x1]
    %v2927 = vlaneseq
    %v2928 = vshrl.u32 %v2927, 7
    %v2929 = vsub.s32 0, %v2928
    %v2930 = vrot.slane %v2925, %v2929
    %v2933 = vsel %vm294, %v2917, 0
    %v2936 = vsel %vm294, %v2918, 0
    %2938 = vmatprep.subr.mxu0 0.0
    %2939 = vmatpush1.msra.mxu0 0.0
    %2940 = vmatprep.subr.mxu0 0.0
    %2941 = vmatpush1.msra.mxu0 0.0
    %2942 = vmatprep.subr.mxu0 0.0
    %2943 = vmatpush1.msra.mxu0 0.0
    %2944 = vmatprep.subr.mxu0 0.0
    %2945 = vmatpush1.msra.mxu0 0.0
    %2946 = vmatprep.subr.mxu0 0.0
    %2947 = vmatpush1.msra.mxu0 0.0
    %2948 = vmatprep.subr.mxu0 0.0
    %2949 = vmatpush1.msra.mxu0 0.0
    %2950 = vmatprep.subr.mxu0 0.0
    %2951 = vmatpush1.msra.mxu0 0.0
    %2952 = vmatprep.subr.mxu0 0.0
    %2953 = vmatpush1.msra.mxu0 0.0
    %2954 = vmatprep.subr.mxu0 0.0
    %2955 = vmatpush1.msra.mxu0 0.0
    %2956 = vmatprep.subr.mxu0 0.0
    %2957 = vmatpush1.msra.mxu0 0.0
    %2958 = vmatprep.subr.mxu0 0.0
    %2959 = vmatpush1.msra.mxu0 0.0
    %2960 = vmatprep.subr.mxu0 0.0
    %2961 = vmatpush1.msra.mxu0 0.0
    %2962 = vmatprep.subr.mxu0 0.0
    %2963 = vmatpush1.msra.mxu0 %v2923
    %2964 = vmatprep.subr.mxu0 0.0
    %2965 = vmatpush1.msra.mxu0 %v2922
    %2966 = vmatprep.subr.mxu0 0.0
    %2967 = vmatpush1.msra.mxu0 %v2921
    %2968 = vmatprep.subr.mxu0 0.0
    %2969 = vmatpush1.msra.mxu0 %v2920
    %2970 = vmatprep.subr.mxu0 0.0
    %2971 = vmatpush2.msra.mxu0 0.0
    %2972 = vmatprep.subr.mxu0 0.0
    %2973 = vmatpush2.msra.mxu0 0.0
    %2974 = vmatprep.subr.mxu0 0.0
    %2975 = vmatpush2.msra.mxu0 0.0
    %2976 = vmatprep.subr.mxu0 0.0
    %2977 = vmatpush2.msra.mxu0 0.0
    %2978 = vmatprep.subr.mxu0 0.0
    %2979 = vmatpush2.msra.mxu0 0.0
    %2980 = vmatprep.subr.mxu0 0.0
    %2981 = vmatpush2.msra.mxu0 0.0
    %2982 = vmatprep.subr.mxu0 0.0
    %2983 = vmatpush2.msra.mxu0 0.0
    %2984 = vmatprep.subr.mxu0 0.0
    %2985 = vmatpush2.msra.mxu0 0.0
    %2986 = vmatprep.subr.mxu0 0.0
    %2987 = vmatpush2.msra.mxu0 0.0
    %2988 = vmatprep.subr.mxu0 0.0
    %2989 = vmatpush2.msra.mxu0 0.0
    %2990 = vmatprep.subr.mxu0 0.0
    %2991 = vmatpush2.msra.mxu0 0.0
    %2992 = vmatprep.subr.mxu0 0.0
    %2993 = vmatpush2.msra.mxu0 0.0
    %2994 = vmatprep.subr.mxu0 0.0
    %2995 = vmatpush2.msra.mxu0 0.0
    %2996 = vmatprep.subr.mxu0 0.0
    %2997 = vmatpush2.msra.mxu0 0.0
    %2998 = vmatprep.subr.mxu0 0.0
    %2999 = vmatpush2.msra.mxu0 0.0
    %3000 = vmatprep.subr.mxu0 0.0
    %3001 = vmatpush2.msra.mxu0 0.0
    %3002 = vmatprep.mubr.f32.mxu0 0.0
    %3003 = vmatmul.mubr.f32.gmra.mxu0 %v2933
    %v3004 = vpop.f32.mrf.mxu0
    %v3005 = vadd.f32 %v2930, %v3004
    %v3006 = vpop.f32.mrf.mxu0
    %3007 = vmatprep.mubr.f32.mxu0 0.0
    %3008 = vmatmul.mubr.f32.gmra.mxu0 %v2936
    %v3009 = vpop.f32.mrf.mxu0
    %v3010 = vadd.f32 %v2930, %v3009
    %v3011 = vpop.f32.mrf.mxu0
    %3012 = vdwg.mxu0
    %v3013 = vmax.f32 %v3005, 0.0
    %v3014 = vmax.f32 %v3010, 0.0
    %s3015 = scalar_lea.vmem [#allocation14], 32
    %v3016 = vld [vmem:[%s3015] sm:$0xff]
    %v3017 = vld [vmem:[%s3015 + $0x8] sm:$0xff]
    %v3018 = vld [vmem:[%s3015 + $0x10] sm:$0xff]
    %v3019 = vld [vmem:[%s3015 + $0x18] sm:$0xff]
    %s3020 = scalar_lea.vmem %s19, 1
    %v3021 = vld [vmem:[%s3020] sm:$0x1]
    %v3023 = vlaneseq
    %v3024 = vshrl.u32 %v3023, 7
    %v3025 = vsub.s32 0, %v3024
    %v3026 = vrot.slane %v3021, %v3025
    %v3029 = vsel %vm294, %v3013, 0
    %v3032 = vsel %vm294, %v3014, 0
    %3034 = vmatprep.subr.mxu0 0.0
    %3035 = vmatpush1.msra.mxu0 0.0
    %3036 = vmatprep.subr.mxu0 0.0
    %3037 = vmatpush1.msra.mxu0 0.0
    %3038 = vmatprep.subr.mxu0 0.0
    %3039 = vmatpush1.msra.mxu0 0.0
    %3040 = vmatprep.subr.mxu0 0.0
    %3041 = vmatpush1.msra.mxu0 0.0
    %3042 = vmatprep.subr.mxu0 0.0
    %3043 = vmatpush1.msra.mxu0 0.0
    %3044 = vmatprep.subr.mxu0 0.0
    %3045 = vmatpush1.msra.mxu0 0.0
    %3046 = vmatprep.subr.mxu0 0.0
    %3047 = vmatpush1.msra.mxu0 0.0
    %3048 = vmatprep.subr.mxu0 0.0
    %3049 = vmatpush1.msra.mxu0 0.0
    %3050 = vmatprep.subr.mxu0 0.0
    %3051 = vmatpush1.msra.mxu0 0.0
    %3052 = vmatprep.subr.mxu0 0.0
    %3053 = vmatpush1.msra.mxu0 0.0
    %3054 = vmatprep.subr.mxu0 0.0
    %3055 = vmatpush1.msra.mxu0 0.0
    %3056 = vmatprep.subr.mxu0 0.0
    %3057 = vmatpush1.msra.mxu0 0.0
    %3058 = vmatprep.subr.mxu0 0.0
    %3059 = vmatpush1.msra.mxu0 %v3019
    %3060 = vmatprep.subr.mxu0 0.0
    %3061 = vmatpush1.msra.mxu0 %v3018
    %3062 = vmatprep.subr.mxu0 0.0
    %3063 = vmatpush1.msra.mxu0 %v3017
    %3064 = vmatprep.subr.mxu0 0.0
    %3065 = vmatpush1.msra.mxu0 %v3016
    %3066 = vmatprep.subr.mxu0 0.0
    %3067 = vmatpush2.msra.mxu0 0.0
    %3068 = vmatprep.subr.mxu0 0.0
    %3069 = vmatpush2.msra.mxu0 0.0
    %3070 = vmatprep.subr.mxu0 0.0
    %3071 = vmatpush2.msra.mxu0 0.0
    %3072 = vmatprep.subr.mxu0 0.0
    %3073 = vmatpush2.msra.mxu0 0.0
    %3074 = vmatprep.subr.mxu0 0.0
    %3075 = vmatpush2.msra.mxu0 0.0
    %3076 = vmatprep.subr.mxu0 0.0
    %3077 = vmatpush2.msra.mxu0 0.0
    %3078 = vmatprep.subr.mxu0 0.0
    %3079 = vmatpush2.msra.mxu0 0.0
    %3080 = vmatprep.subr.mxu0 0.0
    %3081 = vmatpush2.msra.mxu0 0.0
    %3082 = vmatprep.subr.mxu0 0.0
    %3083 = vmatpush2.msra.mxu0 0.0
    %3084 = vmatprep.subr.mxu0 0.0
    %3085 = vmatpush2.msra.mxu0 0.0
    %3086 = vmatprep.subr.mxu0 0.0
    %3087 = vmatpush2.msra.mxu0 0.0
    %3088 = vmatprep.subr.mxu0 0.0
    %3089 = vmatpush2.msra.mxu0 0.0
    %3090 = vmatprep.subr.mxu0 0.0
    %3091 = vmatpush2.msra.mxu0 0.0
    %3092 = vmatprep.subr.mxu0 0.0
    %3093 = vmatpush2.msra.mxu0 0.0
    %3094 = vmatprep.subr.mxu0 0.0
    %3095 = vmatpush2.msra.mxu0 0.0
    %3096 = vmatprep.subr.mxu0 0.0
    %3097 = vmatpush2.msra.mxu0 0.0
    %3098 = vmatprep.mubr.f32.mxu0 0.0
    %3099 = vmatmul.mubr.f32.gmra.mxu0 %v3029
    %v3100 = vpop.f32.mrf.mxu0
    %v3101 = vadd.f32 %v3026, %v3100
    %v3102 = vpop.f32.mrf.mxu0
    %3103 = vmatprep.mubr.f32.mxu0 0.0
    %3104 = vmatmul.mubr.f32.gmra.mxu0 %v3032
    %v3105 = vpop.f32.mrf.mxu0
    %v3106 = vadd.f32 %v3026, %v3105
    %v3107 = vpop.f32.mrf.mxu0
    %3108 = vdwg.mxu0
    %v3109 = vadd.f32 %v2917, %v3101
    %v3110 = vadd.f32 %v2918, %v3106
    %s3111 = scalar_lea.vmem %s20, 1
    %v3112 = vld [vmem:[%s3111] sm:$0x1]
    %s3113 = scalar_lea.vmem %s21, 1
    %v3114 = vld [vmem:[%s3113] sm:$0x1]
    %v3115 = vsel %vm294, %v3109, 0.0
    %3116 = vadd.xlane.f32.xlu0 %v3115
    %v3117 = vpop.xlane.xlu0 %3116
    %v3118 = vsel %vm294, %v3110, 0.0
    %3119 = vadd.xlane.f32.xlu0 %v3118
    %v3120 = vpop.xlane.xlu0 %3119
    %v3121 = vmul.f32 %v3117, %v1460
    %v3122 = vmul.f32 %v3120, %v1460
    %v3123 = vsub.f32 %v3109, %v3121
    %v3124 = vsub.f32 %v3110, %v3122
    %v3125 = vmul.f32 %v3123, %v3123
    %v3126 = vmul.f32 %v3124, %v3124
    %v3127 = vsel %vm294, %v3125, 0.0
    %3128 = vadd.xlane.f32.xlu0 %v3127
    %v3129 = vpop.xlane.xlu0 %3128
    %v3130 = vsel %vm294, %v3126, 0.0
    %3131 = vadd.xlane.f32.xlu0 %v3130
    %v3132 = vpop.xlane.xlu0 %3131
    %v3133 = vmul.f32 %v3129, %v1460
    %v3134 = vmul.f32 %v3132, %v1460
    %v3135 = vadd.f32 %v3133, 1e-05
    %v3136 = vadd.f32 %v3134, 1e-05
    %v3137 = vrsqrt.pop %v3135
    %v3138 = vrsqrt.pop %v3136
    %v3139 = vmul.f32 %v3123, %v3137
    %v3140 = vmul.f32 %v3124, %v3138
    %v3142 = vlaneseq
    %v3143 = vshrl.u32 %v3142, 7
    %v3144 = vsub.s32 0, %v3143
    %v3145 = vrot.slane %v3112, %v3144
    %v3147 = vmul.f32 %v3139, %v3145
    %v3148 = vmul.f32 %v3140, %v3145
    %v3150 = vlaneseq
    %v3151 = vshrl.u32 %v3150, 7
    %v3152 = vsub.s32 0, %v3151
    %v3153 = vrot.slane %v3114, %v3152
    %v3155 = vadd.f32 %v3147, %v3153
    %v3156 = vadd.f32 %v3148, %v3153
    %3157 = vst.msk [vmem:[#allocation16] sm:$0xff] %vm294, %v3155
    %3158 = vst.msk [vmem:[#allocation16 + $0x8] sm:$0xff] %vm294, %v3156
    // Predicated region
    $region122: #{tpu_custom_call.1} parent=1 // pred_check
      _
    $region123: #{tpu_custom_call.1} parent=1 // pred_check_branch
      %3160 = sbr.rel (0) target = $region125
    $region124: #{tpu_custom_call.1} parent=1 // pred_region
      %s3162 = ssub.s32 256, 256
      %3163 = vsyncadd [#allocation4], %s3162
      %s3164 = sshll.u32 [#allocation16], 4
      %s3165 = int_to_ptr.vmem [resolvable:$true] %s3164
      %3170 = dma.vmem_to_hbm [thread:$0]  %s3165, 256, %s22, [#allocation4], 128, 128, 8
    $region125: #{tpu_custom_call.1} parent=1 // pred_fallthru
      _
    // Predicated region
    $region126: #{tpu_custom_call.1} parent=1 // pred_check
      _
    $region127: #{tpu_custom_call.1} parent=1 // pred_check_branch
      %3172 = sbr.rel (0) target = $region129
    $region128: #{tpu_custom_call.1} parent=1 // pred_region
      %3173 = dma.done [#allocation4], 256
    $region129: #{tpu_custom_call.1} parent=1 // pred_fallthru
      _
    %3174 = vsyncpa [#allocation3], 1
    %3175 = vsyncpa [#allocation6], 1
    %3176 = vsyncpa [#allocation9], 1
    %3177 = vsyncpa [#allocation12], 1
    %3178 = vsyncpa [#allocation15], 1
    %3179 = vsyncpa [#allocation4], 1

</llo_original>
